<compile_context>
chip_gen: v5e
topology: v5e:2x2
jax: 0.10.0
libtpu: 0.0.40
codegen_flags: <defaults>
</compile_context>

<pallas_src>
import math
import jax
import jax.numpy as jnp
from jax.experimental import pallas as pl
from jax.experimental.pallas import tpu as pltpu

SQRT_HALF = math.sqrt(0.5)
LANE = 128


def _round_up(n, m):
    return ((n + m - 1) // m) * m


def _pad_axis(a, target, axis):
    amount = target - a.shape[axis]
    if amount == 0:
        return a
    widths = [(0, 0)] * a.ndim
    widths[axis] = (0, amount)
    return jnp.pad(a, widths)


# ----------------------------- weight packing -----------------------------
def pack_params(params, ksize, compute_dtype=jnp.float32):
    """Zero-pad channels to 128 lanes, fuse GLU tanh/sigmoid halves into one
    weight, fold the K dilation taps into the contraction dim, fuse the
    out/skip 1x1 convs, and stack per-layer weights."""
    w0, b0 = params["first"]
    labels, cres = w0.shape
    half = params["layers"][0][0].shape[2] // 2
    cskip = params["layers"][0][4].shape[1]
    labels_p = _round_up(labels, LANE)
    cres_p = _round_up(cres, LANE)
    half_p = _round_up(half, LANE)
    cskip_p = _round_up(cskip, LANE)

    cast = lambda a: a.astype(compute_dtype)

    w0p = cast(_pad_axis(_pad_axis(w0, labels_p, 0), cres_p, 1))
    b0p = _pad_axis(b0, cres_p, 1)                       # biases stay f32

    wg_l, bg_l, wos_l, bos_l = [], [], [], []
    for wconv, bconv, wout, bout, wskip, bskip in params["layers"]:
        # Fused GLU weight: tanh half at cols [:half_p], sigmoid at [half_p:].
        wt = _pad_axis(wconv[:, :, :half], half_p, 2)
        ws = _pad_axis(wconv[:, :, half:], half_p, 2)
        wg = _pad_axis(jnp.concatenate([wt, ws], axis=2), cres_p, 1)  # (K, cres_p, 2*half_p)
        # Fold the K taps into the contraction dimension: (K*cres_p, 2*half_p).
        wg_l.append(wg.reshape(ksize * cres_p, 2 * half_p))
        bg_l.append(jnp.concatenate([_pad_axis(bconv[:, :half], half_p, 1),
                                     _pad_axis(bconv[:, half:], half_p, 1)], axis=1))
        wo = _pad_axis(_pad_axis(wout, half_p, 0), cres_p, 1)
        wk = _pad_axis(_pad_axis(wskip, half_p, 0), cskip_p, 1)
        wos_l.append(jnp.concatenate([wo, wk], axis=1))
        bos_l.append(jnp.concatenate([_pad_axis(bout, cres_p, 1),
                                      _pad_axis(bskip, cskip_p, 1)], axis=1))

    wg = cast(jnp.stack(wg_l))             # (L, K*cres_p, 2*half_p)
    bg = jnp.stack(bg_l)                   # (L, 1, 2*half_p)  f32
    wos = cast(jnp.stack(wos_l))           # (L, half_p, cres_p + cskip_p)
    bos = jnp.stack(bos_l)                 # (L, 1, cres_p + cskip_p)  f32

    w1, b1, w2, b2 = params["last"]
    w1p = cast(_pad_axis(_pad_axis(w1, cskip_p, 0), cskip_p, 1))
    b1p = _pad_axis(b1, cskip_p, 1)
    w2p = cast(_pad_axis(_pad_axis(w2, cskip_p, 0), labels_p, 1))
    b2p = _pad_axis(b2, labels_p, 1)

    tensors = (w0p, b0p, wg, bg, wos, bos, w1p, b1p, w2p, b2p)
    dims = dict(labels_p=labels_p, cres_p=cres_p, half_p=half_p, cskip_p=cskip_p)
    return tensors, dims


# ------------------------------ fused kernel -------------------------------
def make_fused_kernel(dilations, ksize, t_tile, cres_p, cskip_p, half_p,
                      maxpad_al, tail_offs):
    def kernel(x_ref, w0_ref, b0_ref, wg_ref, bg_ref, wos_ref, bos_ref,
               w1_ref, b1_ref, w2_ref, b2_ref,
               o_ref, xbuf_ref, tails_ref):
        t = pl.program_id(1)
        cdt = w0_ref.dtype                     # matmul operand dtype (f32 / bf16)

        # Reset the per-layer causal carry at the start of each batch row.
        @pl.when(t == 0)
        def _():
            tails_ref[...] = jnp.zeros_like(tails_ref)

        # First 1x1 conv (one-hot @ W0), f32 accumulation.
        h = (jnp.dot(x_ref[0], w0_ref[...], preferred_element_type=jnp.float32)
             + b0_ref[...])                    # (t_tile, cres_p) f32

        skips = None
        for i, d in enumerate(dilations):      # unrolled; h & skips stay in VMEM/vregs
            pad = (ksize - 1) * d
            off = tail_offs[i]
            h_c = h.astype(cdt)                # cast once per layer

            if pad > 0:
                # Stage carried left context + current tile (all offsets static).
                xbuf_ref[pl.ds(maxpad_al - pad, pad), :] = tails_ref[pl.ds(off, pad), :]
                xbuf_ref[pl.ds(maxpad_al, t_tile), :] = h_c
                # Rolling carry: new tail = last `pad` rows of concat(old_tail, h).
                tails_ref[pl.ds(off, pad), :] = \
                    xbuf_ref[pl.ds(maxpad_al + t_tile - pad, pad), :]
            else:
                xbuf_ref[pl.ds(maxpad_al, t_tile), :] = h_c

            # Dilated causal conv: K shifted views concatenated along lanes,
            # one matmul against the fused tanh||sigmoid weight.
            xk = jnp.concatenate(
                [xbuf_ref[pl.ds(maxpad_al - pad + k * d, t_tile), :]
                 for k in range(ksize)], axis=1)                  # (t_tile, K*cres_p)
            z = (jnp.dot(xk, wg_ref[i], preferred_element_type=jnp.float32)
                 + bg_ref[i])                                     # (t_tile, 2*half_p)
            gated = jnp.tanh(z[:, :half_p]) * jax.nn.sigmoid(z[:, half_p:])

            # Fused out/skip 1x1 convs: one matmul, split at a 128-aligned column.
            os_ = (jnp.dot(gated.astype(cdt), wos_ref[i],
                           preferred_element_type=jnp.float32) + bos_ref[i])
            h = (os_[:, :cres_p] + h) * SQRT_HALF
            s = os_[:, cres_p:]
            skips = s if i == 0 else (skips + s) * SQRT_HALF

        # Final stack: ReLU -> 1x1 -> ReLU -> 1x1 (lane-dense output).
        y = jnp.maximum(skips, 0.0)
        y = jnp.dot(y.astype(cdt), w1_ref[...], preferred_element_type=jnp.float32) + b1_ref[...]
        y = jnp.maximum(y, 0.0)
        y = jnp.dot(y.astype(cdt), w2_ref[...], preferred_element_type=jnp.float32) + b2_ref[...]
        o_ref[0] = y.astype(o_ref.dtype)

    return kernel


# ------------------------------ full forward -------------------------------
def wavenet_forward(x, params, dilations, ksize, *, t_tile=128,
                    compute_dtype=jnp.float32):
    """x: (B, T, labels) one-hot.  Returns (B, T, labels) logits."""
    B, T, labels = x.shape
    tensors, dims = pack_params(params, ksize, compute_dtype=compute_dtype)
    labels_p = dims["labels_p"]
    cres_p, half_p, cskip_p = dims["cres_p"], dims["half_p"], dims["cskip_p"]

    pads = [(ksize - 1) * d for d in dilations]
    maxpad = max(pads)
    assert t_tile % 8 == 0, t_tile
    maxpad_al = max(8, _round_up(maxpad, 8))

    # Packed per-layer causal-carry offsets (8-aligned rows per layer).
    tail_offs, tail_total = [], 0
    for p_ in pads:
        tail_offs.append(tail_total)
        tail_total += _round_up(max(p_, 1), 8)
    tail_total = max(tail_total, 8)

    # Causal conv: zero-padding the END of the time axis cannot affect t < T,
    # so round T up to a tile multiple and slice the result afterwards.
    tp = _round_up(T, t_tile)
    xp = jnp.pad(x, ((0, 0), (0, tp - T), (0, labels_p - labels))).astype(compute_dtype)
    nt = tp // t_tile

    kernel = make_fused_kernel(tuple(dilations), ksize, t_tile, cres_p, cskip_p,
                               half_p, maxpad_al, tuple(tail_offs))

    # Whole-array, single-copy VMEM residence for every weight tensor: no
    # per-step re-fetch and no double-buffering of constant blocks.
    w_spec = pl.BlockSpec(memory_space=pltpu.MemorySpace.VMEM)

    itemsize = jnp.dtype(compute_dtype).itemsize
    weight_bytes = sum(int(w.size) * w.dtype.itemsize for w in tensors)
    scratch_bytes = (maxpad_al + t_tile + tail_total) * cres_p * itemsize
    io_bytes = 2 * 2 * t_tile * labels_p * 4          # double-buffered in/out tiles
    vmem_limit = int(min(64 * 1024 * 1024,
                         max(32 * 1024 * 1024,
                             2 * (weight_bytes + scratch_bytes + io_bytes))))

    out = pl.pallas_call(
        kernel,
        out_shape=jax.ShapeDtypeStruct((B, tp, labels_p), jnp.float32),
        grid=(B, nt),
        in_specs=[pl.BlockSpec((1, t_tile, labels_p), lambda b, t: (b, t, 0))]
                 + [w_spec] * len(tensors),
        out_specs=pl.BlockSpec((1, t_tile, labels_p), lambda b, t: (b, t, 0)),
        scratch_shapes=[
            pltpu.VMEM((maxpad_al + t_tile, cres_p), compute_dtype),  # padded layer input
            pltpu.VMEM((tail_total, cres_p), compute_dtype),          # packed causal carry
        ],
        compiler_params=pltpu.CompilerParams(
            dimension_semantics=("parallel", "arbitrary"),
            vmem_limit_bytes=vmem_limit),
    )(xp, *tensors)
    return out[:, :T, :labels]


# ---------------------------- pure-JAX reference ----------------------------
def wavenet_reference(x, params, dilations, ksize):
    w0, b0 = params["first"]
    h = x @ w0 + b0
    T = x.shape[1]
    skips = None
    for i, d in enumerate(dilations):
        wconv, bconv, wout, bout, wskip, bskip = params["layers"][i]
        pad = (ksize - 1) * d
        xp = jnp.pad(h, ((0, 0), (pad, 0), (0, 0)))
        z = jnp.zeros(h.shape[:2] + (wconv.shape[2],), jnp.float32)
        for k in range(ksize):
            z = z + jnp.einsum("btc,cg->btg", xp[:, k * d:k * d + T], wconv[k])
        z = z + bconv
        half = z.shape[-1] // 2
        gated = jnp.tanh(z[..., :half]) * jax.nn.sigmoid(z[..., half:])
        s = jnp.einsum("btc,cs->bts", gated, wskip) + bskip
        h = (jnp.einsum("btc,cr->btr", gated, wout) + bout + h) * SQRT_HALF
        skips = s if skips is None else (skips + s) * SQRT_HALF
    w1, b1, w2, b2 = params["last"]
    y = jnp.maximum(skips, 0.0) @ w1 + b1
    y = jnp.maximum(y, 0.0) @ w2 + b2
    return y


# ------------------------------ parameter init ------------------------------
def init_params(key, labels, layers, Cres, Cgate, Cskip, ksize):
    keys = iter(jax.random.split(key, 8 + 6 * layers))

    def w(shape, fan_in):
        return jax.random.normal(next(keys), shape, jnp.float32) / math.sqrt(fan_in)

    params = {
        "first": (w((labels, Cres), labels), w((1, Cres), Cres)),
        "layers": [],
        "last": (w((Cskip, Cskip), Cskip), w((1, Cskip), Cskip),
                 w((Cskip, labels), Cskip), w((1, labels), labels)),
    }
    half = Cgate // 2
    for _ in range(layers):
        params["layers"].append((
            w((ksize, Cres, Cgate), Cres * ksize),   # dilated conv weight
            w((1, Cgate), Cgate),                    # dilated conv bias
            w((half, Cres), half),                   # conv1x1_out weight
            w((1, Cres), Cres),                      # conv1x1_out bias
            w((half, Cskip), half),                  # conv1x1_skip weight
            w((1, Cskip), Cskip),                    # conv1x1_skip bias
        ))
    return params


if __name__ == "__main__":
    # Small, WaveNet-consistent config.  stacks=1 gives dilations [1,2,4,8,16]
    # so pads go up to 32 > t_tile=16, exercising the rolling causal carry.
    labels = 16
    layers = 5
    stacks = 1
    Cres = 32
    Cgate = 32
    Cskip = 32
    ksize = 3
    B, T = 2, 72
    T_TILE = 16          # small smoke-test tile; production default is 128+

    layers_per_stack = layers // stacks
    dilations = [2 ** (l % layers_per_stack) for l in range(layers)]

    key = jax.random.PRNGKey(0)
    pkey, xkey = jax.random.split(key)
    params = init_params(pkey, labels, layers, Cres, Cgate, Cskip, ksize)

    # One-hot "audio" input, (B, T, labels)  (PyTorch equivalent: (B, labels, T)).
    ids = jax.random.randint(xkey, (B, T), 0, labels)
    x = jax.nn.one_hot(ids, labels, dtype=jnp.float32)

    out = wavenet_forward(x, params, dilations, ksize, t_tile=T_TILE)
    out = jax.block_until_ready(out)

    ref = jax.block_until_ready(wavenet_reference(x, params, dilations, ksize))
    assert out.shape == (B, T, labels), out.shape
    err = float(jnp.max(jnp.abs(out - ref)))
    assert jnp.allclose(out, ref, rtol=1e-3, atol=1e-3), err

    print("KERNEL_OK")
</pallas_src>

<mosaic_0001>
module attributes {stable_mosaic.version = 11 : i64} {
  func.func @kernel(%arg0: i32, %arg1: i32, %arg2: memref<1x16x128xf32, #tpu.memory_space<vmem>>, %arg3: memref<128x128xf32, #tpu.memory_space<vmem>>, %arg4: memref<1x128xf32, #tpu.memory_space<vmem>>, %arg5: memref<5x384x256xf32, #tpu.memory_space<vmem>>, %arg6: memref<5x1x256xf32, #tpu.memory_space<vmem>>, %arg7: memref<5x128x256xf32, #tpu.memory_space<vmem>>, %arg8: memref<5x1x256xf32, #tpu.memory_space<vmem>>, %arg9: memref<128x128xf32, #tpu.memory_space<vmem>>, %arg10: memref<1x128xf32, #tpu.memory_space<vmem>>, %arg11: memref<128x128xf32, #tpu.memory_space<vmem>>, %arg12: memref<1x128xf32, #tpu.memory_space<vmem>>, %arg13: memref<1x16x128xf32, #tpu.memory_space<vmem>>, %arg14: memref<48x128xf32, #tpu.memory_space<vmem>>, %arg15: memref<72x128xf32, #tpu.memory_space<vmem>>) attributes {dimension_semantics = [#tpu.dimension_semantics<parallel>, #tpu.dimension_semantics<arbitrary>], iteration_bounds = array<i64: 2, 5>, scalar_prefetch = 0 : i64, scratch_operands = 2 : i64, tpu.core_type = #tpu.core_type<tc>, window_params = [{transform_indices = @transform_0, window_bounds = array<i64: 1, 16, 128>}, {pipeline_mode = #tpu.pipeline_mode<synchronous>, transform_indices = @transform_1, window_bounds = array<i64: 128, 128>}, {pipeline_mode = #tpu.pipeline_mode<synchronous>, transform_indices = @transform_2, window_bounds = array<i64: 1, 128>}, {pipeline_mode = #tpu.pipeline_mode<synchronous>, transform_indices = @transform_3, window_bounds = array<i64: 5, 384, 256>}, {pipeline_mode = #tpu.pipeline_mode<synchronous>, transform_indices = @transform_4, window_bounds = array<i64: 5, 1, 256>}, {pipeline_mode = #tpu.pipeline_mode<synchronous>, transform_indices = @transform_5, window_bounds = array<i64: 5, 128, 256>}, {pipeline_mode = #tpu.pipeline_mode<synchronous>, transform_indices = @transform_6, window_bounds = array<i64: 5, 1, 256>}, {pipeline_mode = #tpu.pipeline_mode<synchronous>, transform_indices = @transform_7, window_bounds = array<i64: 128, 128>}, {pipeline_mode = #tpu.pipeline_mode<synchronous>, transform_indices = @transform_8, window_bounds = array<i64: 1, 128>}, {pipeline_mode = #tpu.pipeline_mode<synchronous>, transform_indices = @transform_9, window_bounds = array<i64: 128, 128>}, {pipeline_mode = #tpu.pipeline_mode<synchronous>, transform_indices = @transform_10, window_bounds = array<i64: 1, 128>}, {transform_indices = @transform_11, window_bounds = array<i64: 1, 16, 128>}]} {
    %c0_i32 = arith.constant 0 : i32
    %0 = arith.cmpi eq, %arg1, %c0_i32 : i32
    %1 = arith.extui %0 : i1 to i32
    %c0_i32_0 = arith.constant 0 : i32
    %2 = arith.cmpi ne, %1, %c0_i32_0 : i32
    scf.if %2 {
      %cst_171 = arith.constant 0.000000e+00 : f32
      %220 = vector.broadcast %cst_171 : f32 to vector<72x128xf32>
      %c0_172 = arith.constant 0 : index
      %c0_173 = arith.constant 0 : index
      %221 = vector.load %arg15[%c0_172, %c0_173] : memref<72x128xf32, #tpu.memory_space<vmem>>, vector<72x128xf32>
      tpu.vector_store %arg15[%c0_172, %c0_173], %220 {strides = array<i32>} : memref<72x128xf32, #tpu.memory_space<vmem>>, vector<72x128xf32>,
    } else {
    }
    %c0 = arith.constant 0 : index
    %c0_1 = arith.constant 0 : index
    %c0_2 = arith.constant 0 : index
    %3 = vector.load %arg2[%c0, %c0_1, %c0_2] : memref<1x16x128xf32, #tpu.memory_space<vmem>>, vector<1x16x128xf32>
    %4 = vector.shape_cast %3 : vector<1x16x128xf32> to vector<16x128xf32>
    %c0_3 = arith.constant 0 : index
    %c0_4 = arith.constant 0 : index
    %5 = vector.load %arg3[%c0_3, %c0_4] : memref<128x128xf32, #tpu.memory_space<vmem>>, vector<128x128xf32>
    %cst = arith.constant dense<0.000000e+00> : vector<16x128xf32>
    %6 = tpu.matmul %4, %5, %cst {dimension_numbers = #tpu.dot_dimension_numbers<[1], [0], [0], [1], [0, 0, 1, 1], [], []>} : vector<16x128xf32>, vector<128x128xf32>, vector<16x128xf32> -> vector<16x128xf32>
    %c0_5 = arith.constant 0 : index
    %c0_6 = arith.constant 0 : index
    %7 = vector.load %arg4[%c0_5, %c0_6] : memref<1x128xf32, #tpu.memory_space<vmem>>, vector<1x128xf32>
    %8 = vector.broadcast %7 : vector<1x128xf32> to vector<16x128xf32>
    %9 = arith.addf %6, %8 : vector<16x128xf32>
    %c0_7 = arith.constant 0 : index
    %c0_8 = arith.constant 0 : index
    %10 = vector.load %arg15[%c0_7, %c0_8] : memref<72x128xf32, #tpu.memory_space<vmem>>, vector<2x128xf32>
    %c30 = arith.constant 30 : index
    %c0_9 = arith.constant 0 : index
    %11 = vector.load %arg14[%c30, %c0_9] : memref<48x128xf32, #tpu.memory_space<vmem>>, vector<2x128xf32>
    tpu.vector_store %arg14[%c30, %c0_9], %10 {strides = array<i32>} : memref<48x128xf32, #tpu.memory_space<vmem>>, vector<2x128xf32>,
    %c32 = arith.constant 32 : index
    %c0_10 = arith.constant 0 : index
    %12 = vector.load %arg14[%c32, %c0_10] : memref<48x128xf32, #tpu.memory_space<vmem>>, vector<16x128xf32>
    tpu.vector_store %arg14[%c32, %c0_10], %9 {strides = array<i32>} : memref<48x128xf32, #tpu.memory_space<vmem>>, vector<16x128xf32>,
    %c46 = arith.constant 46 : index
    %c0_11 = arith.constant 0 : index
    %13 = vector.load %arg14[%c46, %c0_11] : memref<48x128xf32, #tpu.memory_space<vmem>>, vector<2x128xf32>
    %c0_12 = arith.constant 0 : index
    %c0_13 = arith.constant 0 : index
    %14 = vector.load %arg15[%c0_12, %c0_13] : memref<72x128xf32, #tpu.memory_space<vmem>>, vector<2x128xf32>
    tpu.vector_store %arg15[%c0_12, %c0_13], %13 {strides = array<i32>} : memref<72x128xf32, #tpu.memory_space<vmem>>, vector<2x128xf32>,
    %c30_14 = arith.constant 30 : index
    %c0_15 = arith.constant 0 : index
    %15 = vector.load %arg14[%c30_14, %c0_15] : memref<48x128xf32, #tpu.memory_space<vmem>>, vector<16x128xf32>
    %c31 = arith.constant 31 : index
    %c0_16 = arith.constant 0 : index
    %16 = vector.load %arg14[%c31, %c0_16] : memref<48x128xf32, #tpu.memory_space<vmem>>, vector<16x128xf32>
    %c32_17 = arith.constant 32 : index
    %c0_18 = arith.constant 0 : index
    %17 = vector.load %arg14[%c32_17, %c0_18] : memref<48x128xf32, #tpu.memory_space<vmem>>, vector<16x128xf32>
    %18 = tpu.concatenate %15, %16, %17 in 1 : vector<16x128xf32>, vector<16x128xf32>, vector<16x128xf32> -> vector<16x384xf32>
    %c0_19 = arith.constant 0 : index
    %c0_20 = arith.constant 0 : index
    %c0_21 = arith.constant 0 : index
    %19 = vector.load %arg5[%c0_19, %c0_20, %c0_21] : memref<5x384x256xf32, #tpu.memory_space<vmem>>, vector<1x384x256xf32>
    %20 = vector.shape_cast %19 : vector<1x384x256xf32> to vector<384x256xf32>
    %cst_22 = arith.constant dense<0.000000e+00> : vector<16x256xf32>
    %21 = tpu.matmul %18, %20, %cst_22 {dimension_numbers = #tpu.dot_dimension_numbers<[1], [0], [0], [1], [0, 0, 1, 1], [], []>} : vector<16x384xf32>, vector<384x256xf32>, vector<16x256xf32> -> vector<16x256xf32>
    %c0_23 = arith.constant 0 : index
    %c0_24 = arith.constant 0 : index
    %c0_25 = arith.constant 0 : index
    %22 = vector.load %arg6[%c0_23, %c0_24, %c0_25] : memref<5x1x256xf32, #tpu.memory_space<vmem>>, vector<1x1x256xf32>
    %23 = vector.shape_cast %22 : vector<1x1x256xf32> to vector<1x256xf32>
    %24 = vector.broadcast %23 : vector<1x256xf32> to vector<16x256xf32>
    %25 = arith.addf %21, %24 : vector<16x256xf32>
    %26 = vector.extract_strided_slice %25 {offsets = [0, 0], sizes = [16, 128], strides = [1, 1]} : vector<16x256xf32> to vector<16x128xf32>
    %27 = math.tanh %26 : vector<16x128xf32>
    %28 = vector.extract_strided_slice %25 {offsets = [0, 128], sizes = [16, 128], strides = [1, 1]} : vector<16x256xf32> to vector<16x128xf32>
    %29 = arith.negf %28 : vector<16x128xf32>
    %30 = math.exp %29 : vector<16x128xf32>
    %cst_26 = arith.constant 1.000000e+00 : f32
    %31 = vector.broadcast %cst_26 : f32 to vector<16x128xf32>
    %32 = arith.addf %31, %30 : vector<16x128xf32>
    %33 = arith.divf %31, %32 : vector<16x128xf32>
    %34 = arith.mulf %27, %33 : vector<16x128xf32>
    %c0_27 = arith.constant 0 : index
    %c0_28 = arith.constant 0 : index
    %c0_29 = arith.constant 0 : index
    %35 = vector.load %arg7[%c0_27, %c0_28, %c0_29] : memref<5x128x256xf32, #tpu.memory_space<vmem>>, vector<1x128x256xf32>
    %36 = vector.shape_cast %35 : vector<1x128x256xf32> to vector<128x256xf32>
    %cst_30 = arith.constant dense<0.000000e+00> : vector<16x256xf32>
    %37 = tpu.matmul %34, %36, %cst_30 {dimension_numbers = #tpu.dot_dimension_numbers<[1], [0], [0], [1], [0, 0, 1, 1], [], []>} : vector<16x128xf32>, vector<128x256xf32>, vector<16x256xf32> -> vector<16x256xf32>
    %c0_31 = arith.constant 0 : index
    %c0_32 = arith.constant 0 : index
    %c0_33 = arith.constant 0 : index
    %38 = vector.load %arg8[%c0_31, %c0_32, %c0_33] : memref<5x1x256xf32, #tpu.memory_space<vmem>>, vector<1x1x256xf32>
    %39 = vector.shape_cast %38 : vector<1x1x256xf32> to vector<1x256xf32>
    %40 = vector.broadcast %39 : vector<1x256xf32> to vector<16x256xf32>
    %41 = arith.addf %37, %40 : vector<16x256xf32>
    %42 = vector.extract_strided_slice %41 {offsets = [0, 0], sizes = [16, 128], strides = [1, 1]} : vector<16x256xf32> to vector<16x128xf32>
    %43 = arith.addf %42, %9 : vector<16x128xf32>
    %cst_34 = arith.constant 0.707106769 : f32
    %44 = vector.broadcast %cst_34 : f32 to vector<16x128xf32>
    %45 = arith.mulf %43, %44 : vector<16x128xf32>
    %46 = vector.extract_strided_slice %41 {offsets = [0, 128], sizes = [16, 128], strides = [1, 1]} : vector<16x256xf32> to vector<16x128xf32>
    %c8 = arith.constant 8 : index
    %c0_35 = arith.constant 0 : index
    %47 = vector.load %arg15[%c8, %c0_35] : memref<72x128xf32, #tpu.memory_space<vmem>>, vector<4x128xf32>
    %c28 = arith.constant 28 : index
    %c0_36 = arith.constant 0 : index
    %48 = vector.load %arg14[%c28, %c0_36] : memref<48x128xf32, #tpu.memory_space<vmem>>, vector<4x128xf32>
    tpu.vector_store %arg14[%c28, %c0_36], %47 {strides = array<i32>} : memref<48x128xf32, #tpu.memory_space<vmem>>, vector<4x128xf32>,
    %c32_37 = arith.constant 32 : index
    %c0_38 = arith.constant 0 : index
    %49 = vector.load %arg14[%c32_37, %c0_38] : memref<48x128xf32, #tpu.memory_space<vmem>>, vector<16x128xf32>
    tpu.vector_store %arg14[%c32_37, %c0_38], %45 {strides = array<i32>} : memref<48x128xf32, #tpu.memory_space<vmem>>, vector<16x128xf32>,
    %c44 = arith.constant 44 : index
    %c0_39 = arith.constant 0 : index
    %50 = vector.load %arg14[%c44, %c0_39] : memref<48x128xf32, #tpu.memory_space<vmem>>, vector<4x128xf32>
    %c8_40 = arith.constant 8 : index
    %c0_41 = arith.constant 0 : index
    %51 = vector.load %arg15[%c8_40, %c0_41] : memref<72x128xf32, #tpu.memory_space<vmem>>, vector<4x128xf32>
    tpu.vector_store %arg15[%c8_40, %c0_41], %50 {strides = array<i32>} : memref<72x128xf32, #tpu.memory_space<vmem>>, vector<4x128xf32>,
    %c28_42 = arith.constant 28 : index
    %c0_43 = arith.constant 0 : index
    %52 = vector.load %arg14[%c28_42, %c0_43] : memref<48x128xf32, #tpu.memory_space<vmem>>, vector<16x128xf32>
    %c30_44 = arith.constant 30 : index
    %c0_45 = arith.constant 0 : index
    %53 = vector.load %arg14[%c30_44, %c0_45] : memref<48x128xf32, #tpu.memory_space<vmem>>, vector<16x128xf32>
    %c32_46 = arith.constant 32 : index
    %c0_47 = arith.constant 0 : index
    %54 = vector.load %arg14[%c32_46, %c0_47] : memref<48x128xf32, #tpu.memory_space<vmem>>, vector<16x128xf32>
    %55 = tpu.concatenate %52, %53, %54 in 1 : vector<16x128xf32>, vector<16x128xf32>, vector<16x128xf32> -> vector<16x384xf32>
    %c1 = arith.constant 1 : index
    %c0_48 = arith.constant 0 : index
    %c0_49 = arith.constant 0 : index
    %56 = vector.load %arg5[%c1, %c0_48, %c0_49] : memref<5x384x256xf32, #tpu.memory_space<vmem>>, vector<1x384x256xf32>
    %57 = vector.shape_cast %56 : vector<1x384x256xf32> to vector<384x256xf32>
    %cst_50 = arith.constant dense<0.000000e+00> : vector<16x256xf32>
    %58 = tpu.matmul %55, %57, %cst_50 {dimension_numbers = #tpu.dot_dimension_numbers<[1], [0], [0], [1], [0, 0, 1, 1], [], []>} : vector<16x384xf32>, vector<384x256xf32>, vector<16x256xf32> -> vector<16x256xf32>
    %c1_51 = arith.constant 1 : index
    %c0_52 = arith.constant 0 : index
    %c0_53 = arith.constant 0 : index
    %59 = vector.load %arg6[%c1_51, %c0_52, %c0_53] : memref<5x1x256xf32, #tpu.memory_space<vmem>>, vector<1x1x256xf32>
    %60 = vector.shape_cast %59 : vector<1x1x256xf32> to vector<1x256xf32>
    %61 = vector.broadcast %60 : vector<1x256xf32> to vector<16x256xf32>
    %62 = arith.addf %58, %61 : vector<16x256xf32>
    %63 = vector.extract_strided_slice %62 {offsets = [0, 0], sizes = [16, 128], strides = [1, 1]} : vector<16x256xf32> to vector<16x128xf32>
    %64 = math.tanh %63 : vector<16x128xf32>
    %65 = vector.extract_strided_slice %62 {offsets = [0, 128], sizes = [16, 128], strides = [1, 1]} : vector<16x256xf32> to vector<16x128xf32>
    %66 = arith.negf %65 : vector<16x128xf32>
    %67 = math.exp %66 : vector<16x128xf32>
    %cst_54 = arith.constant 1.000000e+00 : f32
    %68 = vector.broadcast %cst_54 : f32 to vector<16x128xf32>
    %69 = arith.addf %68, %67 : vector<16x128xf32>
    %70 = arith.divf %68, %69 : vector<16x128xf32>
    %71 = arith.mulf %64, %70 : vector<16x128xf32>
    %c1_55 = arith.constant 1 : index
    %c0_56 = arith.constant 0 : index
    %c0_57 = arith.constant 0 : index
    %72 = vector.load %arg7[%c1_55, %c0_56, %c0_57] : memref<5x128x256xf32, #tpu.memory_space<vmem>>, vector<1x128x256xf32>
    %73 = vector.shape_cast %72 : vector<1x128x256xf32> to vector<128x256xf32>
    %cst_58 = arith.constant dense<0.000000e+00> : vector<16x256xf32>
    %74 = tpu.matmul %71, %73, %cst_58 {dimension_numbers = #tpu.dot_dimension_numbers<[1], [0], [0], [1], [0, 0, 1, 1], [], []>} : vector<16x128xf32>, vector<128x256xf32>, vector<16x256xf32> -> vector<16x256xf32>
    %c1_59 = arith.constant 1 : index
    %c0_60 = arith.constant 0 : index
    %c0_61 = arith.constant 0 : index
    %75 = vector.load %arg8[%c1_59, %c0_60, %c0_61] : memref<5x1x256xf32, #tpu.memory_space<vmem>>, vector<1x1x256xf32>
    %76 = vector.shape_cast %75 : vector<1x1x256xf32> to vector<1x256xf32>
    %77 = vector.broadcast %76 : vector<1x256xf32> to vector<16x256xf32>
    %78 = arith.addf %74, %77 : vector<16x256xf32>
    %79 = vector.extract_strided_slice %78 {offsets = [0, 0], sizes = [16, 128], strides = [1, 1]} : vector<16x256xf32> to vector<16x128xf32>
    %80 = arith.addf %79, %45 : vector<16x128xf32>
    %cst_62 = arith.constant 0.707106769 : f32
    %81 = vector.broadcast %cst_62 : f32 to vector<16x128xf32>
    %82 = arith.mulf %80, %81 : vector<16x128xf32>
    %83 = vector.extract_strided_slice %78 {offsets = [0, 128], sizes = [16, 128], strides = [1, 1]} : vector<16x256xf32> to vector<16x128xf32>
    %84 = arith.addf %46, %83 : vector<16x128xf32>
    %cst_63 = arith.constant 0.707106769 : f32
    %85 = vector.broadcast %cst_63 : f32 to vector<16x128xf32>
    %86 = arith.mulf %84, %85 : vector<16x128xf32>
    %c16 = arith.constant 16 : index
    %c0_64 = arith.constant 0 : index
    %87 = vector.load %arg15[%c16, %c0_64] : memref<72x128xf32, #tpu.memory_space<vmem>>, vector<8x128xf32>
    %c24 = arith.constant 24 : index
    %c0_65 = arith.constant 0 : index
    %88 = vector.load %arg14[%c24, %c0_65] : memref<48x128xf32, #tpu.memory_space<vmem>>, vector<8x128xf32>
    tpu.vector_store %arg14[%c24, %c0_65], %87 {strides = array<i32>} : memref<48x128xf32, #tpu.memory_space<vmem>>, vector<8x128xf32>,
    %c32_66 = arith.constant 32 : index
    %c0_67 = arith.constant 0 : index
    %89 = vector.load %arg14[%c32_66, %c0_67] : memref<48x128xf32, #tpu.memory_space<vmem>>, vector<16x128xf32>
    tpu.vector_store %arg14[%c32_66, %c0_67], %82 {strides = array<i32>} : memref<48x128xf32, #tpu.memory_space<vmem>>, vector<16x128xf32>,
    %c40 = arith.constant 40 : index
    %c0_68 = arith.constant 0 : index
    %90 = vector.load %arg14[%c40, %c0_68] : memref<48x128xf32, #tpu.memory_space<vmem>>, vector<8x128xf32>
    %c16_69 = arith.constant 16 : index
    %c0_70 = arith.constant 0 : index
    %91 = vector.load %arg15[%c16_69, %c0_70] : memref<72x128xf32, #tpu.memory_space<vmem>>, vector<8x128xf32>
    tpu.vector_store %arg15[%c16_69, %c0_70], %90 {strides = array<i32>} : memref<72x128xf32, #tpu.memory_space<vmem>>, vector<8x128xf32>,
    %c24_71 = arith.constant 24 : index
    %c0_72 = arith.constant 0 : index
    %92 = vector.load %arg14[%c24_71, %c0_72] : memref<48x128xf32, #tpu.memory_space<vmem>>, vector<16x128xf32>
    %c28_73 = arith.constant 28 : index
    %c0_74 = arith.constant 0 : index
    %93 = vector.load %arg14[%c28_73, %c0_74] : memref<48x128xf32, #tpu.memory_space<vmem>>, vector<16x128xf32>
    %c32_75 = arith.constant 32 : index
    %c0_76 = arith.constant 0 : index
    %94 = vector.load %arg14[%c32_75, %c0_76] : memref<48x128xf32, #tpu.memory_space<vmem>>, vector<16x128xf32>
    %95 = tpu.concatenate %92, %93, %94 in 1 : vector<16x128xf32>, vector<16x128xf32>, vector<16x128xf32> -> vector<16x384xf32>
    %c2 = arith.constant 2 : index
    %c0_77 = arith.constant 0 : index
    %c0_78 = arith.constant 0 : index
    %96 = vector.load %arg5[%c2, %c0_77, %c0_78] : memref<5x384x256xf32, #tpu.memory_space<vmem>>, vector<1x384x256xf32>
    %97 = vector.shape_cast %96 : vector<1x384x256xf32> to vector<384x256xf32>
    %cst_79 = arith.constant dense<0.000000e+00> : vector<16x256xf32>
    %98 = tpu.matmul %95, %97, %cst_79 {dimension_numbers = #tpu.dot_dimension_numbers<[1], [0], [0], [1], [0, 0, 1, 1], [], []>} : vector<16x384xf32>, vector<384x256xf32>, vector<16x256xf32> -> vector<16x256xf32>
    %c2_80 = arith.constant 2 : index
    %c0_81 = arith.constant 0 : index
    %c0_82 = arith.constant 0 : index
    %99 = vector.load %arg6[%c2_80, %c0_81, %c0_82] : memref<5x1x256xf32, #tpu.memory_space<vmem>>, vector<1x1x256xf32>
    %100 = vector.shape_cast %99 : vector<1x1x256xf32> to vector<1x256xf32>
    %101 = vector.broadcast %100 : vector<1x256xf32> to vector<16x256xf32>
    %102 = arith.addf %98, %101 : vector<16x256xf32>
    %103 = vector.extract_strided_slice %102 {offsets = [0, 0], sizes = [16, 128], strides = [1, 1]} : vector<16x256xf32> to vector<16x128xf32>
    %104 = math.tanh %103 : vector<16x128xf32>
    %105 = vector.extract_strided_slice %102 {offsets = [0, 128], sizes = [16, 128], strides = [1, 1]} : vector<16x256xf32> to vector<16x128xf32>
    %106 = arith.negf %105 : vector<16x128xf32>
    %107 = math.exp %106 : vector<16x128xf32>
    %cst_83 = arith.constant 1.000000e+00 : f32
    %108 = vector.broadcast %cst_83 : f32 to vector<16x128xf32>
    %109 = arith.addf %108, %107 : vector<16x128xf32>
    %110 = arith.divf %108, %109 : vector<16x128xf32>
    %111 = arith.mulf %104, %110 : vector<16x128xf32>
    %c2_84 = arith.constant 2 : index
    %c0_85 = arith.constant 0 : index
    %c0_86 = arith.constant 0 : index
    %112 = vector.load %arg7[%c2_84, %c0_85, %c0_86] : memref<5x128x256xf32, #tpu.memory_space<vmem>>, vector<1x128x256xf32>
    %113 = vector.shape_cast %112 : vector<1x128x256xf32> to vector<128x256xf32>
    %cst_87 = arith.constant dense<0.000000e+00> : vector<16x256xf32>
    %114 = tpu.matmul %111, %113, %cst_87 {dimension_numbers = #tpu.dot_dimension_numbers<[1], [0], [0], [1], [0, 0, 1, 1], [], []>} : vector<16x128xf32>, vector<128x256xf32>, vector<16x256xf32> -> vector<16x256xf32>
    %c2_88 = arith.constant 2 : index
    %c0_89 = arith.constant 0 : index
    %c0_90 = arith.constant 0 : index
    %115 = vector.load %arg8[%c2_88, %c0_89, %c0_90] : memref<5x1x256xf32, #tpu.memory_space<vmem>>, vector<1x1x256xf32>
    %116 = vector.shape_cast %115 : vector<1x1x256xf32> to vector<1x256xf32>
    %117 = vector.broadcast %116 : vector<1x256xf32> to vector<16x256xf32>
    %118 = arith.addf %114, %117 : vector<16x256xf32>
    %119 = vector.extract_strided_slice %118 {offsets = [0, 0], sizes = [16, 128], strides = [1, 1]} : vector<16x256xf32> to vector<16x128xf32>
    %120 = arith.addf %119, %82 : vector<16x128xf32>
    %cst_91 = arith.constant 0.707106769 : f32
    %121 = vector.broadcast %cst_91 : f32 to vector<16x128xf32>
    %122 = arith.mulf %120, %121 : vector<16x128xf32>
    %123 = vector.extract_strided_slice %118 {offsets = [0, 128], sizes = [16, 128], strides = [1, 1]} : vector<16x256xf32> to vector<16x128xf32>
    %124 = arith.addf %86, %123 : vector<16x128xf32>
    %cst_92 = arith.constant 0.707106769 : f32
    %125 = vector.broadcast %cst_92 : f32 to vector<16x128xf32>
    %126 = arith.mulf %124, %125 : vector<16x128xf32>
    %c24_93 = arith.constant 24 : index
    %c0_94 = arith.constant 0 : index
    %127 = vector.load %arg15[%c24_93, %c0_94] : memref<72x128xf32, #tpu.memory_space<vmem>>, vector<16x128xf32>
    %c16_95 = arith.constant 16 : index
    %c0_96 = arith.constant 0 : index
    %128 = vector.load %arg14[%c16_95, %c0_96] : memref<48x128xf32, #tpu.memory_space<vmem>>, vector<16x128xf32>
    tpu.vector_store %arg14[%c16_95, %c0_96], %127 {strides = array<i32>} : memref<48x128xf32, #tpu.memory_space<vmem>>, vector<16x128xf32>,
    %c32_97 = arith.constant 32 : index
    %c0_98 = arith.constant 0 : index
    %129 = vector.load %arg14[%c32_97, %c0_98] : memref<48x128xf32, #tpu.memory_space<vmem>>, vector<16x128xf32>
    tpu.vector_store %arg14[%c32_97, %c0_98], %122 {strides = array<i32>} : memref<48x128xf32, #tpu.memory_space<vmem>>, vector<16x128xf32>,
    %c32_99 = arith.constant 32 : index
    %c0_100 = arith.constant 0 : index
    %130 = vector.load %arg14[%c32_99, %c0_100] : memref<48x128xf32, #tpu.memory_space<vmem>>, vector<16x128xf32>
    %c24_101 = arith.constant 24 : index
    %c0_102 = arith.constant 0 : index
    %131 = vector.load %arg15[%c24_101, %c0_102] : memref<72x128xf32, #tpu.memory_space<vmem>>, vector<16x128xf32>
    tpu.vector_store %arg15[%c24_101, %c0_102], %130 {strides = array<i32>} : memref<72x128xf32, #tpu.memory_space<vmem>>, vector<16x128xf32>,
    %c16_103 = arith.constant 16 : index
    %c0_104 = arith.constant 0 : index
    %132 = vector.load %arg14[%c16_103, %c0_104] : memref<48x128xf32, #tpu.memory_space<vmem>>, vector<16x128xf32>
    %c24_105 = arith.constant 24 : index
    %c0_106 = arith.constant 0 : index
    %133 = vector.load %arg14[%c24_105, %c0_106] : memref<48x128xf32, #tpu.memory_space<vmem>>, vector<16x128xf32>
    %c32_107 = arith.constant 32 : index
    %c0_108 = arith.constant 0 : index
    %134 = vector.load %arg14[%c32_107, %c0_108] : memref<48x128xf32, #tpu.memory_space<vmem>>, vector<16x128xf32>
    %135 = tpu.concatenate %132, %133, %134 in 1 : vector<16x128xf32>, vector<16x128xf32>, vector<16x128xf32> -> vector<16x384xf32>
    %c3 = arith.constant 3 : index
    %c0_109 = arith.constant 0 : index
    %c0_110 = arith.constant 0 : index
    %136 = vector.load %arg5[%c3, %c0_109, %c0_110] : memref<5x384x256xf32, #tpu.memory_space<vmem>>, vector<1x384x256xf32>
    %137 = vector.shape_cast %136 : vector<1x384x256xf32> to vector<384x256xf32>
    %cst_111 = arith.constant dense<0.000000e+00> : vector<16x256xf32>
    %138 = tpu.matmul %135, %137, %cst_111 {dimension_numbers = #tpu.dot_dimension_numbers<[1], [0], [0], [1], [0, 0, 1, 1], [], []>} : vector<16x384xf32>, vector<384x256xf32>, vector<16x256xf32> -> vector<16x256xf32>
    %c3_112 = arith.constant 3 : index
    %c0_113 = arith.constant 0 : index
    %c0_114 = arith.constant 0 : index
    %139 = vector.load %arg6[%c3_112, %c0_113, %c0_114] : memref<5x1x256xf32, #tpu.memory_space<vmem>>, vector<1x1x256xf32>
    %140 = vector.shape_cast %139 : vector<1x1x256xf32> to vector<1x256xf32>
    %141 = vector.broadcast %140 : vector<1x256xf32> to vector<16x256xf32>
    %142 = arith.addf %138, %141 : vector<16x256xf32>
    %143 = vector.extract_strided_slice %142 {offsets = [0, 0], sizes = [16, 128], strides = [1, 1]} : vector<16x256xf32> to vector<16x128xf32>
    %144 = math.tanh %143 : vector<16x128xf32>
    %145 = vector.extract_strided_slice %142 {offsets = [0, 128], sizes = [16, 128], strides = [1, 1]} : vector<16x256xf32> to vector<16x128xf32>
    %146 = arith.negf %145 : vector<16x128xf32>
    %147 = math.exp %146 : vector<16x128xf32>
    %cst_115 = arith.constant 1.000000e+00 : f32
    %148 = vector.broadcast %cst_115 : f32 to vector<16x128xf32>
    %149 = arith.addf %148, %147 : vector<16x128xf32>
    %150 = arith.divf %148, %149 : vector<16x128xf32>
    %151 = arith.mulf %144, %150 : vector<16x128xf32>
    %c3_116 = arith.constant 3 : index
    %c0_117 = arith.constant 0 : index
    %c0_118 = arith.constant 0 : index
    %152 = vector.load %arg7[%c3_116, %c0_117, %c0_118] : memref<5x128x256xf32, #tpu.memory_space<vmem>>, vector<1x128x256xf32>
    %153 = vector.shape_cast %152 : vector<1x128x256xf32> to vector<128x256xf32>
    %cst_119 = arith.constant dense<0.000000e+00> : vector<16x256xf32>
    %154 = tpu.matmul %151, %153, %cst_119 {dimension_numbers = #tpu.dot_dimension_numbers<[1], [0], [0], [1], [0, 0, 1, 1], [], []>} : vector<16x128xf32>, vector<128x256xf32>, vector<16x256xf32> -> vector<16x256xf32>
    %c3_120 = arith.constant 3 : index
    %c0_121 = arith.constant 0 : index
    %c0_122 = arith.constant 0 : index
    %155 = vector.load %arg8[%c3_120, %c0_121, %c0_122] : memref<5x1x256xf32, #tpu.memory_space<vmem>>, vector<1x1x256xf32>
    %156 = vector.shape_cast %155 : vector<1x1x256xf32> to vector<1x256xf32>
    %157 = vector.broadcast %156 : vector<1x256xf32> to vector<16x256xf32>
    %158 = arith.addf %154, %157 : vector<16x256xf32>
    %159 = vector.extract_strided_slice %158 {offsets = [0, 0], sizes = [16, 128], strides = [1, 1]} : vector<16x256xf32> to vector<16x128xf32>
    %160 = arith.addf %159, %122 : vector<16x128xf32>
    %cst_123 = arith.constant 0.707106769 : f32
    %161 = vector.broadcast %cst_123 : f32 to vector<16x128xf32>
    %162 = arith.mulf %160, %161 : vector<16x128xf32>
    %163 = vector.extract_strided_slice %158 {offsets = [0, 128], sizes = [16, 128], strides = [1, 1]} : vector<16x256xf32> to vector<16x128xf32>
    %164 = arith.addf %126, %163 : vector<16x128xf32>
    %cst_124 = arith.constant 0.707106769 : f32
    %165 = vector.broadcast %cst_124 : f32 to vector<16x128xf32>
    %166 = arith.mulf %164, %165 : vector<16x128xf32>
    %c40_125 = arith.constant 40 : index
    %c0_126 = arith.constant 0 : index
    %167 = vector.load %arg15[%c40_125, %c0_126] : memref<72x128xf32, #tpu.memory_space<vmem>>, vector<32x128xf32>
    %c0_127 = arith.constant 0 : index
    %c0_128 = arith.constant 0 : index
    %168 = vector.load %arg14[%c0_127, %c0_128] : memref<48x128xf32, #tpu.memory_space<vmem>>, vector<32x128xf32>
    tpu.vector_store %arg14[%c0_127, %c0_128], %167 {strides = array<i32>} : memref<48x128xf32, #tpu.memory_space<vmem>>, vector<32x128xf32>,
    %c32_129 = arith.constant 32 : index
    %c0_130 = arith.constant 0 : index
    %169 = vector.load %arg14[%c32_129, %c0_130] : memref<48x128xf32, #tpu.memory_space<vmem>>, vector<16x128xf32>
    tpu.vector_store %arg14[%c32_129, %c0_130], %162 {strides = array<i32>} : memref<48x128xf32, #tpu.memory_space<vmem>>, vector<16x128xf32>,
    %c16_131 = arith.constant 16 : index
    %c0_132 = arith.constant 0 : index
    %170 = vector.load %arg14[%c16_131, %c0_132] : memref<48x128xf32, #tpu.memory_space<vmem>>, vector<32x128xf32>
    %c40_133 = arith.constant 40 : index
    %c0_134 = arith.constant 0 : index
    %171 = vector.load %arg15[%c40_133, %c0_134] : memref<72x128xf32, #tpu.memory_space<vmem>>, vector<32x128xf32>
    tpu.vector_store %arg15[%c40_133, %c0_134], %170 {strides = array<i32>} : memref<72x128xf32, #tpu.memory_space<vmem>>, vector<32x128xf32>,
    %c0_135 = arith.constant 0 : index
    %c0_136 = arith.constant 0 : index
    %172 = vector.load %arg14[%c0_135, %c0_136] : memref<48x128xf32, #tpu.memory_space<vmem>>, vector<16x128xf32>
    %c16_137 = arith.constant 16 : index
    %c0_138 = arith.constant 0 : index
    %173 = vector.load %arg14[%c16_137, %c0_138] : memref<48x128xf32, #tpu.memory_space<vmem>>, vector<16x128xf32>
    %c32_139 = arith.constant 32 : index
    %c0_140 = arith.constant 0 : index
    %174 = vector.load %arg14[%c32_139, %c0_140] : memref<48x128xf32, #tpu.memory_space<vmem>>, vector<16x128xf32>
    %175 = tpu.concatenate %172, %173, %174 in 1 : vector<16x128xf32>, vector<16x128xf32>, vector<16x128xf32> -> vector<16x384xf32>
    %c4 = arith.constant 4 : index
    %c0_141 = arith.constant 0 : index
    %c0_142 = arith.constant 0 : index
    %176 = vector.load %arg5[%c4, %c0_141, %c0_142] : memref<5x384x256xf32, #tpu.memory_space<vmem>>, vector<1x384x256xf32>
    %177 = vector.shape_cast %176 : vector<1x384x256xf32> to vector<384x256xf32>
    %cst_143 = arith.constant dense<0.000000e+00> : vector<16x256xf32>
    %178 = tpu.matmul %175, %177, %cst_143 {dimension_numbers = #tpu.dot_dimension_numbers<[1], [0], [0], [1], [0, 0, 1, 1], [], []>} : vector<16x384xf32>, vector<384x256xf32>, vector<16x256xf32> -> vector<16x256xf32>
    %c4_144 = arith.constant 4 : index
    %c0_145 = arith.constant 0 : index
    %c0_146 = arith.constant 0 : index
    %179 = vector.load %arg6[%c4_144, %c0_145, %c0_146] : memref<5x1x256xf32, #tpu.memory_space<vmem>>, vector<1x1x256xf32>
    %180 = vector.shape_cast %179 : vector<1x1x256xf32> to vector<1x256xf32>
    %181 = vector.broadcast %180 : vector<1x256xf32> to vector<16x256xf32>
    %182 = arith.addf %178, %181 : vector<16x256xf32>
    %183 = vector.extract_strided_slice %182 {offsets = [0, 0], sizes = [16, 128], strides = [1, 1]} : vector<16x256xf32> to vector<16x128xf32>
    %184 = math.tanh %183 : vector<16x128xf32>
    %185 = vector.extract_strided_slice %182 {offsets = [0, 128], sizes = [16, 128], strides = [1, 1]} : vector<16x256xf32> to vector<16x128xf32>
    %186 = arith.negf %185 : vector<16x128xf32>
    %187 = math.exp %186 : vector<16x128xf32>
    %cst_147 = arith.constant 1.000000e+00 : f32
    %188 = vector.broadcast %cst_147 : f32 to vector<16x128xf32>
    %189 = arith.addf %188, %187 : vector<16x128xf32>
    %190 = arith.divf %188, %189 : vector<16x128xf32>
    %191 = arith.mulf %184, %190 : vector<16x128xf32>
    %c4_148 = arith.constant 4 : index
    %c0_149 = arith.constant 0 : index
    %c0_150 = arith.constant 0 : index
    %192 = vector.load %arg7[%c4_148, %c0_149, %c0_150] : memref<5x128x256xf32, #tpu.memory_space<vmem>>, vector<1x128x256xf32>
    %193 = vector.shape_cast %192 : vector<1x128x256xf32> to vector<128x256xf32>
    %cst_151 = arith.constant dense<0.000000e+00> : vector<16x256xf32>
    %194 = tpu.matmul %191, %193, %cst_151 {dimension_numbers = #tpu.dot_dimension_numbers<[1], [0], [0], [1], [0, 0, 1, 1], [], []>} : vector<16x128xf32>, vector<128x256xf32>, vector<16x256xf32> -> vector<16x256xf32>
    %c4_152 = arith.constant 4 : index
    %c0_153 = arith.constant 0 : index
    %c0_154 = arith.constant 0 : index
    %195 = vector.load %arg8[%c4_152, %c0_153, %c0_154] : memref<5x1x256xf32, #tpu.memory_space<vmem>>, vector<1x1x256xf32>
    %196 = vector.shape_cast %195 : vector<1x1x256xf32> to vector<1x256xf32>
    %197 = vector.broadcast %196 : vector<1x256xf32> to vector<16x256xf32>
    %198 = arith.addf %194, %197 : vector<16x256xf32>
    %199 = vector.extract_strided_slice %198 {offsets = [0, 128], sizes = [16, 128], strides = [1, 1]} : vector<16x256xf32> to vector<16x128xf32>
    %200 = arith.addf %166, %199 : vector<16x128xf32>
    %cst_155 = arith.constant 0.707106769 : f32
    %201 = vector.broadcast %cst_155 : f32 to vector<16x128xf32>
    %202 = arith.mulf %200, %201 : vector<16x128xf32>
    %cst_156 = arith.constant 0.000000e+00 : f32
    %203 = vector.broadcast %cst_156 : f32 to vector<16x128xf32>
    %204 = arith.maximumf %202, %203 : vector<16x128xf32>
    %c0_157 = arith.constant 0 : index
    %c0_158 = arith.constant 0 : index
    %205 = vector.load %arg9[%c0_157, %c0_158] : memref<128x128xf32, #tpu.memory_space<vmem>>, vector<128x128xf32>
    %cst_159 = arith.constant dense<0.000000e+00> : vector<16x128xf32>
    %206 = tpu.matmul %204, %205, %cst_159 {dimension_numbers = #tpu.dot_dimension_numbers<[1], [0], [0], [1], [0, 0, 1, 1], [], []>} : vector<16x128xf32>, vector<128x128xf32>, vector<16x128xf32> -> vector<16x128xf32>
    %c0_160 = arith.constant 0 : index
    %c0_161 = arith.constant 0 : index
    %207 = vector.load %arg10[%c0_160, %c0_161] : memref<1x128xf32, #tpu.memory_space<vmem>>, vector<1x128xf32>
    %208 = vector.broadcast %207 : vector<1x128xf32> to vector<16x128xf32>
    %209 = arith.addf %206, %208 : vector<16x128xf32>
    %cst_162 = arith.constant 0.000000e+00 : f32
    %210 = vector.broadcast %cst_162 : f32 to vector<16x128xf32>
    %211 = arith.maximumf %209, %210 : vector<16x128xf32>
    %c0_163 = arith.constant 0 : index
    %c0_164 = arith.constant 0 : index
    %212 = vector.load %arg11[%c0_163, %c0_164] : memref<128x128xf32, #tpu.memory_space<vmem>>, vector<128x128xf32>
    %cst_165 = arith.constant dense<0.000000e+00> : vector<16x128xf32>
    %213 = tpu.matmul %211, %212, %cst_165 {dimension_numbers = #tpu.dot_dimension_numbers<[1], [0], [0], [1], [0, 0, 1, 1], [], []>} : vector<16x128xf32>, vector<128x128xf32>, vector<16x128xf32> -> vector<16x128xf32>
    %c0_166 = arith.constant 0 : index
    %c0_167 = arith.constant 0 : index
    %214 = vector.load %arg12[%c0_166, %c0_167] : memref<1x128xf32, #tpu.memory_space<vmem>>, vector<1x128xf32>
    %215 = vector.broadcast %214 : vector<1x128xf32> to vector<16x128xf32>
    %216 = arith.addf %213, %215 : vector<16x128xf32>
    %c0_168 = arith.constant 0 : index
    %c0_169 = arith.constant 0 : index
    %c0_170 = arith.constant 0 : index
    %217 = vector.load %arg13[%c0_168, %c0_169, %c0_170] : memref<1x16x128xf32, #tpu.memory_space<vmem>>, vector<1x16x128xf32>
    %218 = vector.shape_cast %217 : vector<1x16x128xf32> to vector<16x128xf32>
    %219 = vector.shape_cast %216 : vector<16x128xf32> to vector<1x16x128xf32>
    tpu.vector_store %arg13[%c0_168, %c0_169, %c0_170], %219 {strides = array<i32>} : memref<1x16x128xf32, #tpu.memory_space<vmem>>, vector<1x16x128xf32>,
    return
  }
  func.func @transform_0(%arg0: i32, %arg1: i32) -> (i32, i32, i32) {
    %c0_i32 = arith.constant 0 : i32
    %c0_i32_0 = arith.constant 0 : i32
    return %arg0, %arg1, %c0_i32 : i32, i32, i32
  }
  func.func @transform_1(%arg0: i32, %arg1: i32) -> (i32, i32) {
    %c0_i32 = arith.constant 0 : i32
    %c0_i32_0 = arith.constant 0 : i32
    %c0_i32_1 = arith.constant 0 : i32
    return %c0_i32, %c0_i32_0 : i32, i32
  }
  func.func @transform_2(%arg0: i32, %arg1: i32) -> (i32, i32) {
    %c0_i32 = arith.constant 0 : i32
    %c0_i32_0 = arith.constant 0 : i32
    %c0_i32_1 = arith.constant 0 : i32
    return %c0_i32, %c0_i32_0 : i32, i32
  }
  func.func @transform_3(%arg0: i32, %arg1: i32) -> (i32, i32, i32) {
    %c0_i32 = arith.constant 0 : i32
    %c0_i32_0 = arith.constant 0 : i32
    %c0_i32_1 = arith.constant 0 : i32
    %c0_i32_2 = arith.constant 0 : i32
    return %c0_i32, %c0_i32_0, %c0_i32_1 : i32, i32, i32
  }
  func.func @transform_4(%arg0: i32, %arg1: i32) -> (i32, i32, i32) {
    %c0_i32 = arith.constant 0 : i32
    %c0_i32_0 = arith.constant 0 : i32
    %c0_i32_1 = arith.constant 0 : i32
    %c0_i32_2 = arith.constant 0 : i32
    return %c0_i32, %c0_i32_0, %c0_i32_1 : i32, i32, i32
  }
  func.func @transform_5(%arg0: i32, %arg1: i32) -> (i32, i32, i32) {
    %c0_i32 = arith.constant 0 : i32
    %c0_i32_0 = arith.constant 0 : i32
    %c0_i32_1 = arith.constant 0 : i32
    %c0_i32_2 = arith.constant 0 : i32
    return %c0_i32, %c0_i32_0, %c0_i32_1 : i32, i32, i32
  }
  func.func @transform_6(%arg0: i32, %arg1: i32) -> (i32, i32, i32) {
    %c0_i32 = arith.constant 0 : i32
    %c0_i32_0 = arith.constant 0 : i32
    %c0_i32_1 = arith.constant 0 : i32
    %c0_i32_2 = arith.constant 0 : i32
    return %c0_i32, %c0_i32_0, %c0_i32_1 : i32, i32, i32
  }
  func.func @transform_7(%arg0: i32, %arg1: i32) -> (i32, i32) {
    %c0_i32 = arith.constant 0 : i32
    %c0_i32_0 = arith.constant 0 : i32
    %c0_i32_1 = arith.constant 0 : i32
    return %c0_i32, %c0_i32_0 : i32, i32
  }
  func.func @transform_8(%arg0: i32, %arg1: i32) -> (i32, i32) {
    %c0_i32 = arith.constant 0 : i32
    %c0_i32_0 = arith.constant 0 : i32
    %c0_i32_1 = arith.constant 0 : i32
    return %c0_i32, %c0_i32_0 : i32, i32
  }
  func.func @transform_9(%arg0: i32, %arg1: i32) -> (i32, i32) {
    %c0_i32 = arith.constant 0 : i32
    %c0_i32_0 = arith.constant 0 : i32
    %c0_i32_1 = arith.constant 0 : i32
    return %c0_i32, %c0_i32_0 : i32, i32
  }
  func.func @transform_10(%arg0: i32, %arg1: i32) -> (i32, i32) {
    %c0_i32 = arith.constant 0 : i32
    %c0_i32_0 = arith.constant 0 : i32
    %c0_i32_1 = arith.constant 0 : i32
    return %c0_i32, %c0_i32_0 : i32, i32
  }
  func.func @transform_11(%arg0: i32, %arg1: i32) -> (i32, i32, i32) {
    %c0_i32 = arith.constant 0 : i32
    %c0_i32_0 = arith.constant 0 : i32
    return %arg0, %arg1, %c0_i32 : i32, i32, i32
  }
}

</mosaic_0001>

<llo_original>
// kernel: tpu_custom_call.1
$region0: #{tpu_custom_call.1}
  #allocation0 [shape = 'u32[]', space=smem, size = 0x4, offset = 0x4, fixed_abs, tag = 'smem constant byte address 0x4 - core index']
  #allocation1 [shape = 'u32[72,128]{1,0:T(1,128)}', space=vmem, size = 0x9000, scoped, tag = 'internal scratch']
  #allocation2 [shape = 'f32[48,128]{1,0:T(8,128)}', space=vmem, size = 0x6000, scoped, tag = 'scratch operand']
  #allocation3 [shape = 'f32[72,128]{1,0:T(8,128)}', space=vmem, size = 0x9000, scoped, tag = 'scratch operand']
  %s0 = inlined_call_operand.hbm [shape: f32[2,80,128], index: 0, kind: input, shape index: {}]
  %s1 = inlined_call_operand.hbm [shape: f32[128,128], index: 1, kind: input, shape index: {}]
  %s2 = inlined_call_operand.hbm [shape: f32[1,128], index: 2, kind: input, shape index: {}]
  %s3 = inlined_call_operand.hbm [shape: f32[5,384,256], index: 3, kind: input, shape index: {}]
  %s4 = inlined_call_operand.hbm [shape: f32[5,1,256], index: 4, kind: input, shape index: {}]
  %s5 = inlined_call_operand.hbm [shape: f32[5,128,256], index: 5, kind: input, shape index: {}]
  %s6 = inlined_call_operand.hbm [shape: f32[5,1,256], index: 6, kind: input, shape index: {}]
  %s7 = inlined_call_operand.hbm [shape: f32[128,128], index: 7, kind: input, shape index: {}]
  %s8 = inlined_call_operand.hbm [shape: f32[1,128], index: 8, kind: input, shape index: {}]
  %s9 = inlined_call_operand.hbm [shape: f32[128,128], index: 9, kind: input, shape index: {}]
  %s10 = inlined_call_operand.hbm [shape: f32[1,128], index: 10, kind: input, shape index: {}]
  %s11 = inlined_call_operand.hbm [shape: f32[2,80,128], index: 11, kind: output, shape index: {}]
  %s12 = sld [smem:[#allocation0]]
  $region125: #{tpu_custom_call.1} parent=0
    _
  %s14 = ssub.s32 1, %s12
  %s15 = scalar_select 0, %s14, %s12
  $region1: #{tpu_custom_call.1} parent=0
    #allocation4 [shape = 'u8[16384]{0}', space=vmem, size = 0x4000, scoped, tag = 'input window, operand 0']
    #allocation5 [shape = 's32[2]{0}', space=sflag, size = 0x8, scoped, tag = 'scoped memory for tpu_custom_call.1']
    #allocation6 [shape = 's32[2]{0}', space=sflag, size = 0x8, scoped, tag = 'scoped memory for tpu_custom_call.1']
    #allocation7 [shape = 'u8[65536]{0}', space=vmem, size = 0x10000, scoped, tag = 'input window, operand 1, single buffered']
    #allocation8 [shape = 's32[1]{0}', space=sflag, size = 0x4, scoped, tag = 'scoped memory for tpu_custom_call.1']
    #allocation9 [shape = 'u8[512]{0}', space=vmem, size = 0x400, scoped, tag = 'input window, operand 2, single buffered']
    #allocation10 [shape = 'u8[1966080]{0}', space=vmem, size = 0x1e0000, scoped, tag = 'input window, operand 3, single buffered']
    #allocation11 [shape = 's32[1]{0}', space=sflag, size = 0x4, scoped, tag = 'scoped memory for tpu_custom_call.1']
    #allocation12 [shape = 'u8[5120]{0}', space=vmem, size = 0x1400, scoped, tag = 'input window, operand 4, single buffered']
    #allocation13 [shape = 'u8[655360]{0}', space=vmem, size = 0xa0000, scoped, tag = 'input window, operand 5, single buffered']
    #allocation14 [shape = 's32[1]{0}', space=sflag, size = 0x4, scoped, tag = 'scoped memory for tpu_custom_call.1']
    #allocation15 [shape = 'u8[5120]{0}', space=vmem, size = 0x1400, scoped, tag = 'input window, operand 6, single buffered']
    #allocation16 [shape = 'u8[65536]{0}', space=vmem, size = 0x10000, scoped, tag = 'input window, operand 7, single buffered']
    #allocation17 [shape = 's32[1]{0}', space=sflag, size = 0x4, scoped, tag = 'scoped memory for tpu_custom_call.1']
    #allocation18 [shape = 'u8[512]{0}', space=vmem, size = 0x400, scoped, tag = 'input window, operand 8, single buffered']
    #allocation19 [shape = 'u8[65536]{0}', space=vmem, size = 0x10000, scoped, tag = 'input window, operand 9, single buffered']
    #allocation20 [shape = 's32[1]{0}', space=sflag, size = 0x4, scoped, tag = 'scoped memory for tpu_custom_call.1']
    #allocation21 [shape = 'u8[512]{0}', space=vmem, size = 0x400, scoped, tag = 'input window, operand 10, single buffered']
    #allocation22 [shape = 'u8[16384]{0}', space=vmem, size = 0x4000, scoped, tag = 'output window, operand 0']
    %16 = vsyncpa [#allocation5], 0
    %s17 = scalar_lea.sflag [#allocation5], 1
    %18 = vsyncpa %s17, 0
    %19 = vsyncpa [#allocation8], 0
    %20 = vsyncpa [#allocation11], 0
    %21 = vsyncpa [#allocation14], 0
    %22 = vsyncpa [#allocation17], 0
    %23 = vsyncpa [#allocation20], 0
    %24 = vsyncpa [#allocation6], 0
    %s25 = scalar_lea.sflag [#allocation6], 1
    %26 = vsyncpa %s25, 0
    loop: start=0, step=1, limit=12
    $region2: #{tpu_custom_call.1} parent=1 // loop_pre_header
      _
    $region3: #{tpu_custom_call.1} parent=1 // loop_header
      %s28 = sphi 0, %s32
      %p29 = scmp.ge.s32.totalorder %s28, 12
      %s35 = sphi 0, %s47
      %s36 = sphi 0, %s43
      %s37 = sphi 0, %s35
      %s38 = sphi 0, %s36
      %s39 = sphi 0, %s37
      %s40 = sphi 0, %s38
      %s52 = sphi 0, %s54
      %s55 = sphi 0, %s52
      %s56 = sphi 0, %s55
      %s72 = sphi 0, %s56
      %s76 = sphi 0, %s76
      %s78 = sphi 0, %s76
      %s79 = sphi 0, %s78
      %s93 = sphi 0, %s79
      %s97 = sphi 0, %s97
      %s99 = sphi 0, %s97
      %s100 = sphi 0, %s99
      %s114 = sphi 0, %s100
      %s118 = sphi 0, %s118
      %s120 = sphi 0, %s118
      %s121 = sphi 0, %s120
      %s135 = sphi 0, %s121
      %s139 = sphi 0, %s139
      %s141 = sphi 0, %s139
      %s142 = sphi 0, %s141
      %s156 = sphi 0, %s142
      %s160 = sphi 0, %s160
      %s162 = sphi 0, %s160
      %s163 = sphi 0, %s162
      %s177 = sphi 0, %s163
      %s181 = sphi 0, %s181
      %s183 = sphi 0, %s181
      %s184 = sphi 0, %s183
      %s198 = sphi 0, %s184
      %s202 = sphi 0, %s202
      %s204 = sphi 0, %s202
      %s205 = sphi 0, %s204
      %s219 = sphi 0, %s205
      %s223 = sphi 0, %s223
      %s225 = sphi 0, %s223
      %s226 = sphi 0, %s225
      %s240 = sphi 0, %s226
      %s244 = sphi 0, %s244
      %s246 = sphi 0, %s244
      %s247 = sphi 0, %s246
      %s261 = sphi 0, %s247
      %s265 = sphi 0, %s265
      %s267 = sphi 0, %s265
      %s268 = sphi 0, %s267
      %s282 = sphi 0, %s268
      %s290 = sphi 0, %s292
      %s293 = sphi 0, %s290
      %s294 = sphi 0, %s293
      %s310 = sphi 0, %s294
    $region4: #{tpu_custom_call.1} parent=1 // loop_header_branch
      %31 = sbr.rel (%p29) target = $region8
    $region5: #{tpu_custom_call.1} parent=1 // loop_body
      %s33 = ssub.s32 %s28, 1
      %s34 = ssub.s32 %s28, 2
      %s41 = sadd.s32 1, %s36
      %p42 = scmp.ge.s32.totalorder %s41, 5
      %s43 = scalar_select %p42, 0, %s41
      %s44 = sadd.s32 1, %s35
      %s45 = scalar_select %p42, %s44, %s35
      %p46 = scmp.ge.s32.totalorder %s45, 2
      %s47 = scalar_select %p46, 0, %s45
      %s48 = ssub.s32 %s35, %s47
      %s49 = ssub.s32 %s36, %s43
      %s50 = sor.u32 %s48, %s49
      %p51 = scmp.eq.s32.totalorder %s50, 0
      %s53 = sadd.s32 %s52, 1
      %s54 = scalar_select %p51, %s52, %s53
      %p57 = pneg %p51
      %p58 = scmp.eq.s32.totalorder %s28, 9
      %p59 = por %p57, %p58
      %p60 = scmp.ne.s32.totalorder %s52, %s55
      %p61 = scmp.eq.s32.totalorder %s28, 0
      %p62 = por %p60, %p61
      %p63 = scmp.ne.s32.totalorder %s52, %s55
      %p64 = scmp.eq.s32.totalorder %s33, 9
      %p65 = por %p63, %p64
      %p66 = scmp.ne.s32.totalorder %s55, %s56
      %p67 = scmp.eq.s32.totalorder %s33, 0
      %p68 = por %p66, %p67
      %p69 = scmp.ne.s32.totalorder %s55, %s56
      %p70 = scmp.eq.s32.totalorder %s34, 9
      %p71 = por %p69, %p70
      %p73 = scmp.ne.s32.totalorder %s56, %s72
      %p74 = scmp.eq.s32.totalorder %s34, 0
      %p75 = por %p73, %p74
      %s77 = sadd.s32 %s76, 1
      %p80 = scmp.eq.s32.totalorder %s28, 9
      %p81 = scmp.ne.s32.totalorder %s76, %s78
      %p82 = scmp.eq.s32.totalorder %s28, 0
      %p83 = por %p81, %p82
      %p84 = scmp.ne.s32.totalorder %s76, %s78
      %p85 = scmp.eq.s32.totalorder %s33, 9
      %p86 = por %p84, %p85
      %p87 = scmp.ne.s32.totalorder %s78, %s79
      %p88 = scmp.eq.s32.totalorder %s33, 0
      %p89 = por %p87, %p88
      %p90 = scmp.ne.s32.totalorder %s78, %s79
      %p91 = scmp.eq.s32.totalorder %s34, 9
      %p92 = por %p90, %p91
      %p94 = scmp.ne.s32.totalorder %s79, %s93
      %p95 = scmp.eq.s32.totalorder %s34, 0
      %p96 = por %p94, %p95
      %s98 = sadd.s32 %s97, 1
      %p101 = scmp.eq.s32.totalorder %s28, 9
      %p102 = scmp.ne.s32.totalorder %s97, %s99
      %p103 = scmp.eq.s32.totalorder %s28, 0
      %p104 = por %p102, %p103
      %p105 = scmp.ne.s32.totalorder %s97, %s99
      %p106 = scmp.eq.s32.totalorder %s33, 9
      %p107 = por %p105, %p106
      %p108 = scmp.ne.s32.totalorder %s99, %s100
      %p109 = scmp.eq.s32.totalorder %s33, 0
      %p110 = por %p108, %p109
      %p111 = scmp.ne.s32.totalorder %s99, %s100
      %p112 = scmp.eq.s32.totalorder %s34, 9
      %p113 = por %p111, %p112
      %p115 = scmp.ne.s32.totalorder %s100, %s114
      %p116 = scmp.eq.s32.totalorder %s34, 0
      %p117 = por %p115, %p116
      %s119 = sadd.s32 %s118, 1
      %p122 = scmp.eq.s32.totalorder %s28, 9
      %p123 = scmp.ne.s32.totalorder %s118, %s120
      %p124 = scmp.eq.s32.totalorder %s28, 0
      %p125 = por %p123, %p124
      %p126 = scmp.ne.s32.totalorder %s118, %s120
      %p127 = scmp.eq.s32.totalorder %s33, 9
      %p128 = por %p126, %p127
      %p129 = scmp.ne.s32.totalorder %s120, %s121
      %p130 = scmp.eq.s32.totalorder %s33, 0
      %p131 = por %p129, %p130
      %p132 = scmp.ne.s32.totalorder %s120, %s121
      %p133 = scmp.eq.s32.totalorder %s34, 9
      %p134 = por %p132, %p133
      %p136 = scmp.ne.s32.totalorder %s121, %s135
      %p137 = scmp.eq.s32.totalorder %s34, 0
      %p138 = por %p136, %p137
      %s140 = sadd.s32 %s139, 1
      %p143 = scmp.eq.s32.totalorder %s28, 9
      %p144 = scmp.ne.s32.totalorder %s139, %s141
      %p145 = scmp.eq.s32.totalorder %s28, 0
      %p146 = por %p144, %p145
      %p147 = scmp.ne.s32.totalorder %s139, %s141
      %p148 = scmp.eq.s32.totalorder %s33, 9
      %p149 = por %p147, %p148
      %p150 = scmp.ne.s32.totalorder %s141, %s142
      %p151 = scmp.eq.s32.totalorder %s33, 0
      %p152 = por %p150, %p151
      %p153 = scmp.ne.s32.totalorder %s141, %s142
      %p154 = scmp.eq.s32.totalorder %s34, 9
      %p155 = por %p153, %p154
      %p157 = scmp.ne.s32.totalorder %s142, %s156
      %p158 = scmp.eq.s32.totalorder %s34, 0
      %p159 = por %p157, %p158
      %s161 = sadd.s32 %s160, 1
      %p164 = scmp.eq.s32.totalorder %s28, 9
      %p165 = scmp.ne.s32.totalorder %s160, %s162
      %p166 = scmp.eq.s32.totalorder %s28, 0
      %p167 = por %p165, %p166
      %p168 = scmp.ne.s32.totalorder %s160, %s162
      %p169 = scmp.eq.s32.totalorder %s33, 9
      %p170 = por %p168, %p169
      %p171 = scmp.ne.s32.totalorder %s162, %s163
      %p172 = scmp.eq.s32.totalorder %s33, 0
      %p173 = por %p171, %p172
      %p174 = scmp.ne.s32.totalorder %s162, %s163
      %p175 = scmp.eq.s32.totalorder %s34, 9
      %p176 = por %p174, %p175
      %p178 = scmp.ne.s32.totalorder %s163, %s177
      %p179 = scmp.eq.s32.totalorder %s34, 0
      %p180 = por %p178, %p179
      %s182 = sadd.s32 %s181, 1
      %p185 = scmp.eq.s32.totalorder %s28, 9
      %p186 = scmp.ne.s32.totalorder %s181, %s183
      %p187 = scmp.eq.s32.totalorder %s28, 0
      %p188 = por %p186, %p187
      %p189 = scmp.ne.s32.totalorder %s181, %s183
      %p190 = scmp.eq.s32.totalorder %s33, 9
      %p191 = por %p189, %p190
      %p192 = scmp.ne.s32.totalorder %s183, %s184
      %p193 = scmp.eq.s32.totalorder %s33, 0
      %p194 = por %p192, %p193
      %p195 = scmp.ne.s32.totalorder %s183, %s184
      %p196 = scmp.eq.s32.totalorder %s34, 9
      %p197 = por %p195, %p196
      %p199 = scmp.ne.s32.totalorder %s184, %s198
      %p200 = scmp.eq.s32.totalorder %s34, 0
      %p201 = por %p199, %p200
      %s203 = sadd.s32 %s202, 1
      %p206 = scmp.eq.s32.totalorder %s28, 9
      %p207 = scmp.ne.s32.totalorder %s202, %s204
      %p208 = scmp.eq.s32.totalorder %s28, 0
      %p209 = por %p207, %p208
      %p210 = scmp.ne.s32.totalorder %s202, %s204
      %p211 = scmp.eq.s32.totalorder %s33, 9
      %p212 = por %p210, %p211
      %p213 = scmp.ne.s32.totalorder %s204, %s205
      %p214 = scmp.eq.s32.totalorder %s33, 0
      %p215 = por %p213, %p214
      %p216 = scmp.ne.s32.totalorder %s204, %s205
      %p217 = scmp.eq.s32.totalorder %s34, 9
      %p218 = por %p216, %p217
      %p220 = scmp.ne.s32.totalorder %s205, %s219
      %p221 = scmp.eq.s32.totalorder %s34, 0
      %p222 = por %p220, %p221
      %s224 = sadd.s32 %s223, 1
      %p227 = scmp.eq.s32.totalorder %s28, 9
      %p228 = scmp.ne.s32.totalorder %s223, %s225
      %p229 = scmp.eq.s32.totalorder %s28, 0
      %p230 = por %p228, %p229
      %p231 = scmp.ne.s32.totalorder %s223, %s225
      %p232 = scmp.eq.s32.totalorder %s33, 9
      %p233 = por %p231, %p232
      %p234 = scmp.ne.s32.totalorder %s225, %s226
      %p235 = scmp.eq.s32.totalorder %s33, 0
      %p236 = por %p234, %p235
      %p237 = scmp.ne.s32.totalorder %s225, %s226
      %p238 = scmp.eq.s32.totalorder %s34, 9
      %p239 = por %p237, %p238
      %p241 = scmp.ne.s32.totalorder %s226, %s240
      %p242 = scmp.eq.s32.totalorder %s34, 0
      %p243 = por %p241, %p242
      %s245 = sadd.s32 %s244, 1
      %p248 = scmp.eq.s32.totalorder %s28, 9
      %p249 = scmp.ne.s32.totalorder %s244, %s246
      %p250 = scmp.eq.s32.totalorder %s28, 0
      %p251 = por %p249, %p250
      %p252 = scmp.ne.s32.totalorder %s244, %s246
      %p253 = scmp.eq.s32.totalorder %s33, 9
      %p254 = por %p252, %p253
      %p255 = scmp.ne.s32.totalorder %s246, %s247
      %p256 = scmp.eq.s32.totalorder %s33, 0
      %p257 = por %p255, %p256
      %p258 = scmp.ne.s32.totalorder %s246, %s247
      %p259 = scmp.eq.s32.totalorder %s34, 9
      %p260 = por %p258, %p259
      %p262 = scmp.ne.s32.totalorder %s247, %s261
      %p263 = scmp.eq.s32.totalorder %s34, 0
      %p264 = por %p262, %p263
      %s266 = sadd.s32 %s265, 1
      %p269 = scmp.eq.s32.totalorder %s28, 9
      %p270 = scmp.ne.s32.totalorder %s265, %s267
      %p271 = scmp.eq.s32.totalorder %s28, 0
      %p272 = por %p270, %p271
      %p273 = scmp.ne.s32.totalorder %s265, %s267
      %p274 = scmp.eq.s32.totalorder %s33, 9
      %p275 = por %p273, %p274
      %p276 = scmp.ne.s32.totalorder %s267, %s268
      %p277 = scmp.eq.s32.totalorder %s33, 0
      %p278 = por %p276, %p277
      %p279 = scmp.ne.s32.totalorder %s267, %s268
      %p280 = scmp.eq.s32.totalorder %s34, 9
      %p281 = por %p279, %p280
      %p283 = scmp.ne.s32.totalorder %s268, %s282
      %p284 = scmp.eq.s32.totalorder %s34, 0
      %p285 = por %p283, %p284
      %s286 = ssub.s32 %s35, %s47
      %s287 = ssub.s32 %s36, %s43
      %s288 = sor.u32 %s286, %s287
      %p289 = scmp.eq.s32.totalorder %s288, 0
      %s291 = sadd.s32 %s290, 1
      %s292 = scalar_select %p289, %s290, %s291
      %p295 = pneg %p289
      %p296 = scmp.eq.s32.totalorder %s28, 9
      %p297 = por %p295, %p296
      %p298 = scmp.ne.s32.totalorder %s290, %s293
      %p299 = scmp.eq.s32.totalorder %s28, 0
      %p300 = por %p298, %p299
      %p301 = scmp.ne.s32.totalorder %s290, %s293
      %p302 = scmp.eq.s32.totalorder %s33, 9
      %p303 = por %p301, %p302
      %p304 = scmp.ne.s32.totalorder %s293, %s294
      %p305 = scmp.eq.s32.totalorder %s33, 0
      %p306 = por %p304, %p305
      %p307 = scmp.ne.s32.totalorder %s293, %s294
      %p308 = scmp.eq.s32.totalorder %s34, 9
      %p309 = por %p307, %p308
      %p311 = scmp.ne.s32.totalorder %s294, %s310
      %p312 = scmp.eq.s32.totalorder %s34, 0
      %p313 = por %p311, %p312
      %p314 = scmp.le.s32.totalorder 1, %s28
      %p315 = scmp.lt.s32.totalorder %s28, 11
      %p316 = pnand %p314, %p315
      %p317 = pneg %p316
      // Predicated region
      $region9: #{tpu_custom_call.1} parent=5 // pred_check
        _
      $region10: #{tpu_custom_call.1} parent=5 // pred_check_branch
        %319 = sbr.rel (%p316) target = $region12
      $region11: #{tpu_custom_call.1} parent=5 // pred_region
        %s320 = ssub.s32 %s28, 1
        // Predicated region
        $region13: #{tpu_custom_call.1} parent=11 // pred_check
          %p321 = pneg %p89
        $region14: #{tpu_custom_call.1} parent=11 // pred_check_branch
          %323 = sbr.rel (%p321) target = $region16
        $region15: #{tpu_custom_call.1} parent=11 // pred_region
          %325 = vsyncadd [#allocation8], 0
          %s326 = sshll.u32 %s1, 4
          %s327 = int_to_ptr.hbm [resolvable:$true] %s326
          %s328 = sshll.u32 [#allocation7], 4
          %s329 = int_to_ptr.vmem [resolvable:$true] %s328
          %334 = dma.hbm_to_vmem [thread:$0]  %s327, 2048, %s329, [#allocation8], 128, 128, 8
        $region16: #{tpu_custom_call.1} parent=11 // pred_fallthru
          _
        // Predicated region
        $region17: #{tpu_custom_call.1} parent=11 // pred_check
          %p335 = pneg %p110
        $region18: #{tpu_custom_call.1} parent=11 // pred_check_branch
          %337 = sbr.rel (%p335) target = $region20
        $region19: #{tpu_custom_call.1} parent=11 // pred_region
          %339 = vsyncadd [#allocation8], 0
          %s341 = sshll.u32 %s2, 4
          %s342 = int_to_ptr.hbm [resolvable:$true] %s341
          %s343 = sshll.u32 [#allocation9], 4
          %s344 = int_to_ptr.vmem [resolvable:$true] %s343
          %346 = dma.hbm_to_vmem [thread:$0]  %s342, 16, %s344, [#allocation8]
        $region20: #{tpu_custom_call.1} parent=11 // pred_fallthru
          _
        // Predicated region
        $region21: #{tpu_custom_call.1} parent=11 // pred_check
          %p347 = pneg %p131
        $region22: #{tpu_custom_call.1} parent=11 // pred_check_branch
          %349 = sbr.rel (%p347) target = $region24
        $region23: #{tpu_custom_call.1} parent=11 // pred_region
          %351 = vsyncadd [#allocation11], 0
          %s352 = sshll.u32 %s3, 4
          %s353 = int_to_ptr.hbm [resolvable:$true] %s352
          %s354 = sshll.u32 [#allocation10], 4
          %s355 = int_to_ptr.vmem [resolvable:$true] %s354
          %360 = dma.hbm_to_vmem [thread:$0]  %s353, 61440, %s355, [#allocation11], 256, 256, 16
        $region24: #{tpu_custom_call.1} parent=11 // pred_fallthru
          _
        // Predicated region
        $region25: #{tpu_custom_call.1} parent=11 // pred_check
          %p361 = pneg %p152
        $region26: #{tpu_custom_call.1} parent=11 // pred_check_branch
          %363 = sbr.rel (%p361) target = $region28
        $region27: #{tpu_custom_call.1} parent=11 // pred_region
          %365 = vsyncadd [#allocation11], 0
          %s366 = sshll.u32 %s4, 4
          %s367 = int_to_ptr.hbm [resolvable:$true] %s366
          %s368 = sshll.u32 [#allocation12], 4
          %s369 = int_to_ptr.vmem [resolvable:$true] %s368
          %374 = dma.hbm_to_vmem [thread:$0]  %s367, 160, %s369, [#allocation11], 32, 32, 2
        $region28: #{tpu_custom_call.1} parent=11 // pred_fallthru
          _
        // Predicated region
        $region29: #{tpu_custom_call.1} parent=11 // pred_check
          %p375 = pneg %p173
        $region30: #{tpu_custom_call.1} parent=11 // pred_check_branch
          %377 = sbr.rel (%p375) target = $region32
        $region31: #{tpu_custom_call.1} parent=11 // pred_region
          %379 = vsyncadd [#allocation14], 0
          %s380 = sshll.u32 %s5, 4
          %s381 = int_to_ptr.hbm [resolvable:$true] %s380
          %s382 = sshll.u32 [#allocation13], 4
          %s383 = int_to_ptr.vmem [resolvable:$true] %s382
          %388 = dma.hbm_to_vmem [thread:$0]  %s381, 20480, %s383, [#allocation14], 256, 256, 16
        $region32: #{tpu_custom_call.1} parent=11 // pred_fallthru
          _
        // Predicated region
        $region33: #{tpu_custom_call.1} parent=11 // pred_check
          %p389 = pneg %p194
        $region34: #{tpu_custom_call.1} parent=11 // pred_check_branch
          %391 = sbr.rel (%p389) target = $region36
        $region35: #{tpu_custom_call.1} parent=11 // pred_region
          %393 = vsyncadd [#allocation14], 0
          %s394 = sshll.u32 %s6, 4
          %s395 = int_to_ptr.hbm [resolvable:$true] %s394
          %s396 = sshll.u32 [#allocation15], 4
          %s397 = int_to_ptr.vmem [resolvable:$true] %s396
          %402 = dma.hbm_to_vmem [thread:$0]  %s395, 160, %s397, [#allocation14], 32, 32, 2
        $region36: #{tpu_custom_call.1} parent=11 // pred_fallthru
          _
        // Predicated region
        $region37: #{tpu_custom_call.1} parent=11 // pred_check
          %p403 = pneg %p215
        $region38: #{tpu_custom_call.1} parent=11 // pred_check_branch
          %405 = sbr.rel (%p403) target = $region40
        $region39: #{tpu_custom_call.1} parent=11 // pred_region
          %407 = vsyncadd [#allocation17], 0
          %s408 = sshll.u32 %s7, 4
          %s409 = int_to_ptr.hbm [resolvable:$true] %s408
          %s410 = sshll.u32 [#allocation16], 4
          %s411 = int_to_ptr.vmem [resolvable:$true] %s410
          %416 = dma.hbm_to_vmem [thread:$0]  %s409, 2048, %s411, [#allocation17], 128, 128, 8
        $region40: #{tpu_custom_call.1} parent=11 // pred_fallthru
          _
        // Predicated region
        $region41: #{tpu_custom_call.1} parent=11 // pred_check
          %p417 = pneg %p236
        $region42: #{tpu_custom_call.1} parent=11 // pred_check_branch
          %419 = sbr.rel (%p417) target = $region44
        $region43: #{tpu_custom_call.1} parent=11 // pred_region
          %421 = vsyncadd [#allocation17], 0
          %s423 = sshll.u32 %s8, 4
          %s424 = int_to_ptr.hbm [resolvable:$true] %s423
          %s425 = sshll.u32 [#allocation18], 4
          %s426 = int_to_ptr.vmem [resolvable:$true] %s425
          %428 = dma.hbm_to_vmem [thread:$0]  %s424, 16, %s426, [#allocation17]
        $region44: #{tpu_custom_call.1} parent=11 // pred_fallthru
          _
        // Predicated region
        $region45: #{tpu_custom_call.1} parent=11 // pred_check
          %p429 = pneg %p257
        $region46: #{tpu_custom_call.1} parent=11 // pred_check_branch
          %431 = sbr.rel (%p429) target = $region48
        $region47: #{tpu_custom_call.1} parent=11 // pred_region
          %433 = vsyncadd [#allocation20], 0
          %s434 = sshll.u32 %s9, 4
          %s435 = int_to_ptr.hbm [resolvable:$true] %s434
          %s436 = sshll.u32 [#allocation19], 4
          %s437 = int_to_ptr.vmem [resolvable:$true] %s436
          %442 = dma.hbm_to_vmem [thread:$0]  %s435, 2048, %s437, [#allocation20], 128, 128, 8
        $region48: #{tpu_custom_call.1} parent=11 // pred_fallthru
          _
        // Predicated region
        $region49: #{tpu_custom_call.1} parent=11 // pred_check
          %p443 = pneg %p278
        $region50: #{tpu_custom_call.1} parent=11 // pred_check_branch
          %445 = sbr.rel (%p443) target = $region52
        $region51: #{tpu_custom_call.1} parent=11 // pred_region
          %447 = vsyncadd [#allocation20], 0
          %s449 = sshll.u32 %s10, 4
          %s450 = int_to_ptr.hbm [resolvable:$true] %s449
          %s451 = sshll.u32 [#allocation21], 4
          %s452 = int_to_ptr.vmem [resolvable:$true] %s451
          %454 = dma.hbm_to_vmem [thread:$0]  %s450, 16, %s452, [#allocation20]
        $region52: #{tpu_custom_call.1} parent=11 // pred_fallthru
          _
      $region12: #{tpu_custom_call.1} parent=5 // pred_fallthru
        _
      %p455 = scmp.lt.s32.totalorder %s28, 10
      // Predicated region
      $region53: #{tpu_custom_call.1} parent=5 // pred_check
        %p456 = pneg %p455
      $region54: #{tpu_custom_call.1} parent=5 // pred_check_branch
        %458 = sbr.rel (%p456) target = $region56
      $region55: #{tpu_custom_call.1} parent=5 // pred_region
        // Predicated region
        $region57: #{tpu_custom_call.1} parent=55 // pred_check
          %p459 = pneg %p62
        $region58: #{tpu_custom_call.1} parent=55 // pred_check_branch
          %461 = sbr.rel (%p459) target = $region60
        $region59: #{tpu_custom_call.1} parent=55 // pred_region
          %s462 = sand.u32 %s52, 1
          %s463 = scalar_lea.sflag [#allocation5], %s462
          %s464 = sand.u32 %s52, 1
          %s465 = smul.addr %s464, 16
          %s466 = scalar_lea.vmem [#allocation4], %s465
          %s467 = smul.u32 2, %s36
          %469 = vsyncadd %s463, 0
          %s470 = smul.addr %s35, 10
          %s471 = sadd.s32 %s467, %s470
          %s472 = smul.addr %s471, 8
          %s473 = scalar_lea.hbm %s0, %s472
          %s474 = sshll.u32 %s473, 4
          %s475 = int_to_ptr.hbm [resolvable:$true] %s474
          %s476 = sshll.u32 %s466, 4
          %s477 = int_to_ptr.vmem [resolvable:$true] %s476
          %482 = dma.hbm_to_vmem [thread:$0]  %s475, 256, %s477, %s463, 128, 128, 8
        $region60: #{tpu_custom_call.1} parent=55 // pred_fallthru
          _
      $region56: #{tpu_custom_call.1} parent=5 // pred_fallthru
        _
      %p483 = scmp.le.s32.totalorder 1, %s28
      %p484 = scmp.lt.s32.totalorder %s28, 11
      %p485 = pnand %p483, %p484
      %p486 = pneg %p485
      // Predicated region
      $region61: #{tpu_custom_call.1} parent=5 // pred_check
        _
      $region62: #{tpu_custom_call.1} parent=5 // pred_check_branch
        %488 = sbr.rel (%p485) target = $region64
      $region63: #{tpu_custom_call.1} parent=5 // pred_region
        %s489 = ssub.s32 %s28, 1
        %s490 = sand.u32 %s55, 1
        %s491 = scalar_lea.sflag [#allocation5], %s490
        %s492 = sand.u32 %s55, 1
        %s493 = smul.addr %s492, 16
        %s494 = scalar_lea.vmem [#allocation4], %s493
        // Predicated region
        $region65: #{tpu_custom_call.1} parent=63 // pred_check
          %p495 = pneg %p68
        $region66: #{tpu_custom_call.1} parent=63 // pred_check_branch
          %497 = sbr.rel (%p495) target = $region68
        $region67: #{tpu_custom_call.1} parent=63 // pred_region
          %499 = dma.done %s491, 256
        $region68: #{tpu_custom_call.1} parent=63 // pred_fallthru
          _
        // Predicated region
        $region69: #{tpu_custom_call.1} parent=63 // pred_check
          %p500 = pneg %p89
        $region70: #{tpu_custom_call.1} parent=63 // pred_check_branch
          %502 = sbr.rel (%p500) target = $region72
        $region71: #{tpu_custom_call.1} parent=63 // pred_region
          %504 = dma.done [#allocation8], 2048
        $region72: #{tpu_custom_call.1} parent=63 // pred_fallthru
          _
        // Predicated region
        $region73: #{tpu_custom_call.1} parent=63 // pred_check
          %p505 = pneg %p110
        $region74: #{tpu_custom_call.1} parent=63 // pred_check_branch
          %507 = sbr.rel (%p505) target = $region76
        $region75: #{tpu_custom_call.1} parent=63 // pred_region
          %509 = dma.done [#allocation8], 16
        $region76: #{tpu_custom_call.1} parent=63 // pred_fallthru
          _
        // Predicated region
        $region77: #{tpu_custom_call.1} parent=63 // pred_check
          %p510 = pneg %p131
        $region78: #{tpu_custom_call.1} parent=63 // pred_check_branch
          %512 = sbr.rel (%p510) target = $region80
        $region79: #{tpu_custom_call.1} parent=63 // pred_region
          %514 = dma.done [#allocation11], 61440
        $region80: #{tpu_custom_call.1} parent=63 // pred_fallthru
          _
        // Predicated region
        $region81: #{tpu_custom_call.1} parent=63 // pred_check
          %p515 = pneg %p152
        $region82: #{tpu_custom_call.1} parent=63 // pred_check_branch
          %517 = sbr.rel (%p515) target = $region84
        $region83: #{tpu_custom_call.1} parent=63 // pred_region
          %519 = dma.done [#allocation11], 160
        $region84: #{tpu_custom_call.1} parent=63 // pred_fallthru
          _
        // Predicated region
        $region85: #{tpu_custom_call.1} parent=63 // pred_check
          %p520 = pneg %p173
        $region86: #{tpu_custom_call.1} parent=63 // pred_check_branch
          %522 = sbr.rel (%p520) target = $region88
        $region87: #{tpu_custom_call.1} parent=63 // pred_region
          %524 = dma.done [#allocation14], 20480
        $region88: #{tpu_custom_call.1} parent=63 // pred_fallthru
          _
        // Predicated region
        $region89: #{tpu_custom_call.1} parent=63 // pred_check
          %p525 = pneg %p194
        $region90: #{tpu_custom_call.1} parent=63 // pred_check_branch
          %527 = sbr.rel (%p525) target = $region92
        $region91: #{tpu_custom_call.1} parent=63 // pred_region
          %529 = dma.done [#allocation14], 160
        $region92: #{tpu_custom_call.1} parent=63 // pred_fallthru
          _
        // Predicated region
        $region93: #{tpu_custom_call.1} parent=63 // pred_check
          %p530 = pneg %p215
        $region94: #{tpu_custom_call.1} parent=63 // pred_check_branch
          %532 = sbr.rel (%p530) target = $region96
        $region95: #{tpu_custom_call.1} parent=63 // pred_region
          %534 = dma.done [#allocation17], 2048
        $region96: #{tpu_custom_call.1} parent=63 // pred_fallthru
          _
        // Predicated region
        $region97: #{tpu_custom_call.1} parent=63 // pred_check
          %p535 = pneg %p236
        $region98: #{tpu_custom_call.1} parent=63 // pred_check_branch
          %537 = sbr.rel (%p535) target = $region100
        $region99: #{tpu_custom_call.1} parent=63 // pred_region
          %539 = dma.done [#allocation17], 16
        $region100: #{tpu_custom_call.1} parent=63 // pred_fallthru
          _
        // Predicated region
        $region101: #{tpu_custom_call.1} parent=63 // pred_check
          %p540 = pneg %p257
        $region102: #{tpu_custom_call.1} parent=63 // pred_check_branch
          %542 = sbr.rel (%p540) target = $region104
        $region103: #{tpu_custom_call.1} parent=63 // pred_region
          %544 = dma.done [#allocation20], 2048
        $region104: #{tpu_custom_call.1} parent=63 // pred_fallthru
          _
        // Predicated region
        $region105: #{tpu_custom_call.1} parent=63 // pred_check
          %p545 = pneg %p278
        $region106: #{tpu_custom_call.1} parent=63 // pred_check_branch
          %547 = sbr.rel (%p545) target = $region108
        $region107: #{tpu_custom_call.1} parent=63 // pred_region
          %549 = dma.done [#allocation20], 16
        $region108: #{tpu_custom_call.1} parent=63 // pred_fallthru
          _
        %s550 = sand.u32 %s55, 1
        %s551 = scalar_lea.sflag [#allocation5], %s550
        %s552 = sand.u32 %s55, 1
        %s553 = smul.addr %s552, 16
        %s554 = scalar_lea.vmem [#allocation4], %s553
        %p555 = pneg %p68
        %p556 = pneg %p65
        %p557 = pneg %p89
        %p558 = pneg %p86
        %p559 = pneg %p110
        %p560 = pneg %p107
        %p561 = pneg %p131
        %p562 = pneg %p128
        %p563 = pneg %p152
        %p564 = pneg %p149
        %p565 = pneg %p173
        %p566 = pneg %p170
        %p567 = pneg %p194
        %p568 = pneg %p191
        %p569 = pneg %p215
        %p570 = pneg %p212
        %p571 = pneg %p236
        %p572 = pneg %p233
        %p573 = pneg %p257
        %p574 = pneg %p254
        %p575 = pneg %p278
        %p576 = pneg %p275
        %p577 = pneg %p306
        %p578 = pneg %p303
        %s579 = sand.u32 %s293, 1
        %s580 = scalar_lea.sflag [#allocation6], %s579
        %s581 = sand.u32 %s293, 1
        %s582 = smul.addr %s581, 16
        %s583 = scalar_lea.vmem [#allocation22], %s582
        %s584 = smul.u32 2, %s38
        %s585 = smul.u32 2, %s38
        %p586 = scmp.eq.s32.totalorder %s38, 0
        // Predicated region
        $region109: #{tpu_custom_call.1} parent=63 // pred_check
          %p587 = pneg %p586
        $region110: #{tpu_custom_call.1} parent=63 // pred_check_branch
          %589 = sbr.rel (%p587) target = $region112
        $region111: #{tpu_custom_call.1} parent=63 // pred_region
          %590 = vst [vmem:[#allocation3] sm:$0xff] 0.0
          %591 = vst [vmem:[#allocation3 + $0x8] sm:$0xff] 0.0
          %592 = vst [vmem:[#allocation3 + $0x10] sm:$0xff] 0.0
          %593 = vst [vmem:[#allocation3 + $0x18] sm:$0xff] 0.0
          %594 = vst [vmem:[#allocation3 + $0x20] sm:$0xff] 0.0
          %595 = vst [vmem:[#allocation3 + $0x28] sm:$0xff] 0.0
          %596 = vst [vmem:[#allocation3 + $0x30] sm:$0xff] 0.0
          %597 = vst [vmem:[#allocation3 + $0x38] sm:$0xff] 0.0
          %598 = vst [vmem:[#allocation3 + $0x40] sm:$0xff] 0.0
        $region112: #{tpu_custom_call.1} parent=63 // pred_fallthru
          _
        %v599 = vld [vmem:[%s494] sm:$0xff]
        %v600 = vld [vmem:[%s494 + $0x8] sm:$0xff]
        %v601 = vld [vmem:[#allocation7] sm:$0xff]
        %v602 = vld [vmem:[#allocation7 + $0x8] sm:$0xff]
        %v603 = vld [vmem:[#allocation7 + $0x10] sm:$0xff]
        %v604 = vld [vmem:[#allocation7 + $0x18] sm:$0xff]
        %v605 = vld [vmem:[#allocation7 + $0x20] sm:$0xff]
        %v606 = vld [vmem:[#allocation7 + $0x28] sm:$0xff]
        %v607 = vld [vmem:[#allocation7 + $0x30] sm:$0xff]
        %v608 = vld [vmem:[#allocation7 + $0x38] sm:$0xff]
        %v609 = vld [vmem:[#allocation7 + $0x40] sm:$0xff]
        %v610 = vld [vmem:[#allocation7 + $0x48] sm:$0xff]
        %v611 = vld [vmem:[#allocation7 + $0x50] sm:$0xff]
        %v612 = vld [vmem:[#allocation7 + $0x58] sm:$0xff]
        %v613 = vld [vmem:[#allocation7 + $0x60] sm:$0xff]
        %v614 = vld [vmem:[#allocation7 + $0x68] sm:$0xff]
        %v615 = vld [vmem:[#allocation7 + $0x70] sm:$0xff]
        %v616 = vld [vmem:[#allocation7 + $0x78] sm:$0xff]
        %v617 = vld [vmem:[#allocation9] sm:$0x1]
        %v619 = vperm.slane %v617, 0
        %621 = vmatpush.msra.mxu0 %v616
        %622 = vmatpush.msra.mxu0 %v615
        %623 = vmatpush.msra.mxu0 %v614
        %624 = vmatpush.msra.mxu0 %v613
        %625 = vmatpush.msra.mxu0 %v612
        %626 = vmatpush.msra.mxu0 %v611
        %627 = vmatpush.msra.mxu0 %v610
        %628 = vmatpush.msra.mxu0 %v609
        %629 = vmatpush.msra.mxu0 %v608
        %630 = vmatpush.msra.mxu0 %v607
        %631 = vmatpush.msra.mxu0 %v606
        %632 = vmatpush.msra.mxu0 %v605
        %633 = vmatpush.msra.mxu0 %v604
        %634 = vmatpush.msra.mxu0 %v603
        %635 = vmatpush.msra.mxu0 %v602
        %636 = vmatpush.msra.mxu0 %v601
        %637 = vmatmul.f32.gmra.mxu0 %v599
        %v638 = vpop.f32.mrf.mxu0
        %v639 = vadd.f32 %v619, %v638
        %640 = vmatmul.f32.gmra.mxu0 %v600
        %v641 = vpop.f32.mrf.mxu0
        %v642 = vadd.f32 %v619, %v641
        %643 = vdwg.mxu0
        %v644 = vld [vmem:[#allocation3] sm:$0x3]
        %645 = vst [vmem:[#allocation2 + $0x1e] sm:$0x3] %v644
        %646 = vst [vmem:[#allocation2 + $0x20] sm:$0xff] %v639
        %647 = vst [vmem:[#allocation2 + $0x28] sm:$0xff] %v642
        %v648 = vld [vmem:[#allocation2 + $0x2e] sm:$0x3]
        %649 = vst [vmem:[#allocation3] sm:$0x3] %v648
        %v650 = vld [vmem:[#allocation2 + $0x1e] sm:$0xff]
        %v651 = vld [vmem:[#allocation2 + $0x26] sm:$0xff]
        %v652 = vld [vmem:[#allocation2 + $0x1f] sm:$0xff]
        %v653 = vld [vmem:[#allocation2 + $0x27] sm:$0xff]
        %v654 = vld [vmem:[#allocation2 + $0x20] sm:$0xff]
        %v655 = vld [vmem:[#allocation2 + $0x28] sm:$0xff]
        %v656 = vld [vmem:[#allocation10] sm:$0xff]
        %v657 = vld [vmem:[#allocation10 + $0x8] sm:$0xff]
        %v658 = vld [vmem:[#allocation10 + $0x10] sm:$0xff]
        %v659 = vld [vmem:[#allocation10 + $0x18] sm:$0xff]
        %v660 = vld [vmem:[#allocation10 + $0x20] sm:$0xff]
        %v661 = vld [vmem:[#allocation10 + $0x28] sm:$0xff]
        %v662 = vld [vmem:[#allocation10 + $0x30] sm:$0xff]
        %v663 = vld [vmem:[#allocation10 + $0x38] sm:$0xff]
        %v664 = vld [vmem:[#allocation10 + $0x40] sm:$0xff]
        %v665 = vld [vmem:[#allocation10 + $0x48] sm:$0xff]
        %v666 = vld [vmem:[#allocation10 + $0x50] sm:$0xff]
        %v667 = vld [vmem:[#allocation10 + $0x58] sm:$0xff]
        %v668 = vld [vmem:[#allocation10 + $0x60] sm:$0xff]
        %v669 = vld [vmem:[#allocation10 + $0x68] sm:$0xff]
        %v670 = vld [vmem:[#allocation10 + $0x70] sm:$0xff]
        %v671 = vld [vmem:[#allocation10 + $0x78] sm:$0xff]
        %v672 = vld [vmem:[#allocation10 + $0x80] sm:$0xff]
        %v673 = vld [vmem:[#allocation10 + $0x88] sm:$0xff]
        %v674 = vld [vmem:[#allocation10 + $0x90] sm:$0xff]
        %v675 = vld [vmem:[#allocation10 + $0x98] sm:$0xff]
        %v676 = vld [vmem:[#allocation10 + $0xa0] sm:$0xff]
        %v677 = vld [vmem:[#allocation10 + $0xa8] sm:$0xff]
        %v678 = vld [vmem:[#allocation10 + $0xb0] sm:$0xff]
        %v679 = vld [vmem:[#allocation10 + $0xb8] sm:$0xff]
        %v680 = vld [vmem:[#allocation10 + $0xc0] sm:$0xff]
        %v681 = vld [vmem:[#allocation10 + $0xc8] sm:$0xff]
        %v682 = vld [vmem:[#allocation10 + $0xd0] sm:$0xff]
        %v683 = vld [vmem:[#allocation10 + $0xd8] sm:$0xff]
        %v684 = vld [vmem:[#allocation10 + $0xe0] sm:$0xff]
        %v685 = vld [vmem:[#allocation10 + $0xe8] sm:$0xff]
        %v686 = vld [vmem:[#allocation10 + $0xf0] sm:$0xff]
        %v687 = vld [vmem:[#allocation10 + $0xf8] sm:$0xff]
        %v688 = vld [vmem:[#allocation10 + $0x100] sm:$0xff]
        %v689 = vld [vmem:[#allocation10 + $0x108] sm:$0xff]
        %v690 = vld [vmem:[#allocation10 + $0x110] sm:$0xff]
        %v691 = vld [vmem:[#allocation10 + $0x118] sm:$0xff]
        %v692 = vld [vmem:[#allocation10 + $0x120] sm:$0xff]
        %v693 = vld [vmem:[#allocation10 + $0x128] sm:$0xff]
        %v694 = vld [vmem:[#allocation10 + $0x130] sm:$0xff]
        %v695 = vld [vmem:[#allocation10 + $0x138] sm:$0xff]
        %v696 = vld [vmem:[#allocation10 + $0x140] sm:$0xff]
        %v697 = vld [vmem:[#allocation10 + $0x148] sm:$0xff]
        %v698 = vld [vmem:[#allocation10 + $0x150] sm:$0xff]
        %v699 = vld [vmem:[#allocation10 + $0x158] sm:$0xff]
        %v700 = vld [vmem:[#allocation10 + $0x160] sm:$0xff]
        %v701 = vld [vmem:[#allocation10 + $0x168] sm:$0xff]
        %v702 = vld [vmem:[#allocation10 + $0x170] sm:$0xff]
        %v703 = vld [vmem:[#allocation10 + $0x178] sm:$0xff]
        %v704 = vld [vmem:[#allocation10 + $0x180] sm:$0xff]
        %v705 = vld [vmem:[#allocation10 + $0x188] sm:$0xff]
        %v706 = vld [vmem:[#allocation10 + $0x190] sm:$0xff]
        %v707 = vld [vmem:[#allocation10 + $0x198] sm:$0xff]
        %v708 = vld [vmem:[#allocation10 + $0x1a0] sm:$0xff]
        %v709 = vld [vmem:[#allocation10 + $0x1a8] sm:$0xff]
        %v710 = vld [vmem:[#allocation10 + $0x1b0] sm:$0xff]
        %v711 = vld [vmem:[#allocation10 + $0x1b8] sm:$0xff]
        %v712 = vld [vmem:[#allocation10 + $0x1c0] sm:$0xff]
        %v713 = vld [vmem:[#allocation10 + $0x1c8] sm:$0xff]
        %v714 = vld [vmem:[#allocation10 + $0x1d0] sm:$0xff]
        %v715 = vld [vmem:[#allocation10 + $0x1d8] sm:$0xff]
        %v716 = vld [vmem:[#allocation10 + $0x1e0] sm:$0xff]
        %v717 = vld [vmem:[#allocation10 + $0x1e8] sm:$0xff]
        %v718 = vld [vmem:[#allocation10 + $0x1f0] sm:$0xff]
        %v719 = vld [vmem:[#allocation10 + $0x1f8] sm:$0xff]
        %v720 = vld [vmem:[#allocation10 + $0x200] sm:$0xff]
        %v721 = vld [vmem:[#allocation10 + $0x208] sm:$0xff]
        %v722 = vld [vmem:[#allocation10 + $0x210] sm:$0xff]
        %v723 = vld [vmem:[#allocation10 + $0x218] sm:$0xff]
        %v724 = vld [vmem:[#allocation10 + $0x220] sm:$0xff]
        %v725 = vld [vmem:[#allocation10 + $0x228] sm:$0xff]
        %v726 = vld [vmem:[#allocation10 + $0x230] sm:$0xff]
        %v727 = vld [vmem:[#allocation10 + $0x238] sm:$0xff]
        %v728 = vld [vmem:[#allocation10 + $0x240] sm:$0xff]
        %v729 = vld [vmem:[#allocation10 + $0x248] sm:$0xff]
        %v730 = vld [vmem:[#allocation10 + $0x250] sm:$0xff]
        %v731 = vld [vmem:[#allocation10 + $0x258] sm:$0xff]
        %v732 = vld [vmem:[#allocation10 + $0x260] sm:$0xff]
        %v733 = vld [vmem:[#allocation10 + $0x268] sm:$0xff]
        %v734 = vld [vmem:[#allocation10 + $0x270] sm:$0xff]
        %v735 = vld [vmem:[#allocation10 + $0x278] sm:$0xff]
        %v736 = vld [vmem:[#allocation10 + $0x280] sm:$0xff]
        %v737 = vld [vmem:[#allocation10 + $0x288] sm:$0xff]
        %v738 = vld [vmem:[#allocation10 + $0x290] sm:$0xff]
        %v739 = vld [vmem:[#allocation10 + $0x298] sm:$0xff]
        %v740 = vld [vmem:[#allocation10 + $0x2a0] sm:$0xff]
        %v741 = vld [vmem:[#allocation10 + $0x2a8] sm:$0xff]
        %v742 = vld [vmem:[#allocation10 + $0x2b0] sm:$0xff]
        %v743 = vld [vmem:[#allocation10 + $0x2b8] sm:$0xff]
        %v744 = vld [vmem:[#allocation10 + $0x2c0] sm:$0xff]
        %v745 = vld [vmem:[#allocation10 + $0x2c8] sm:$0xff]
        %v746 = vld [vmem:[#allocation10 + $0x2d0] sm:$0xff]
        %v747 = vld [vmem:[#allocation10 + $0x2d8] sm:$0xff]
        %v748 = vld [vmem:[#allocation10 + $0x2e0] sm:$0xff]
        %v749 = vld [vmem:[#allocation10 + $0x2e8] sm:$0xff]
        %v750 = vld [vmem:[#allocation10 + $0x2f0] sm:$0xff]
        %v751 = vld [vmem:[#allocation10 + $0x2f8] sm:$0xff]
        %v752 = vld [vmem:[#allocation12] sm:$0x3]
        %v754 = vperm.slane %v752, 0
        %v755 = vperm.slane %v752, 1
        %758 = vmatpush.msra.mxu0 %v686
        %759 = vmatpush.msra.mxu0 %v684
        %760 = vmatpush.msra.mxu0 %v682
        %761 = vmatpush.msra.mxu0 %v680
        %762 = vmatpush.msra.mxu0 %v678
        %763 = vmatpush.msra.mxu0 %v676
        %764 = vmatpush.msra.mxu0 %v674
        %765 = vmatpush.msra.mxu0 %v672
        %766 = vmatpush.msra.mxu0 %v670
        %767 = vmatpush.msra.mxu0 %v668
        %768 = vmatpush.msra.mxu0 %v666
        %769 = vmatpush.msra.mxu0 %v664
        %770 = vmatpush.msra.mxu0 %v662
        %771 = vmatpush.msra.mxu0 %v660
        %772 = vmatpush.msra.mxu0 %v658
        %773 = vmatpush.msra.mxu0 %v656
        %774 = vmatmul.f32.gmra.mxu0 %v650
        %v775 = vpop.f32.mrf.mxu0
        %v776 = vadd.f32 %v754, %v775
        %777 = vmatmul.f32.gmra.mxu0 %v651
        %v778 = vpop.f32.mrf.mxu0
        %v779 = vadd.f32 %v754, %v778
        %780 = vdwg.mxu0
        %781 = vmatpush.msra.mxu0 %v718
        %782 = vmatpush.msra.mxu0 %v716
        %783 = vmatpush.msra.mxu0 %v714
        %784 = vmatpush.msra.mxu0 %v712
        %785 = vmatpush.msra.mxu0 %v710
        %786 = vmatpush.msra.mxu0 %v708
        %787 = vmatpush.msra.mxu0 %v706
        %788 = vmatpush.msra.mxu0 %v704
        %789 = vmatpush.msra.mxu0 %v702
        %790 = vmatpush.msra.mxu0 %v700
        %791 = vmatpush.msra.mxu0 %v698
        %792 = vmatpush.msra.mxu0 %v696
        %793 = vmatpush.msra.mxu0 %v694
        %794 = vmatpush.msra.mxu0 %v692
        %795 = vmatpush.msra.mxu0 %v690
        %796 = vmatpush.msra.mxu0 %v688
        %797 = vmatmul.f32.gmra.mxu0 %v652
        %v798 = vpop.f32.mrf.mxu0
        %v799 = vadd.f32 %v776, %v798
        %800 = vmatmul.f32.gmra.mxu0 %v653
        %v801 = vpop.f32.mrf.mxu0
        %v802 = vadd.f32 %v779, %v801
        %803 = vdwg.mxu0
        %804 = vmatpush.msra.mxu0 %v750
        %805 = vmatpush.msra.mxu0 %v748
        %806 = vmatpush.msra.mxu0 %v746
        %807 = vmatpush.msra.mxu0 %v744
        %808 = vmatpush.msra.mxu0 %v742
        %809 = vmatpush.msra.mxu0 %v740
        %810 = vmatpush.msra.mxu0 %v738
        %811 = vmatpush.msra.mxu0 %v736
        %812 = vmatpush.msra.mxu0 %v734
        %813 = vmatpush.msra.mxu0 %v732
        %814 = vmatpush.msra.mxu0 %v730
        %815 = vmatpush.msra.mxu0 %v728
        %816 = vmatpush.msra.mxu0 %v726
        %817 = vmatpush.msra.mxu0 %v724
        %818 = vmatpush.msra.mxu0 %v722
        %819 = vmatpush.msra.mxu0 %v720
        %820 = vmatmul.f32.gmra.mxu0 %v654
        %v821 = vpop.f32.mrf.mxu0
        %v822 = vadd.f32 %v799, %v821
        %823 = vmatmul.f32.gmra.mxu0 %v655
        %v824 = vpop.f32.mrf.mxu0
        %v825 = vadd.f32 %v802, %v824
        %826 = vdwg.mxu0
        %827 = vmatpush.msra.mxu0 %v687
        %828 = vmatpush.msra.mxu0 %v685
        %829 = vmatpush.msra.mxu0 %v683
        %830 = vmatpush.msra.mxu0 %v681
        %831 = vmatpush.msra.mxu0 %v679
        %832 = vmatpush.msra.mxu0 %v677
        %833 = vmatpush.msra.mxu0 %v675
        %834 = vmatpush.msra.mxu0 %v673
        %835 = vmatpush.msra.mxu0 %v671
        %836 = vmatpush.msra.mxu0 %v669
        %837 = vmatpush.msra.mxu0 %v667
        %838 = vmatpush.msra.mxu0 %v665
        %839 = vmatpush.msra.mxu0 %v663
        %840 = vmatpush.msra.mxu0 %v661
        %841 = vmatpush.msra.mxu0 %v659
        %842 = vmatpush.msra.mxu0 %v657
        %843 = vmatmul.f32.gmra.mxu0 %v650
        %v844 = vpop.f32.mrf.mxu0
        %v845 = vadd.f32 %v755, %v844
        %846 = vmatmul.f32.gmra.mxu0 %v651
        %v847 = vpop.f32.mrf.mxu0
        %v848 = vadd.f32 %v755, %v847
        %849 = vdwg.mxu0
        %850 = vmatpush.msra.mxu0 %v719
        %851 = vmatpush.msra.mxu0 %v717
        %852 = vmatpush.msra.mxu0 %v715
        %853 = vmatpush.msra.mxu0 %v713
        %854 = vmatpush.msra.mxu0 %v711
        %855 = vmatpush.msra.mxu0 %v709
        %856 = vmatpush.msra.mxu0 %v707
        %857 = vmatpush.msra.mxu0 %v705
        %858 = vmatpush.msra.mxu0 %v703
        %859 = vmatpush.msra.mxu0 %v701
        %860 = vmatpush.msra.mxu0 %v699
        %861 = vmatpush.msra.mxu0 %v697
        %862 = vmatpush.msra.mxu0 %v695
        %863 = vmatpush.msra.mxu0 %v693
        %864 = vmatpush.msra.mxu0 %v691
        %865 = vmatpush.msra.mxu0 %v689
        %866 = vmatmul.f32.gmra.mxu0 %v652
        %v867 = vpop.f32.mrf.mxu0
        %v868 = vadd.f32 %v845, %v867
        %869 = vmatmul.f32.gmra.mxu0 %v653
        %v870 = vpop.f32.mrf.mxu0
        %v871 = vadd.f32 %v848, %v870
        %872 = vdwg.mxu0
        %873 = vmatpush.msra.mxu0 %v751
        %874 = vmatpush.msra.mxu0 %v749
        %875 = vmatpush.msra.mxu0 %v747
        %876 = vmatpush.msra.mxu0 %v745
        %877 = vmatpush.msra.mxu0 %v743
        %878 = vmatpush.msra.mxu0 %v741
        %879 = vmatpush.msra.mxu0 %v739
        %880 = vmatpush.msra.mxu0 %v737
        %881 = vmatpush.msra.mxu0 %v735
        %882 = vmatpush.msra.mxu0 %v733
        %883 = vmatpush.msra.mxu0 %v731
        %884 = vmatpush.msra.mxu0 %v729
        %885 = vmatpush.msra.mxu0 %v727
        %886 = vmatpush.msra.mxu0 %v725
        %887 = vmatpush.msra.mxu0 %v723
        %888 = vmatpush.msra.mxu0 %v721
        %889 = vmatmul.f32.gmra.mxu0 %v654
        %v890 = vpop.f32.mrf.mxu0
        %v891 = vadd.f32 %v868, %v890
        %892 = vmatmul.f32.gmra.mxu0 %v655
        %v893 = vpop.f32.mrf.mxu0
        %v894 = vadd.f32 %v871, %v893
        %895 = vdwg.mxu0
        %v896 = vtanh.pop %v822
        %v897 = vtanh.pop %v825
        %v898 = vxor.u32 %v891, 2147483648
        %v899 = vxor.u32 %v894, 2147483648
        %v900 = vmul.f32 %v898, 1.442695
        %v901 = vpow.pop %v900
        %v902 = vmul.f32 %v899, 1.442695
        %v903 = vpow.pop %v902
        %v904 = vadd.f32 %v901, 1.0
        %v905 = vadd.f32 %v903, 1.0
        %v906 = vrcp.pop %v904
        %v907 = vmul.f32 %v904, %v906
        %v908 = vsub.f32 1.0, %v907
        %v909 = vmul.f32 %v906, %v908
        %v910 = vadd.f32 %v906, %v909
        %vm911 = vweird.f32 %v904
        %vm912 = vweird.f32 %v906
        %vm913 = vmor %vm911, %vm912
        %v914 = vsel %vm913, %v906, %v910
        %v915 = vand.u32 2147483647, %v904
        %vm916 = vcmp.eq.f32.partialorder %v915, 8.507059e+37
        %v917 = vand.u32 %v904, 2147483648
        %v918 = vor.u32 1.1754944e-38, %v917
        %v919 = vsel %vm916, %v918, %v914
        %v920 = vmul.f32 1.0, %v919
        %v921 = vrcp.pop %v905
        %v922 = vmul.f32 %v905, %v921
        %v923 = vsub.f32 1.0, %v922
        %v924 = vmul.f32 %v921, %v923
        %v925 = vadd.f32 %v921, %v924
        %vm926 = vweird.f32 %v905
        %vm927 = vweird.f32 %v921
        %vm928 = vmor %vm926, %vm927
        %v929 = vsel %vm928, %v921, %v925
        %v930 = vand.u32 2147483647, %v905
        %vm931 = vcmp.eq.f32.partialorder %v930, 8.507059e+37
        %v932 = vand.u32 %v905, 2147483648
        %v933 = vor.u32 1.1754944e-38, %v932
        %v934 = vsel %vm931, %v933, %v929
        %v935 = vmul.f32 1.0, %v934
        %v936 = vmul.f32 %v896, %v920
        %v937 = vmul.f32 %v897, %v935
        %v938 = vld [vmem:[#allocation13] sm:$0xff]
        %v939 = vld [vmem:[#allocation13 + $0x8] sm:$0xff]
        %v940 = vld [vmem:[#allocation13 + $0x10] sm:$0xff]
        %v941 = vld [vmem:[#allocation13 + $0x18] sm:$0xff]
        %v942 = vld [vmem:[#allocation13 + $0x20] sm:$0xff]
        %v943 = vld [vmem:[#allocation13 + $0x28] sm:$0xff]
        %v944 = vld [vmem:[#allocation13 + $0x30] sm:$0xff]
        %v945 = vld [vmem:[#allocation13 + $0x38] sm:$0xff]
        %v946 = vld [vmem:[#allocation13 + $0x40] sm:$0xff]
        %v947 = vld [vmem:[#allocation13 + $0x48] sm:$0xff]
        %v948 = vld [vmem:[#allocation13 + $0x50] sm:$0xff]
        %v949 = vld [vmem:[#allocation13 + $0x58] sm:$0xff]
        %v950 = vld [vmem:[#allocation13 + $0x60] sm:$0xff]
        %v951 = vld [vmem:[#allocation13 + $0x68] sm:$0xff]
        %v952 = vld [vmem:[#allocation13 + $0x70] sm:$0xff]
        %v953 = vld [vmem:[#allocation13 + $0x78] sm:$0xff]
        %v954 = vld [vmem:[#allocation13 + $0x80] sm:$0xff]
        %v955 = vld [vmem:[#allocation13 + $0x88] sm:$0xff]
        %v956 = vld [vmem:[#allocation13 + $0x90] sm:$0xff]
        %v957 = vld [vmem:[#allocation13 + $0x98] sm:$0xff]
        %v958 = vld [vmem:[#allocation13 + $0xa0] sm:$0xff]
        %v959 = vld [vmem:[#allocation13 + $0xa8] sm:$0xff]
        %v960 = vld [vmem:[#allocation13 + $0xb0] sm:$0xff]
        %v961 = vld [vmem:[#allocation13 + $0xb8] sm:$0xff]
        %v962 = vld [vmem:[#allocation13 + $0xc0] sm:$0xff]
        %v963 = vld [vmem:[#allocation13 + $0xc8] sm:$0xff]
        %v964 = vld [vmem:[#allocation13 + $0xd0] sm:$0xff]
        %v965 = vld [vmem:[#allocation13 + $0xd8] sm:$0xff]
        %v966 = vld [vmem:[#allocation13 + $0xe0] sm:$0xff]
        %v967 = vld [vmem:[#allocation13 + $0xe8] sm:$0xff]
        %v968 = vld [vmem:[#allocation13 + $0xf0] sm:$0xff]
        %v969 = vld [vmem:[#allocation13 + $0xf8] sm:$0xff]
        %v970 = vld [vmem:[#allocation15] sm:$0x3]
        %v972 = vperm.slane %v970, 0
        %v973 = vperm.slane %v970, 1
        %976 = vmatpush.msra.mxu0 %v968
        %977 = vmatpush.msra.mxu0 %v966
        %978 = vmatpush.msra.mxu0 %v964
        %979 = vmatpush.msra.mxu0 %v962
        %980 = vmatpush.msra.mxu0 %v960
        %981 = vmatpush.msra.mxu0 %v958
        %982 = vmatpush.msra.mxu0 %v956
        %983 = vmatpush.msra.mxu0 %v954
        %984 = vmatpush.msra.mxu0 %v952
        %985 = vmatpush.msra.mxu0 %v950
        %986 = vmatpush.msra.mxu0 %v948
        %987 = vmatpush.msra.mxu0 %v946
        %988 = vmatpush.msra.mxu0 %v944
        %989 = vmatpush.msra.mxu0 %v942
        %990 = vmatpush.msra.mxu0 %v940
        %991 = vmatpush.msra.mxu0 %v938
        %992 = vmatmul.f32.gmra.mxu0 %v936
        %v993 = vpop.f32.mrf.mxu0
        %v994 = vadd.f32 %v972, %v993
        %995 = vmatmul.f32.gmra.mxu0 %v937
        %v996 = vpop.f32.mrf.mxu0
        %v997 = vadd.f32 %v972, %v996
        %998 = vdwg.mxu0
        %999 = vmatpush.msra.mxu0 %v969
        %1000 = vmatpush.msra.mxu0 %v967
        %1001 = vmatpush.msra.mxu0 %v965
        %1002 = vmatpush.msra.mxu0 %v963
        %1003 = vmatpush.msra.mxu0 %v961
        %1004 = vmatpush.msra.mxu0 %v959
        %1005 = vmatpush.msra.mxu0 %v957
        %1006 = vmatpush.msra.mxu0 %v955
        %1007 = vmatpush.msra.mxu0 %v953
        %1008 = vmatpush.msra.mxu0 %v951
        %1009 = vmatpush.msra.mxu0 %v949
        %1010 = vmatpush.msra.mxu0 %v947
        %1011 = vmatpush.msra.mxu0 %v945
        %1012 = vmatpush.msra.mxu0 %v943
        %1013 = vmatpush.msra.mxu0 %v941
        %1014 = vmatpush.msra.mxu0 %v939
        %1015 = vmatmul.f32.gmra.mxu0 %v936
        %v1016 = vpop.f32.mrf.mxu0
        %v1017 = vadd.f32 %v973, %v1016
        %1018 = vmatmul.f32.gmra.mxu0 %v937
        %v1019 = vpop.f32.mrf.mxu0
        %v1020 = vadd.f32 %v973, %v1019
        %1021 = vdwg.mxu0
        %v1022 = vadd.f32 %v994, %v639
        %v1023 = vadd.f32 %v997, %v642
        %v1024 = vmul.f32 %v1022, 0.70710677
        %v1025 = vmul.f32 %v1023, 0.70710677
        %v1026 = vld [vmem:[#allocation3 + $0x8] sm:$0xf]
        %1027 = vst [vmem:[#allocation2 + $0x1c] sm:$0xf] %v1026
        %1028 = vst [vmem:[#allocation2 + $0x20] sm:$0xff] %v1024
        %1029 = vst [vmem:[#allocation2 + $0x28] sm:$0xff] %v1025
        %v1030 = vld [vmem:[#allocation2 + $0x2c] sm:$0xf]
        %1031 = vst [vmem:[#allocation3 + $0x8] sm:$0xf] %v1030
        %v1032 = vld [vmem:[#allocation2 + $0x1c] sm:$0xff]
        %v1033 = vld [vmem:[#allocation2 + $0x24] sm:$0xff]
        %v1034 = vld [vmem:[#allocation2 + $0x1e] sm:$0xff]
        %v1035 = vld [vmem:[#allocation2 + $0x26] sm:$0xff]
        %v1036 = vld [vmem:[#allocation2 + $0x20] sm:$0xff]
        %v1037 = vld [vmem:[#allocation2 + $0x28] sm:$0xff]
        %s1038 = scalar_lea.vmem [#allocation10], 768
        %v1039 = vld [vmem:[%s1038] sm:$0xff]
        %v1040 = vld [vmem:[%s1038 + $0x8] sm:$0xff]
        %v1041 = vld [vmem:[%s1038 + $0x10] sm:$0xff]
        %v1042 = vld [vmem:[%s1038 + $0x18] sm:$0xff]
        %v1043 = vld [vmem:[%s1038 + $0x20] sm:$0xff]
        %v1044 = vld [vmem:[%s1038 + $0x28] sm:$0xff]
        %v1045 = vld [vmem:[%s1038 + $0x30] sm:$0xff]
        %v1046 = vld [vmem:[%s1038 + $0x38] sm:$0xff]
        %v1047 = vld [vmem:[%s1038 + $0x40] sm:$0xff]
        %v1048 = vld [vmem:[%s1038 + $0x48] sm:$0xff]
        %v1049 = vld [vmem:[%s1038 + $0x50] sm:$0xff]
        %v1050 = vld [vmem:[%s1038 + $0x58] sm:$0xff]
        %v1051 = vld [vmem:[%s1038 + $0x60] sm:$0xff]
        %v1052 = vld [vmem:[%s1038 + $0x68] sm:$0xff]
        %v1053 = vld [vmem:[%s1038 + $0x70] sm:$0xff]
        %v1054 = vld [vmem:[%s1038 + $0x78] sm:$0xff]
        %v1055 = vld [vmem:[%s1038 + $0x80] sm:$0xff]
        %v1056 = vld [vmem:[%s1038 + $0x88] sm:$0xff]
        %v1057 = vld [vmem:[%s1038 + $0x90] sm:$0xff]
        %v1058 = vld [vmem:[%s1038 + $0x98] sm:$0xff]
        %v1059 = vld [vmem:[%s1038 + $0xa0] sm:$0xff]
        %v1060 = vld [vmem:[%s1038 + $0xa8] sm:$0xff]
        %v1061 = vld [vmem:[%s1038 + $0xb0] sm:$0xff]
        %v1062 = vld [vmem:[%s1038 + $0xb8] sm:$0xff]
        %v1063 = vld [vmem:[%s1038 + $0xc0] sm:$0xff]
        %v1064 = vld [vmem:[%s1038 + $0xc8] sm:$0xff]
        %v1065 = vld [vmem:[%s1038 + $0xd0] sm:$0xff]
        %v1066 = vld [vmem:[%s1038 + $0xd8] sm:$0xff]
        %v1067 = vld [vmem:[%s1038 + $0xe0] sm:$0xff]
        %v1068 = vld [vmem:[%s1038 + $0xe8] sm:$0xff]
        %v1069 = vld [vmem:[%s1038 + $0xf0] sm:$0xff]
        %v1070 = vld [vmem:[%s1038 + $0xf8] sm:$0xff]
        %v1071 = vld [vmem:[%s1038 + $0x100] sm:$0xff]
        %v1072 = vld [vmem:[%s1038 + $0x108] sm:$0xff]
        %v1073 = vld [vmem:[%s1038 + $0x110] sm:$0xff]
        %v1074 = vld [vmem:[%s1038 + $0x118] sm:$0xff]
        %v1075 = vld [vmem:[%s1038 + $0x120] sm:$0xff]
        %v1076 = vld [vmem:[%s1038 + $0x128] sm:$0xff]
        %v1077 = vld [vmem:[%s1038 + $0x130] sm:$0xff]
        %v1078 = vld [vmem:[%s1038 + $0x138] sm:$0xff]
        %v1079 = vld [vmem:[%s1038 + $0x140] sm:$0xff]
        %v1080 = vld [vmem:[%s1038 + $0x148] sm:$0xff]
        %v1081 = vld [vmem:[%s1038 + $0x150] sm:$0xff]
        %v1082 = vld [vmem:[%s1038 + $0x158] sm:$0xff]
        %v1083 = vld [vmem:[%s1038 + $0x160] sm:$0xff]
        %v1084 = vld [vmem:[%s1038 + $0x168] sm:$0xff]
        %v1085 = vld [vmem:[%s1038 + $0x170] sm:$0xff]
        %v1086 = vld [vmem:[%s1038 + $0x178] sm:$0xff]
        %v1087 = vld [vmem:[%s1038 + $0x180] sm:$0xff]
        %v1088 = vld [vmem:[%s1038 + $0x188] sm:$0xff]
        %v1089 = vld [vmem:[%s1038 + $0x190] sm:$0xff]
        %v1090 = vld [vmem:[%s1038 + $0x198] sm:$0xff]
        %v1091 = vld [vmem:[%s1038 + $0x1a0] sm:$0xff]
        %v1092 = vld [vmem:[%s1038 + $0x1a8] sm:$0xff]
        %v1093 = vld [vmem:[%s1038 + $0x1b0] sm:$0xff]
        %v1094 = vld [vmem:[%s1038 + $0x1b8] sm:$0xff]
        %v1095 = vld [vmem:[%s1038 + $0x1c0] sm:$0xff]
        %v1096 = vld [vmem:[%s1038 + $0x1c8] sm:$0xff]
        %v1097 = vld [vmem:[%s1038 + $0x1d0] sm:$0xff]
        %v1098 = vld [vmem:[%s1038 + $0x1d8] sm:$0xff]
        %v1099 = vld [vmem:[%s1038 + $0x1e0] sm:$0xff]
        %v1100 = vld [vmem:[%s1038 + $0x1e8] sm:$0xff]
        %v1101 = vld [vmem:[%s1038 + $0x1f0] sm:$0xff]
        %v1102 = vld [vmem:[%s1038 + $0x1f8] sm:$0xff]
        %v1103 = vld [vmem:[%s1038 + $0x200] sm:$0xff]
        %v1104 = vld [vmem:[%s1038 + $0x208] sm:$0xff]
        %v1105 = vld [vmem:[%s1038 + $0x210] sm:$0xff]
        %v1106 = vld [vmem:[%s1038 + $0x218] sm:$0xff]
        %v1107 = vld [vmem:[%s1038 + $0x220] sm:$0xff]
        %v1108 = vld [vmem:[%s1038 + $0x228] sm:$0xff]
        %v1109 = vld [vmem:[%s1038 + $0x230] sm:$0xff]
        %v1110 = vld [vmem:[%s1038 + $0x238] sm:$0xff]
        %v1111 = vld [vmem:[%s1038 + $0x240] sm:$0xff]
        %v1112 = vld [vmem:[%s1038 + $0x248] sm:$0xff]
        %v1113 = vld [vmem:[%s1038 + $0x250] sm:$0xff]
        %v1114 = vld [vmem:[%s1038 + $0x258] sm:$0xff]
        %v1115 = vld [vmem:[%s1038 + $0x260] sm:$0xff]
        %v1116 = vld [vmem:[%s1038 + $0x268] sm:$0xff]
        %v1117 = vld [vmem:[%s1038 + $0x270] sm:$0xff]
        %v1118 = vld [vmem:[%s1038 + $0x278] sm:$0xff]
        %v1119 = vld [vmem:[%s1038 + $0x280] sm:$0xff]
        %v1120 = vld [vmem:[%s1038 + $0x288] sm:$0xff]
        %v1121 = vld [vmem:[%s1038 + $0x290] sm:$0xff]
        %v1122 = vld [vmem:[%s1038 + $0x298] sm:$0xff]
        %v1123 = vld [vmem:[%s1038 + $0x2a0] sm:$0xff]
        %v1124 = vld [vmem:[%s1038 + $0x2a8] sm:$0xff]
        %v1125 = vld [vmem:[%s1038 + $0x2b0] sm:$0xff]
        %v1126 = vld [vmem:[%s1038 + $0x2b8] sm:$0xff]
        %v1127 = vld [vmem:[%s1038 + $0x2c0] sm:$0xff]
        %v1128 = vld [vmem:[%s1038 + $0x2c8] sm:$0xff]
        %v1129 = vld [vmem:[%s1038 + $0x2d0] sm:$0xff]
        %v1130 = vld [vmem:[%s1038 + $0x2d8] sm:$0xff]
        %v1131 = vld [vmem:[%s1038 + $0x2e0] sm:$0xff]
        %v1132 = vld [vmem:[%s1038 + $0x2e8] sm:$0xff]
        %v1133 = vld [vmem:[%s1038 + $0x2f0] sm:$0xff]
        %v1134 = vld [vmem:[%s1038 + $0x2f8] sm:$0xff]
        %s1135 = scalar_lea.vmem [#allocation12], 2
        %v1136 = vld [vmem:[%s1135] sm:$0x3]
        %v1138 = vperm.slane %v1136, 0
        %v1139 = vperm.slane %v1136, 1
        %1142 = vmatpush.msra.mxu0 %v1069
        %1143 = vmatpush.msra.mxu0 %v1067
        %1144 = vmatpush.msra.mxu0 %v1065
        %1145 = vmatpush.msra.mxu0 %v1063
        %1146 = vmatpush.msra.mxu0 %v1061
        %1147 = vmatpush.msra.mxu0 %v1059
        %1148 = vmatpush.msra.mxu0 %v1057
        %1149 = vmatpush.msra.mxu0 %v1055
        %1150 = vmatpush.msra.mxu0 %v1053
        %1151 = vmatpush.msra.mxu0 %v1051
        %1152 = vmatpush.msra.mxu0 %v1049
        %1153 = vmatpush.msra.mxu0 %v1047
        %1154 = vmatpush.msra.mxu0 %v1045
        %1155 = vmatpush.msra.mxu0 %v1043
        %1156 = vmatpush.msra.mxu0 %v1041
        %1157 = vmatpush.msra.mxu0 %v1039
        %1158 = vmatmul.f32.gmra.mxu0 %v1032
        %v1159 = vpop.f32.mrf.mxu0
        %v1160 = vadd.f32 %v1138, %v1159
        %1161 = vmatmul.f32.gmra.mxu0 %v1033
        %v1162 = vpop.f32.mrf.mxu0
        %v1163 = vadd.f32 %v1138, %v1162
        %1164 = vdwg.mxu0
        %1165 = vmatpush.msra.mxu0 %v1101
        %1166 = vmatpush.msra.mxu0 %v1099
        %1167 = vmatpush.msra.mxu0 %v1097
        %1168 = vmatpush.msra.mxu0 %v1095
        %1169 = vmatpush.msra.mxu0 %v1093
        %1170 = vmatpush.msra.mxu0 %v1091
        %1171 = vmatpush.msra.mxu0 %v1089
        %1172 = vmatpush.msra.mxu0 %v1087
        %1173 = vmatpush.msra.mxu0 %v1085
        %1174 = vmatpush.msra.mxu0 %v1083
        %1175 = vmatpush.msra.mxu0 %v1081
        %1176 = vmatpush.msra.mxu0 %v1079
        %1177 = vmatpush.msra.mxu0 %v1077
        %1178 = vmatpush.msra.mxu0 %v1075
        %1179 = vmatpush.msra.mxu0 %v1073
        %1180 = vmatpush.msra.mxu0 %v1071
        %1181 = vmatmul.f32.gmra.mxu0 %v1034
        %v1182 = vpop.f32.mrf.mxu0
        %v1183 = vadd.f32 %v1160, %v1182
        %1184 = vmatmul.f32.gmra.mxu0 %v1035
        %v1185 = vpop.f32.mrf.mxu0
        %v1186 = vadd.f32 %v1163, %v1185
        %1187 = vdwg.mxu0
        %1188 = vmatpush.msra.mxu0 %v1133
        %1189 = vmatpush.msra.mxu0 %v1131
        %1190 = vmatpush.msra.mxu0 %v1129
        %1191 = vmatpush.msra.mxu0 %v1127
        %1192 = vmatpush.msra.mxu0 %v1125
        %1193 = vmatpush.msra.mxu0 %v1123
        %1194 = vmatpush.msra.mxu0 %v1121
        %1195 = vmatpush.msra.mxu0 %v1119
        %1196 = vmatpush.msra.mxu0 %v1117
        %1197 = vmatpush.msra.mxu0 %v1115
        %1198 = vmatpush.msra.mxu0 %v1113
        %1199 = vmatpush.msra.mxu0 %v1111
        %1200 = vmatpush.msra.mxu0 %v1109
        %1201 = vmatpush.msra.mxu0 %v1107
        %1202 = vmatpush.msra.mxu0 %v1105
        %1203 = vmatpush.msra.mxu0 %v1103
        %1204 = vmatmul.f32.gmra.mxu0 %v1036
        %v1205 = vpop.f32.mrf.mxu0
        %v1206 = vadd.f32 %v1183, %v1205
        %1207 = vmatmul.f32.gmra.mxu0 %v1037
        %v1208 = vpop.f32.mrf.mxu0
        %v1209 = vadd.f32 %v1186, %v1208
        %1210 = vdwg.mxu0
        %1211 = vmatpush.msra.mxu0 %v1070
        %1212 = vmatpush.msra.mxu0 %v1068
        %1213 = vmatpush.msra.mxu0 %v1066
        %1214 = vmatpush.msra.mxu0 %v1064
        %1215 = vmatpush.msra.mxu0 %v1062
        %1216 = vmatpush.msra.mxu0 %v1060
        %1217 = vmatpush.msra.mxu0 %v1058
        %1218 = vmatpush.msra.mxu0 %v1056
        %1219 = vmatpush.msra.mxu0 %v1054
        %1220 = vmatpush.msra.mxu0 %v1052
        %1221 = vmatpush.msra.mxu0 %v1050
        %1222 = vmatpush.msra.mxu0 %v1048
        %1223 = vmatpush.msra.mxu0 %v1046
        %1224 = vmatpush.msra.mxu0 %v1044
        %1225 = vmatpush.msra.mxu0 %v1042
        %1226 = vmatpush.msra.mxu0 %v1040
        %1227 = vmatmul.f32.gmra.mxu0 %v1032
        %v1228 = vpop.f32.mrf.mxu0
        %v1229 = vadd.f32 %v1139, %v1228
        %1230 = vmatmul.f32.gmra.mxu0 %v1033
        %v1231 = vpop.f32.mrf.mxu0
        %v1232 = vadd.f32 %v1139, %v1231
        %1233 = vdwg.mxu0
        %1234 = vmatpush.msra.mxu0 %v1102
        %1235 = vmatpush.msra.mxu0 %v1100
        %1236 = vmatpush.msra.mxu0 %v1098
        %1237 = vmatpush.msra.mxu0 %v1096
        %1238 = vmatpush.msra.mxu0 %v1094
        %1239 = vmatpush.msra.mxu0 %v1092
        %1240 = vmatpush.msra.mxu0 %v1090
        %1241 = vmatpush.msra.mxu0 %v1088
        %1242 = vmatpush.msra.mxu0 %v1086
        %1243 = vmatpush.msra.mxu0 %v1084
        %1244 = vmatpush.msra.mxu0 %v1082
        %1245 = vmatpush.msra.mxu0 %v1080
        %1246 = vmatpush.msra.mxu0 %v1078
        %1247 = vmatpush.msra.mxu0 %v1076
        %1248 = vmatpush.msra.mxu0 %v1074
        %1249 = vmatpush.msra.mxu0 %v1072
        %1250 = vmatmul.f32.gmra.mxu0 %v1034
        %v1251 = vpop.f32.mrf.mxu0
        %v1252 = vadd.f32 %v1229, %v1251
        %1253 = vmatmul.f32.gmra.mxu0 %v1035
        %v1254 = vpop.f32.mrf.mxu0
        %v1255 = vadd.f32 %v1232, %v1254
        %1256 = vdwg.mxu0
        %1257 = vmatpush.msra.mxu0 %v1134
        %1258 = vmatpush.msra.mxu0 %v1132
        %1259 = vmatpush.msra.mxu0 %v1130
        %1260 = vmatpush.msra.mxu0 %v1128
        %1261 = vmatpush.msra.mxu0 %v1126
        %1262 = vmatpush.msra.mxu0 %v1124
        %1263 = vmatpush.msra.mxu0 %v1122
        %1264 = vmatpush.msra.mxu0 %v1120
        %1265 = vmatpush.msra.mxu0 %v1118
        %1266 = vmatpush.msra.mxu0 %v1116
        %1267 = vmatpush.msra.mxu0 %v1114
        %1268 = vmatpush.msra.mxu0 %v1112
        %1269 = vmatpush.msra.mxu0 %v1110
        %1270 = vmatpush.msra.mxu0 %v1108
        %1271 = vmatpush.msra.mxu0 %v1106
        %1272 = vmatpush.msra.mxu0 %v1104
        %1273 = vmatmul.f32.gmra.mxu0 %v1036
        %v1274 = vpop.f32.mrf.mxu0
        %v1275 = vadd.f32 %v1252, %v1274
        %1276 = vmatmul.f32.gmra.mxu0 %v1037
        %v1277 = vpop.f32.mrf.mxu0
        %v1278 = vadd.f32 %v1255, %v1277
        %1279 = vdwg.mxu0
        %v1280 = vtanh.pop %v1206
        %v1281 = vtanh.pop %v1209
        %v1282 = vxor.u32 %v1275, 2147483648
        %v1283 = vxor.u32 %v1278, 2147483648
        %v1284 = vmul.f32 %v1282, 1.442695
        %v1285 = vpow.pop %v1284
        %v1286 = vmul.f32 %v1283, 1.442695
        %v1287 = vpow.pop %v1286
        %v1288 = vadd.f32 %v1285, 1.0
        %v1289 = vadd.f32 %v1287, 1.0
        %v1290 = vrcp.pop %v1288
        %v1291 = vmul.f32 %v1288, %v1290
        %v1292 = vsub.f32 1.0, %v1291
        %v1293 = vmul.f32 %v1290, %v1292
        %v1294 = vadd.f32 %v1290, %v1293
        %vm1295 = vweird.f32 %v1288
        %vm1296 = vweird.f32 %v1290
        %vm1297 = vmor %vm1295, %vm1296
        %v1298 = vsel %vm1297, %v1290, %v1294
        %v1299 = vand.u32 2147483647, %v1288
        %vm1300 = vcmp.eq.f32.partialorder %v1299, 8.507059e+37
        %v1301 = vand.u32 %v1288, 2147483648
        %v1302 = vor.u32 1.1754944e-38, %v1301
        %v1303 = vsel %vm1300, %v1302, %v1298
        %v1304 = vmul.f32 1.0, %v1303
        %v1305 = vrcp.pop %v1289
        %v1306 = vmul.f32 %v1289, %v1305
        %v1307 = vsub.f32 1.0, %v1306
        %v1308 = vmul.f32 %v1305, %v1307
        %v1309 = vadd.f32 %v1305, %v1308
        %vm1310 = vweird.f32 %v1289
        %vm1311 = vweird.f32 %v1305
        %vm1312 = vmor %vm1310, %vm1311
        %v1313 = vsel %vm1312, %v1305, %v1309
        %v1314 = vand.u32 2147483647, %v1289
        %vm1315 = vcmp.eq.f32.partialorder %v1314, 8.507059e+37
        %v1316 = vand.u32 %v1289, 2147483648
        %v1317 = vor.u32 1.1754944e-38, %v1316
        %v1318 = vsel %vm1315, %v1317, %v1313
        %v1319 = vmul.f32 1.0, %v1318
        %v1320 = vmul.f32 %v1280, %v1304
        %v1321 = vmul.f32 %v1281, %v1319
        %s1322 = scalar_lea.vmem [#allocation13], 256
        %v1323 = vld [vmem:[%s1322] sm:$0xff]
        %v1324 = vld [vmem:[%s1322 + $0x8] sm:$0xff]
        %v1325 = vld [vmem:[%s1322 + $0x10] sm:$0xff]
        %v1326 = vld [vmem:[%s1322 + $0x18] sm:$0xff]
        %v1327 = vld [vmem:[%s1322 + $0x20] sm:$0xff]
        %v1328 = vld [vmem:[%s1322 + $0x28] sm:$0xff]
        %v1329 = vld [vmem:[%s1322 + $0x30] sm:$0xff]
        %v1330 = vld [vmem:[%s1322 + $0x38] sm:$0xff]
        %v1331 = vld [vmem:[%s1322 + $0x40] sm:$0xff]
        %v1332 = vld [vmem:[%s1322 + $0x48] sm:$0xff]
        %v1333 = vld [vmem:[%s1322 + $0x50] sm:$0xff]
        %v1334 = vld [vmem:[%s1322 + $0x58] sm:$0xff]
        %v1335 = vld [vmem:[%s1322 + $0x60] sm:$0xff]
        %v1336 = vld [vmem:[%s1322 + $0x68] sm:$0xff]
        %v1337 = vld [vmem:[%s1322 + $0x70] sm:$0xff]
        %v1338 = vld [vmem:[%s1322 + $0x78] sm:$0xff]
        %v1339 = vld [vmem:[%s1322 + $0x80] sm:$0xff]
        %v1340 = vld [vmem:[%s1322 + $0x88] sm:$0xff]
        %v1341 = vld [vmem:[%s1322 + $0x90] sm:$0xff]
        %v1342 = vld [vmem:[%s1322 + $0x98] sm:$0xff]
        %v1343 = vld [vmem:[%s1322 + $0xa0] sm:$0xff]
        %v1344 = vld [vmem:[%s1322 + $0xa8] sm:$0xff]
        %v1345 = vld [vmem:[%s1322 + $0xb0] sm:$0xff]
        %v1346 = vld [vmem:[%s1322 + $0xb8] sm:$0xff]
        %v1347 = vld [vmem:[%s1322 + $0xc0] sm:$0xff]
        %v1348 = vld [vmem:[%s1322 + $0xc8] sm:$0xff]
        %v1349 = vld [vmem:[%s1322 + $0xd0] sm:$0xff]
        %v1350 = vld [vmem:[%s1322 + $0xd8] sm:$0xff]
        %v1351 = vld [vmem:[%s1322 + $0xe0] sm:$0xff]
        %v1352 = vld [vmem:[%s1322 + $0xe8] sm:$0xff]
        %v1353 = vld [vmem:[%s1322 + $0xf0] sm:$0xff]
        %v1354 = vld [vmem:[%s1322 + $0xf8] sm:$0xff]
        %s1355 = scalar_lea.vmem [#allocation15], 2
        %v1356 = vld [vmem:[%s1355] sm:$0x3]
        %v1358 = vperm.slane %v1356, 0
        %v1359 = vperm.slane %v1356, 1
        %1362 = vmatpush.msra.mxu0 %v1353
        %1363 = vmatpush.msra.mxu0 %v1351
        %1364 = vmatpush.msra.mxu0 %v1349
        %1365 = vmatpush.msra.mxu0 %v1347
        %1366 = vmatpush.msra.mxu0 %v1345
        %1367 = vmatpush.msra.mxu0 %v1343
        %1368 = vmatpush.msra.mxu0 %v1341
        %1369 = vmatpush.msra.mxu0 %v1339
        %1370 = vmatpush.msra.mxu0 %v1337
        %1371 = vmatpush.msra.mxu0 %v1335
        %1372 = vmatpush.msra.mxu0 %v1333
        %1373 = vmatpush.msra.mxu0 %v1331
        %1374 = vmatpush.msra.mxu0 %v1329
        %1375 = vmatpush.msra.mxu0 %v1327
        %1376 = vmatpush.msra.mxu0 %v1325
        %1377 = vmatpush.msra.mxu0 %v1323
        %1378 = vmatmul.f32.gmra.mxu0 %v1320
        %v1379 = vpop.f32.mrf.mxu0
        %v1380 = vadd.f32 %v1358, %v1379
        %1381 = vmatmul.f32.gmra.mxu0 %v1321
        %v1382 = vpop.f32.mrf.mxu0
        %v1383 = vadd.f32 %v1358, %v1382
        %1384 = vdwg.mxu0
        %1385 = vmatpush.msra.mxu0 %v1354
        %1386 = vmatpush.msra.mxu0 %v1352
        %1387 = vmatpush.msra.mxu0 %v1350
        %1388 = vmatpush.msra.mxu0 %v1348
        %1389 = vmatpush.msra.mxu0 %v1346
        %1390 = vmatpush.msra.mxu0 %v1344
        %1391 = vmatpush.msra.mxu0 %v1342
        %1392 = vmatpush.msra.mxu0 %v1340
        %1393 = vmatpush.msra.mxu0 %v1338
        %1394 = vmatpush.msra.mxu0 %v1336
        %1395 = vmatpush.msra.mxu0 %v1334
        %1396 = vmatpush.msra.mxu0 %v1332
        %1397 = vmatpush.msra.mxu0 %v1330
        %1398 = vmatpush.msra.mxu0 %v1328
        %1399 = vmatpush.msra.mxu0 %v1326
        %1400 = vmatpush.msra.mxu0 %v1324
        %1401 = vmatmul.f32.gmra.mxu0 %v1320
        %v1402 = vpop.f32.mrf.mxu0
        %v1403 = vadd.f32 %v1359, %v1402
        %1404 = vmatmul.f32.gmra.mxu0 %v1321
        %v1405 = vpop.f32.mrf.mxu0
        %v1406 = vadd.f32 %v1359, %v1405
        %1407 = vdwg.mxu0
        %v1408 = vadd.f32 %v1380, %v1024
        %v1409 = vadd.f32 %v1383, %v1025
        %v1410 = vmul.f32 %v1408, 0.70710677
        %v1411 = vmul.f32 %v1409, 0.70710677
        %v1412 = vadd.f32 %v1017, %v1403
        %v1413 = vadd.f32 %v1020, %v1406
        %v1414 = vmul.f32 %v1412, 0.70710677
        %v1415 = vmul.f32 %v1413, 0.70710677
        %v1416 = vld [vmem:[#allocation3 + $0x10] sm:$0xff]
        %1417 = vst [vmem:[#allocation2 + $0x18] sm:$0xff] %v1416
        %1418 = vst [vmem:[#allocation2 + $0x20] sm:$0xff] %v1410
        %1419 = vst [vmem:[#allocation2 + $0x28] sm:$0xff] %v1411
        %v1420 = vld [vmem:[#allocation2 + $0x28] sm:$0xff]
        %1421 = vst [vmem:[#allocation3 + $0x10] sm:$0xff] %v1420
        %v1422 = vld [vmem:[#allocation2 + $0x18] sm:$0xff]
        %v1423 = vld [vmem:[#allocation2 + $0x20] sm:$0xff]
        %v1424 = vld [vmem:[#allocation2 + $0x1c] sm:$0xff]
        %v1425 = vld [vmem:[#allocation2 + $0x24] sm:$0xff]
        %v1426 = vld [vmem:[#allocation2 + $0x20] sm:$0xff]
        %v1427 = vld [vmem:[#allocation2 + $0x28] sm:$0xff]
        %s1428 = scalar_lea.vmem [#allocation10], 1536
        %v1429 = vld [vmem:[%s1428] sm:$0xff]
        %v1430 = vld [vmem:[%s1428 + $0x8] sm:$0xff]
        %v1431 = vld [vmem:[%s1428 + $0x10] sm:$0xff]
        %v1432 = vld [vmem:[%s1428 + $0x18] sm:$0xff]
        %v1433 = vld [vmem:[%s1428 + $0x20] sm:$0xff]
        %v1434 = vld [vmem:[%s1428 + $0x28] sm:$0xff]
        %v1435 = vld [vmem:[%s1428 + $0x30] sm:$0xff]
        %v1436 = vld [vmem:[%s1428 + $0x38] sm:$0xff]
        %v1437 = vld [vmem:[%s1428 + $0x40] sm:$0xff]
        %v1438 = vld [vmem:[%s1428 + $0x48] sm:$0xff]
        %v1439 = vld [vmem:[%s1428 + $0x50] sm:$0xff]
        %v1440 = vld [vmem:[%s1428 + $0x58] sm:$0xff]
        %v1441 = vld [vmem:[%s1428 + $0x60] sm:$0xff]
        %v1442 = vld [vmem:[%s1428 + $0x68] sm:$0xff]
        %v1443 = vld [vmem:[%s1428 + $0x70] sm:$0xff]
        %v1444 = vld [vmem:[%s1428 + $0x78] sm:$0xff]
        %v1445 = vld [vmem:[%s1428 + $0x80] sm:$0xff]
        %v1446 = vld [vmem:[%s1428 + $0x88] sm:$0xff]
        %v1447 = vld [vmem:[%s1428 + $0x90] sm:$0xff]
        %v1448 = vld [vmem:[%s1428 + $0x98] sm:$0xff]
        %v1449 = vld [vmem:[%s1428 + $0xa0] sm:$0xff]
        %v1450 = vld [vmem:[%s1428 + $0xa8] sm:$0xff]
        %v1451 = vld [vmem:[%s1428 + $0xb0] sm:$0xff]
        %v1452 = vld [vmem:[%s1428 + $0xb8] sm:$0xff]
        %v1453 = vld [vmem:[%s1428 + $0xc0] sm:$0xff]
        %v1454 = vld [vmem:[%s1428 + $0xc8] sm:$0xff]
        %v1455 = vld [vmem:[%s1428 + $0xd0] sm:$0xff]
        %v1456 = vld [vmem:[%s1428 + $0xd8] sm:$0xff]
        %v1457 = vld [vmem:[%s1428 + $0xe0] sm:$0xff]
        %v1458 = vld [vmem:[%s1428 + $0xe8] sm:$0xff]
        %v1459 = vld [vmem:[%s1428 + $0xf0] sm:$0xff]
        %v1460 = vld [vmem:[%s1428 + $0xf8] sm:$0xff]
        %v1461 = vld [vmem:[%s1428 + $0x100] sm:$0xff]
        %v1462 = vld [vmem:[%s1428 + $0x108] sm:$0xff]
        %v1463 = vld [vmem:[%s1428 + $0x110] sm:$0xff]
        %v1464 = vld [vmem:[%s1428 + $0x118] sm:$0xff]
        %v1465 = vld [vmem:[%s1428 + $0x120] sm:$0xff]
        %v1466 = vld [vmem:[%s1428 + $0x128] sm:$0xff]
        %v1467 = vld [vmem:[%s1428 + $0x130] sm:$0xff]
        %v1468 = vld [vmem:[%s1428 + $0x138] sm:$0xff]
        %v1469 = vld [vmem:[%s1428 + $0x140] sm:$0xff]
        %v1470 = vld [vmem:[%s1428 + $0x148] sm:$0xff]
        %v1471 = vld [vmem:[%s1428 + $0x150] sm:$0xff]
        %v1472 = vld [vmem:[%s1428 + $0x158] sm:$0xff]
        %v1473 = vld [vmem:[%s1428 + $0x160] sm:$0xff]
        %v1474 = vld [vmem:[%s1428 + $0x168] sm:$0xff]
        %v1475 = vld [vmem:[%s1428 + $0x170] sm:$0xff]
        %v1476 = vld [vmem:[%s1428 + $0x178] sm:$0xff]
        %v1477 = vld [vmem:[%s1428 + $0x180] sm:$0xff]
        %v1478 = vld [vmem:[%s1428 + $0x188] sm:$0xff]
        %v1479 = vld [vmem:[%s1428 + $0x190] sm:$0xff]
        %v1480 = vld [vmem:[%s1428 + $0x198] sm:$0xff]
        %v1481 = vld [vmem:[%s1428 + $0x1a0] sm:$0xff]
        %v1482 = vld [vmem:[%s1428 + $0x1a8] sm:$0xff]
        %v1483 = vld [vmem:[%s1428 + $0x1b0] sm:$0xff]
        %v1484 = vld [vmem:[%s1428 + $0x1b8] sm:$0xff]
        %v1485 = vld [vmem:[%s1428 + $0x1c0] sm:$0xff]
        %v1486 = vld [vmem:[%s1428 + $0x1c8] sm:$0xff]
        %v1487 = vld [vmem:[%s1428 + $0x1d0] sm:$0xff]
        %v1488 = vld [vmem:[%s1428 + $0x1d8] sm:$0xff]
        %v1489 = vld [vmem:[%s1428 + $0x1e0] sm:$0xff]
        %v1490 = vld [vmem:[%s1428 + $0x1e8] sm:$0xff]
        %v1491 = vld [vmem:[%s1428 + $0x1f0] sm:$0xff]
        %v1492 = vld [vmem:[%s1428 + $0x1f8] sm:$0xff]
        %v1493 = vld [vmem:[%s1428 + $0x200] sm:$0xff]
        %v1494 = vld [vmem:[%s1428 + $0x208] sm:$0xff]
        %v1495 = vld [vmem:[%s1428 + $0x210] sm:$0xff]
        %v1496 = vld [vmem:[%s1428 + $0x218] sm:$0xff]
        %v1497 = vld [vmem:[%s1428 + $0x220] sm:$0xff]
        %v1498 = vld [vmem:[%s1428 + $0x228] sm:$0xff]
        %v1499 = vld [vmem:[%s1428 + $0x230] sm:$0xff]
        %v1500 = vld [vmem:[%s1428 + $0x238] sm:$0xff]
        %v1501 = vld [vmem:[%s1428 + $0x240] sm:$0xff]
        %v1502 = vld [vmem:[%s1428 + $0x248] sm:$0xff]
        %v1503 = vld [vmem:[%s1428 + $0x250] sm:$0xff]
        %v1504 = vld [vmem:[%s1428 + $0x258] sm:$0xff]
        %v1505 = vld [vmem:[%s1428 + $0x260] sm:$0xff]
        %v1506 = vld [vmem:[%s1428 + $0x268] sm:$0xff]
        %v1507 = vld [vmem:[%s1428 + $0x270] sm:$0xff]
        %v1508 = vld [vmem:[%s1428 + $0x278] sm:$0xff]
        %v1509 = vld [vmem:[%s1428 + $0x280] sm:$0xff]
        %v1510 = vld [vmem:[%s1428 + $0x288] sm:$0xff]
        %v1511 = vld [vmem:[%s1428 + $0x290] sm:$0xff]
        %v1512 = vld [vmem:[%s1428 + $0x298] sm:$0xff]
        %v1513 = vld [vmem:[%s1428 + $0x2a0] sm:$0xff]
        %v1514 = vld [vmem:[%s1428 + $0x2a8] sm:$0xff]
        %v1515 = vld [vmem:[%s1428 + $0x2b0] sm:$0xff]
        %v1516 = vld [vmem:[%s1428 + $0x2b8] sm:$0xff]
        %v1517 = vld [vmem:[%s1428 + $0x2c0] sm:$0xff]
        %v1518 = vld [vmem:[%s1428 + $0x2c8] sm:$0xff]
        %v1519 = vld [vmem:[%s1428 + $0x2d0] sm:$0xff]
        %v1520 = vld [vmem:[%s1428 + $0x2d8] sm:$0xff]
        %v1521 = vld [vmem:[%s1428 + $0x2e0] sm:$0xff]
        %v1522 = vld [vmem:[%s1428 + $0x2e8] sm:$0xff]
        %v1523 = vld [vmem:[%s1428 + $0x2f0] sm:$0xff]
        %v1524 = vld [vmem:[%s1428 + $0x2f8] sm:$0xff]
        %s1525 = scalar_lea.vmem [#allocation12], 4
        %v1526 = vld [vmem:[%s1525] sm:$0x3]
        %v1528 = vperm.slane %v1526, 0
        %v1529 = vperm.slane %v1526, 1
        %1532 = vmatpush.msra.mxu0 %v1459
        %1533 = vmatpush.msra.mxu0 %v1457
        %1534 = vmatpush.msra.mxu0 %v1455
        %1535 = vmatpush.msra.mxu0 %v1453
        %1536 = vmatpush.msra.mxu0 %v1451
        %1537 = vmatpush.msra.mxu0 %v1449
        %1538 = vmatpush.msra.mxu0 %v1447
        %1539 = vmatpush.msra.mxu0 %v1445
        %1540 = vmatpush.msra.mxu0 %v1443
        %1541 = vmatpush.msra.mxu0 %v1441
        %1542 = vmatpush.msra.mxu0 %v1439
        %1543 = vmatpush.msra.mxu0 %v1437
        %1544 = vmatpush.msra.mxu0 %v1435
        %1545 = vmatpush.msra.mxu0 %v1433
        %1546 = vmatpush.msra.mxu0 %v1431
        %1547 = vmatpush.msra.mxu0 %v1429
        %1548 = vmatmul.f32.gmra.mxu0 %v1422
        %v1549 = vpop.f32.mrf.mxu0
        %v1550 = vadd.f32 %v1528, %v1549
        %1551 = vmatmul.f32.gmra.mxu0 %v1423
        %v1552 = vpop.f32.mrf.mxu0
        %v1553 = vadd.f32 %v1528, %v1552
        %1554 = vdwg.mxu0
        %1555 = vmatpush.msra.mxu0 %v1491
        %1556 = vmatpush.msra.mxu0 %v1489
        %1557 = vmatpush.msra.mxu0 %v1487
        %1558 = vmatpush.msra.mxu0 %v1485
        %1559 = vmatpush.msra.mxu0 %v1483
        %1560 = vmatpush.msra.mxu0 %v1481
        %1561 = vmatpush.msra.mxu0 %v1479
        %1562 = vmatpush.msra.mxu0 %v1477
        %1563 = vmatpush.msra.mxu0 %v1475
        %1564 = vmatpush.msra.mxu0 %v1473
        %1565 = vmatpush.msra.mxu0 %v1471
        %1566 = vmatpush.msra.mxu0 %v1469
        %1567 = vmatpush.msra.mxu0 %v1467
        %1568 = vmatpush.msra.mxu0 %v1465
        %1569 = vmatpush.msra.mxu0 %v1463
        %1570 = vmatpush.msra.mxu0 %v1461
        %1571 = vmatmul.f32.gmra.mxu0 %v1424
        %v1572 = vpop.f32.mrf.mxu0
        %v1573 = vadd.f32 %v1550, %v1572
        %1574 = vmatmul.f32.gmra.mxu0 %v1425
        %v1575 = vpop.f32.mrf.mxu0
        %v1576 = vadd.f32 %v1553, %v1575
        %1577 = vdwg.mxu0
        %1578 = vmatpush.msra.mxu0 %v1523
        %1579 = vmatpush.msra.mxu0 %v1521
        %1580 = vmatpush.msra.mxu0 %v1519
        %1581 = vmatpush.msra.mxu0 %v1517
        %1582 = vmatpush.msra.mxu0 %v1515
        %1583 = vmatpush.msra.mxu0 %v1513
        %1584 = vmatpush.msra.mxu0 %v1511
        %1585 = vmatpush.msra.mxu0 %v1509
        %1586 = vmatpush.msra.mxu0 %v1507
        %1587 = vmatpush.msra.mxu0 %v1505
        %1588 = vmatpush.msra.mxu0 %v1503
        %1589 = vmatpush.msra.mxu0 %v1501
        %1590 = vmatpush.msra.mxu0 %v1499
        %1591 = vmatpush.msra.mxu0 %v1497
        %1592 = vmatpush.msra.mxu0 %v1495
        %1593 = vmatpush.msra.mxu0 %v1493
        %1594 = vmatmul.f32.gmra.mxu0 %v1426
        %v1595 = vpop.f32.mrf.mxu0
        %v1596 = vadd.f32 %v1573, %v1595
        %1597 = vmatmul.f32.gmra.mxu0 %v1427
        %v1598 = vpop.f32.mrf.mxu0
        %v1599 = vadd.f32 %v1576, %v1598
        %1600 = vdwg.mxu0
        %1601 = vmatpush.msra.mxu0 %v1460
        %1602 = vmatpush.msra.mxu0 %v1458
        %1603 = vmatpush.msra.mxu0 %v1456
        %1604 = vmatpush.msra.mxu0 %v1454
        %1605 = vmatpush.msra.mxu0 %v1452
        %1606 = vmatpush.msra.mxu0 %v1450
        %1607 = vmatpush.msra.mxu0 %v1448
        %1608 = vmatpush.msra.mxu0 %v1446
        %1609 = vmatpush.msra.mxu0 %v1444
        %1610 = vmatpush.msra.mxu0 %v1442
        %1611 = vmatpush.msra.mxu0 %v1440
        %1612 = vmatpush.msra.mxu0 %v1438
        %1613 = vmatpush.msra.mxu0 %v1436
        %1614 = vmatpush.msra.mxu0 %v1434
        %1615 = vmatpush.msra.mxu0 %v1432
        %1616 = vmatpush.msra.mxu0 %v1430
        %1617 = vmatmul.f32.gmra.mxu0 %v1422
        %v1618 = vpop.f32.mrf.mxu0
        %v1619 = vadd.f32 %v1529, %v1618
        %1620 = vmatmul.f32.gmra.mxu0 %v1423
        %v1621 = vpop.f32.mrf.mxu0
        %v1622 = vadd.f32 %v1529, %v1621
        %1623 = vdwg.mxu0
        %1624 = vmatpush.msra.mxu0 %v1492
        %1625 = vmatpush.msra.mxu0 %v1490
        %1626 = vmatpush.msra.mxu0 %v1488
        %1627 = vmatpush.msra.mxu0 %v1486
        %1628 = vmatpush.msra.mxu0 %v1484
        %1629 = vmatpush.msra.mxu0 %v1482
        %1630 = vmatpush.msra.mxu0 %v1480
        %1631 = vmatpush.msra.mxu0 %v1478
        %1632 = vmatpush.msra.mxu0 %v1476
        %1633 = vmatpush.msra.mxu0 %v1474
        %1634 = vmatpush.msra.mxu0 %v1472
        %1635 = vmatpush.msra.mxu0 %v1470
        %1636 = vmatpush.msra.mxu0 %v1468
        %1637 = vmatpush.msra.mxu0 %v1466
        %1638 = vmatpush.msra.mxu0 %v1464
        %1639 = vmatpush.msra.mxu0 %v1462
        %1640 = vmatmul.f32.gmra.mxu0 %v1424
        %v1641 = vpop.f32.mrf.mxu0
        %v1642 = vadd.f32 %v1619, %v1641
        %1643 = vmatmul.f32.gmra.mxu0 %v1425
        %v1644 = vpop.f32.mrf.mxu0
        %v1645 = vadd.f32 %v1622, %v1644
        %1646 = vdwg.mxu0
        %1647 = vmatpush.msra.mxu0 %v1524
        %1648 = vmatpush.msra.mxu0 %v1522
        %1649 = vmatpush.msra.mxu0 %v1520
        %1650 = vmatpush.msra.mxu0 %v1518
        %1651 = vmatpush.msra.mxu0 %v1516
        %1652 = vmatpush.msra.mxu0 %v1514
        %1653 = vmatpush.msra.mxu0 %v1512
        %1654 = vmatpush.msra.mxu0 %v1510
        %1655 = vmatpush.msra.mxu0 %v1508
        %1656 = vmatpush.msra.mxu0 %v1506
        %1657 = vmatpush.msra.mxu0 %v1504
        %1658 = vmatpush.msra.mxu0 %v1502
        %1659 = vmatpush.msra.mxu0 %v1500
        %1660 = vmatpush.msra.mxu0 %v1498
        %1661 = vmatpush.msra.mxu0 %v1496
        %1662 = vmatpush.msra.mxu0 %v1494
        %1663 = vmatmul.f32.gmra.mxu0 %v1426
        %v1664 = vpop.f32.mrf.mxu0
        %v1665 = vadd.f32 %v1642, %v1664
        %1666 = vmatmul.f32.gmra.mxu0 %v1427
        %v1667 = vpop.f32.mrf.mxu0
        %v1668 = vadd.f32 %v1645, %v1667
        %1669 = vdwg.mxu0
        %v1670 = vtanh.pop %v1596
        %v1671 = vtanh.pop %v1599
        %v1672 = vxor.u32 %v1665, 2147483648
        %v1673 = vxor.u32 %v1668, 2147483648
        %v1674 = vmul.f32 %v1672, 1.442695
        %v1675 = vpow.pop %v1674
        %v1676 = vmul.f32 %v1673, 1.442695
        %v1677 = vpow.pop %v1676
        %v1678 = vadd.f32 %v1675, 1.0
        %v1679 = vadd.f32 %v1677, 1.0
        %v1680 = vrcp.pop %v1678
        %v1681 = vmul.f32 %v1678, %v1680
        %v1682 = vsub.f32 1.0, %v1681
        %v1683 = vmul.f32 %v1680, %v1682
        %v1684 = vadd.f32 %v1680, %v1683
        %vm1685 = vweird.f32 %v1678
        %vm1686 = vweird.f32 %v1680
        %vm1687 = vmor %vm1685, %vm1686
        %v1688 = vsel %vm1687, %v1680, %v1684
        %v1689 = vand.u32 2147483647, %v1678
        %vm1690 = vcmp.eq.f32.partialorder %v1689, 8.507059e+37
        %v1691 = vand.u32 %v1678, 2147483648
        %v1692 = vor.u32 1.1754944e-38, %v1691
        %v1693 = vsel %vm1690, %v1692, %v1688
        %v1694 = vmul.f32 1.0, %v1693
        %v1695 = vrcp.pop %v1679
        %v1696 = vmul.f32 %v1679, %v1695
        %v1697 = vsub.f32 1.0, %v1696
        %v1698 = vmul.f32 %v1695, %v1697
        %v1699 = vadd.f32 %v1695, %v1698
        %vm1700 = vweird.f32 %v1679
        %vm1701 = vweird.f32 %v1695
        %vm1702 = vmor %vm1700, %vm1701
        %v1703 = vsel %vm1702, %v1695, %v1699
        %v1704 = vand.u32 2147483647, %v1679
        %vm1705 = vcmp.eq.f32.partialorder %v1704, 8.507059e+37
        %v1706 = vand.u32 %v1679, 2147483648
        %v1707 = vor.u32 1.1754944e-38, %v1706
        %v1708 = vsel %vm1705, %v1707, %v1703
        %v1709 = vmul.f32 1.0, %v1708
        %v1710 = vmul.f32 %v1670, %v1694
        %v1711 = vmul.f32 %v1671, %v1709
        %s1712 = scalar_lea.vmem [#allocation13], 512
        %v1713 = vld [vmem:[%s1712] sm:$0xff]
        %v1714 = vld [vmem:[%s1712 + $0x8] sm:$0xff]
        %v1715 = vld [vmem:[%s1712 + $0x10] sm:$0xff]
        %v1716 = vld [vmem:[%s1712 + $0x18] sm:$0xff]
        %v1717 = vld [vmem:[%s1712 + $0x20] sm:$0xff]
        %v1718 = vld [vmem:[%s1712 + $0x28] sm:$0xff]
        %v1719 = vld [vmem:[%s1712 + $0x30] sm:$0xff]
        %v1720 = vld [vmem:[%s1712 + $0x38] sm:$0xff]
        %v1721 = vld [vmem:[%s1712 + $0x40] sm:$0xff]
        %v1722 = vld [vmem:[%s1712 + $0x48] sm:$0xff]
        %v1723 = vld [vmem:[%s1712 + $0x50] sm:$0xff]
        %v1724 = vld [vmem:[%s1712 + $0x58] sm:$0xff]
        %v1725 = vld [vmem:[%s1712 + $0x60] sm:$0xff]
        %v1726 = vld [vmem:[%s1712 + $0x68] sm:$0xff]
        %v1727 = vld [vmem:[%s1712 + $0x70] sm:$0xff]
        %v1728 = vld [vmem:[%s1712 + $0x78] sm:$0xff]
        %v1729 = vld [vmem:[%s1712 + $0x80] sm:$0xff]
        %v1730 = vld [vmem:[%s1712 + $0x88] sm:$0xff]
        %v1731 = vld [vmem:[%s1712 + $0x90] sm:$0xff]
        %v1732 = vld [vmem:[%s1712 + $0x98] sm:$0xff]
        %v1733 = vld [vmem:[%s1712 + $0xa0] sm:$0xff]
        %v1734 = vld [vmem:[%s1712 + $0xa8] sm:$0xff]
        %v1735 = vld [vmem:[%s1712 + $0xb0] sm:$0xff]
        %v1736 = vld [vmem:[%s1712 + $0xb8] sm:$0xff]
        %v1737 = vld [vmem:[%s1712 + $0xc0] sm:$0xff]
        %v1738 = vld [vmem:[%s1712 + $0xc8] sm:$0xff]
        %v1739 = vld [vmem:[%s1712 + $0xd0] sm:$0xff]
        %v1740 = vld [vmem:[%s1712 + $0xd8] sm:$0xff]
        %v1741 = vld [vmem:[%s1712 + $0xe0] sm:$0xff]
        %v1742 = vld [vmem:[%s1712 + $0xe8] sm:$0xff]
        %v1743 = vld [vmem:[%s1712 + $0xf0] sm:$0xff]
        %v1744 = vld [vmem:[%s1712 + $0xf8] sm:$0xff]
        %s1745 = scalar_lea.vmem [#allocation15], 4
        %v1746 = vld [vmem:[%s1745] sm:$0x3]
        %v1748 = vperm.slane %v1746, 0
        %v1749 = vperm.slane %v1746, 1
        %1752 = vmatpush.msra.mxu0 %v1743
        %1753 = vmatpush.msra.mxu0 %v1741
        %1754 = vmatpush.msra.mxu0 %v1739
        %1755 = vmatpush.msra.mxu0 %v1737
        %1756 = vmatpush.msra.mxu0 %v1735
        %1757 = vmatpush.msra.mxu0 %v1733
        %1758 = vmatpush.msra.mxu0 %v1731
        %1759 = vmatpush.msra.mxu0 %v1729
        %1760 = vmatpush.msra.mxu0 %v1727
        %1761 = vmatpush.msra.mxu0 %v1725
        %1762 = vmatpush.msra.mxu0 %v1723
        %1763 = vmatpush.msra.mxu0 %v1721
        %1764 = vmatpush.msra.mxu0 %v1719
        %1765 = vmatpush.msra.mxu0 %v1717
        %1766 = vmatpush.msra.mxu0 %v1715
        %1767 = vmatpush.msra.mxu0 %v1713
        %1768 = vmatmul.f32.gmra.mxu0 %v1710
        %v1769 = vpop.f32.mrf.mxu0
        %v1770 = vadd.f32 %v1748, %v1769
        %1771 = vmatmul.f32.gmra.mxu0 %v1711
        %v1772 = vpop.f32.mrf.mxu0
        %v1773 = vadd.f32 %v1748, %v1772
        %1774 = vdwg.mxu0
        %1775 = vmatpush.msra.mxu0 %v1744
        %1776 = vmatpush.msra.mxu0 %v1742
        %1777 = vmatpush.msra.mxu0 %v1740
        %1778 = vmatpush.msra.mxu0 %v1738
        %1779 = vmatpush.msra.mxu0 %v1736
        %1780 = vmatpush.msra.mxu0 %v1734
        %1781 = vmatpush.msra.mxu0 %v1732
        %1782 = vmatpush.msra.mxu0 %v1730
        %1783 = vmatpush.msra.mxu0 %v1728
        %1784 = vmatpush.msra.mxu0 %v1726
        %1785 = vmatpush.msra.mxu0 %v1724
        %1786 = vmatpush.msra.mxu0 %v1722
        %1787 = vmatpush.msra.mxu0 %v1720
        %1788 = vmatpush.msra.mxu0 %v1718
        %1789 = vmatpush.msra.mxu0 %v1716
        %1790 = vmatpush.msra.mxu0 %v1714
        %1791 = vmatmul.f32.gmra.mxu0 %v1710
        %v1792 = vpop.f32.mrf.mxu0
        %v1793 = vadd.f32 %v1749, %v1792
        %1794 = vmatmul.f32.gmra.mxu0 %v1711
        %v1795 = vpop.f32.mrf.mxu0
        %v1796 = vadd.f32 %v1749, %v1795
        %1797 = vdwg.mxu0
        %v1798 = vadd.f32 %v1770, %v1410
        %v1799 = vadd.f32 %v1773, %v1411
        %v1800 = vmul.f32 %v1798, 0.70710677
        %v1801 = vmul.f32 %v1799, 0.70710677
        %v1802 = vadd.f32 %v1414, %v1793
        %v1803 = vadd.f32 %v1415, %v1796
        %v1804 = vmul.f32 %v1802, 0.70710677
        %v1805 = vmul.f32 %v1803, 0.70710677
        %v1806 = vld [vmem:[#allocation3 + $0x18] sm:$0xff]
        %v1807 = vld [vmem:[#allocation3 + $0x20] sm:$0xff]
        %1808 = vst [vmem:[#allocation2 + $0x10] sm:$0xff] %v1806
        %1809 = vst [vmem:[#allocation2 + $0x18] sm:$0xff] %v1807
        %1810 = vst [vmem:[#allocation2 + $0x20] sm:$0xff] %v1800
        %1811 = vst [vmem:[#allocation2 + $0x28] sm:$0xff] %v1801
        %v1812 = vld [vmem:[#allocation2 + $0x20] sm:$0xff]
        %v1813 = vld [vmem:[#allocation2 + $0x28] sm:$0xff]
        %1814 = vst [vmem:[#allocation3 + $0x18] sm:$0xff] %v1812
        %1815 = vst [vmem:[#allocation3 + $0x20] sm:$0xff] %v1813
        %v1816 = vld [vmem:[#allocation2 + $0x10] sm:$0xff]
        %v1817 = vld [vmem:[#allocation2 + $0x18] sm:$0xff]
        %v1818 = vld [vmem:[#allocation2 + $0x20] sm:$0xff]
        %v1819 = vld [vmem:[#allocation2 + $0x20] sm:$0xff]
        %v1820 = vld [vmem:[#allocation2 + $0x28] sm:$0xff]
        %s1821 = scalar_lea.vmem [#allocation10], 2304
        %v1822 = vld [vmem:[%s1821] sm:$0xff]
        %v1823 = vld [vmem:[%s1821 + $0x8] sm:$0xff]
        %v1824 = vld [vmem:[%s1821 + $0x10] sm:$0xff]
        %v1825 = vld [vmem:[%s1821 + $0x18] sm:$0xff]
        %v1826 = vld [vmem:[%s1821 + $0x20] sm:$0xff]
        %v1827 = vld [vmem:[%s1821 + $0x28] sm:$0xff]
        %v1828 = vld [vmem:[%s1821 + $0x30] sm:$0xff]
        %v1829 = vld [vmem:[%s1821 + $0x38] sm:$0xff]
        %v1830 = vld [vmem:[%s1821 + $0x40] sm:$0xff]
        %v1831 = vld [vmem:[%s1821 + $0x48] sm:$0xff]
        %v1832 = vld [vmem:[%s1821 + $0x50] sm:$0xff]
        %v1833 = vld [vmem:[%s1821 + $0x58] sm:$0xff]
        %v1834 = vld [vmem:[%s1821 + $0x60] sm:$0xff]
        %v1835 = vld [vmem:[%s1821 + $0x68] sm:$0xff]
        %v1836 = vld [vmem:[%s1821 + $0x70] sm:$0xff]
        %v1837 = vld [vmem:[%s1821 + $0x78] sm:$0xff]
        %v1838 = vld [vmem:[%s1821 + $0x80] sm:$0xff]
        %v1839 = vld [vmem:[%s1821 + $0x88] sm:$0xff]
        %v1840 = vld [vmem:[%s1821 + $0x90] sm:$0xff]
        %v1841 = vld [vmem:[%s1821 + $0x98] sm:$0xff]
        %v1842 = vld [vmem:[%s1821 + $0xa0] sm:$0xff]
        %v1843 = vld [vmem:[%s1821 + $0xa8] sm:$0xff]
        %v1844 = vld [vmem:[%s1821 + $0xb0] sm:$0xff]
        %v1845 = vld [vmem:[%s1821 + $0xb8] sm:$0xff]
        %v1846 = vld [vmem:[%s1821 + $0xc0] sm:$0xff]
        %v1847 = vld [vmem:[%s1821 + $0xc8] sm:$0xff]
        %v1848 = vld [vmem:[%s1821 + $0xd0] sm:$0xff]
        %v1849 = vld [vmem:[%s1821 + $0xd8] sm:$0xff]
        %v1850 = vld [vmem:[%s1821 + $0xe0] sm:$0xff]
        %v1851 = vld [vmem:[%s1821 + $0xe8] sm:$0xff]
        %v1852 = vld [vmem:[%s1821 + $0xf0] sm:$0xff]
        %v1853 = vld [vmem:[%s1821 + $0xf8] sm:$0xff]
        %v1854 = vld [vmem:[%s1821 + $0x100] sm:$0xff]
        %v1855 = vld [vmem:[%s1821 + $0x108] sm:$0xff]
        %v1856 = vld [vmem:[%s1821 + $0x110] sm:$0xff]
        %v1857 = vld [vmem:[%s1821 + $0x118] sm:$0xff]
        %v1858 = vld [vmem:[%s1821 + $0x120] sm:$0xff]
        %v1859 = vld [vmem:[%s1821 + $0x128] sm:$0xff]
        %v1860 = vld [vmem:[%s1821 + $0x130] sm:$0xff]
        %v1861 = vld [vmem:[%s1821 + $0x138] sm:$0xff]
        %v1862 = vld [vmem:[%s1821 + $0x140] sm:$0xff]
        %v1863 = vld [vmem:[%s1821 + $0x148] sm:$0xff]
        %v1864 = vld [vmem:[%s1821 + $0x150] sm:$0xff]
        %v1865 = vld [vmem:[%s1821 + $0x158] sm:$0xff]
        %v1866 = vld [vmem:[%s1821 + $0x160] sm:$0xff]
        %v1867 = vld [vmem:[%s1821 + $0x168] sm:$0xff]
        %v1868 = vld [vmem:[%s1821 + $0x170] sm:$0xff]
        %v1869 = vld [vmem:[%s1821 + $0x178] sm:$0xff]
        %v1870 = vld [vmem:[%s1821 + $0x180] sm:$0xff]
        %v1871 = vld [vmem:[%s1821 + $0x188] sm:$0xff]
        %v1872 = vld [vmem:[%s1821 + $0x190] sm:$0xff]
        %v1873 = vld [vmem:[%s1821 + $0x198] sm:$0xff]
        %v1874 = vld [vmem:[%s1821 + $0x1a0] sm:$0xff]
        %v1875 = vld [vmem:[%s1821 + $0x1a8] sm:$0xff]
        %v1876 = vld [vmem:[%s1821 + $0x1b0] sm:$0xff]
        %v1877 = vld [vmem:[%s1821 + $0x1b8] sm:$0xff]
        %v1878 = vld [vmem:[%s1821 + $0x1c0] sm:$0xff]
        %v1879 = vld [vmem:[%s1821 + $0x1c8] sm:$0xff]
        %v1880 = vld [vmem:[%s1821 + $0x1d0] sm:$0xff]
        %v1881 = vld [vmem:[%s1821 + $0x1d8] sm:$0xff]
        %v1882 = vld [vmem:[%s1821 + $0x1e0] sm:$0xff]
        %v1883 = vld [vmem:[%s1821 + $0x1e8] sm:$0xff]
        %v1884 = vld [vmem:[%s1821 + $0x1f0] sm:$0xff]
        %v1885 = vld [vmem:[%s1821 + $0x1f8] sm:$0xff]
        %v1886 = vld [vmem:[%s1821 + $0x200] sm:$0xff]
        %v1887 = vld [vmem:[%s1821 + $0x208] sm:$0xff]
        %v1888 = vld [vmem:[%s1821 + $0x210] sm:$0xff]
        %v1889 = vld [vmem:[%s1821 + $0x218] sm:$0xff]
        %v1890 = vld [vmem:[%s1821 + $0x220] sm:$0xff]
        %v1891 = vld [vmem:[%s1821 + $0x228] sm:$0xff]
        %v1892 = vld [vmem:[%s1821 + $0x230] sm:$0xff]
        %v1893 = vld [vmem:[%s1821 + $0x238] sm:$0xff]
        %v1894 = vld [vmem:[%s1821 + $0x240] sm:$0xff]
        %v1895 = vld [vmem:[%s1821 + $0x248] sm:$0xff]
        %v1896 = vld [vmem:[%s1821 + $0x250] sm:$0xff]
        %v1897 = vld [vmem:[%s1821 + $0x258] sm:$0xff]
        %v1898 = vld [vmem:[%s1821 + $0x260] sm:$0xff]
        %v1899 = vld [vmem:[%s1821 + $0x268] sm:$0xff]
        %v1900 = vld [vmem:[%s1821 + $0x270] sm:$0xff]
        %v1901 = vld [vmem:[%s1821 + $0x278] sm:$0xff]
        %v1902 = vld [vmem:[%s1821 + $0x280] sm:$0xff]
        %v1903 = vld [vmem:[%s1821 + $0x288] sm:$0xff]
        %v1904 = vld [vmem:[%s1821 + $0x290] sm:$0xff]
        %v1905 = vld [vmem:[%s1821 + $0x298] sm:$0xff]
        %v1906 = vld [vmem:[%s1821 + $0x2a0] sm:$0xff]
        %v1907 = vld [vmem:[%s1821 + $0x2a8] sm:$0xff]
        %v1908 = vld [vmem:[%s1821 + $0x2b0] sm:$0xff]
        %v1909 = vld [vmem:[%s1821 + $0x2b8] sm:$0xff]
        %v1910 = vld [vmem:[%s1821 + $0x2c0] sm:$0xff]
        %v1911 = vld [vmem:[%s1821 + $0x2c8] sm:$0xff]
        %v1912 = vld [vmem:[%s1821 + $0x2d0] sm:$0xff]
        %v1913 = vld [vmem:[%s1821 + $0x2d8] sm:$0xff]
        %v1914 = vld [vmem:[%s1821 + $0x2e0] sm:$0xff]
        %v1915 = vld [vmem:[%s1821 + $0x2e8] sm:$0xff]
        %v1916 = vld [vmem:[%s1821 + $0x2f0] sm:$0xff]
        %v1917 = vld [vmem:[%s1821 + $0x2f8] sm:$0xff]
        %s1918 = scalar_lea.vmem [#allocation12], 6
        %v1919 = vld [vmem:[%s1918] sm:$0x3]
        %v1921 = vperm.slane %v1919, 0
        %v1922 = vperm.slane %v1919, 1
        %1925 = vmatpush.msra.mxu0 %v1852
        %1926 = vmatpush.msra.mxu0 %v1850
        %1927 = vmatpush.msra.mxu0 %v1848
        %1928 = vmatpush.msra.mxu0 %v1846
        %1929 = vmatpush.msra.mxu0 %v1844
        %1930 = vmatpush.msra.mxu0 %v1842
        %1931 = vmatpush.msra.mxu0 %v1840
        %1932 = vmatpush.msra.mxu0 %v1838
        %1933 = vmatpush.msra.mxu0 %v1836
        %1934 = vmatpush.msra.mxu0 %v1834
        %1935 = vmatpush.msra.mxu0 %v1832
        %1936 = vmatpush.msra.mxu0 %v1830
        %1937 = vmatpush.msra.mxu0 %v1828
        %1938 = vmatpush.msra.mxu0 %v1826
        %1939 = vmatpush.msra.mxu0 %v1824
        %1940 = vmatpush.msra.mxu0 %v1822
        %1941 = vmatmul.f32.gmra.mxu0 %v1816
        %v1942 = vpop.f32.mrf.mxu0
        %v1943 = vadd.f32 %v1921, %v1942
        %1944 = vmatmul.f32.gmra.mxu0 %v1817
        %v1945 = vpop.f32.mrf.mxu0
        %v1946 = vadd.f32 %v1921, %v1945
        %1947 = vdwg.mxu0
        %1948 = vmatpush.msra.mxu0 %v1884
        %1949 = vmatpush.msra.mxu0 %v1882
        %1950 = vmatpush.msra.mxu0 %v1880
        %1951 = vmatpush.msra.mxu0 %v1878
        %1952 = vmatpush.msra.mxu0 %v1876
        %1953 = vmatpush.msra.mxu0 %v1874
        %1954 = vmatpush.msra.mxu0 %v1872
        %1955 = vmatpush.msra.mxu0 %v1870
        %1956 = vmatpush.msra.mxu0 %v1868
        %1957 = vmatpush.msra.mxu0 %v1866
        %1958 = vmatpush.msra.mxu0 %v1864
        %1959 = vmatpush.msra.mxu0 %v1862
        %1960 = vmatpush.msra.mxu0 %v1860
        %1961 = vmatpush.msra.mxu0 %v1858
        %1962 = vmatpush.msra.mxu0 %v1856
        %1963 = vmatpush.msra.mxu0 %v1854
        %1964 = vmatmul.f32.gmra.mxu0 %v1817
        %v1965 = vpop.f32.mrf.mxu0
        %v1966 = vadd.f32 %v1943, %v1965
        %1967 = vmatmul.f32.gmra.mxu0 %v1818
        %v1968 = vpop.f32.mrf.mxu0
        %v1969 = vadd.f32 %v1946, %v1968
        %1970 = vdwg.mxu0
        %1971 = vmatpush.msra.mxu0 %v1916
        %1972 = vmatpush.msra.mxu0 %v1914
        %1973 = vmatpush.msra.mxu0 %v1912
        %1974 = vmatpush.msra.mxu0 %v1910
        %1975 = vmatpush.msra.mxu0 %v1908
        %1976 = vmatpush.msra.mxu0 %v1906
        %1977 = vmatpush.msra.mxu0 %v1904
        %1978 = vmatpush.msra.mxu0 %v1902
        %1979 = vmatpush.msra.mxu0 %v1900
        %1980 = vmatpush.msra.mxu0 %v1898
        %1981 = vmatpush.msra.mxu0 %v1896
        %1982 = vmatpush.msra.mxu0 %v1894
        %1983 = vmatpush.msra.mxu0 %v1892
        %1984 = vmatpush.msra.mxu0 %v1890
        %1985 = vmatpush.msra.mxu0 %v1888
        %1986 = vmatpush.msra.mxu0 %v1886
        %1987 = vmatmul.f32.gmra.mxu0 %v1819
        %v1988 = vpop.f32.mrf.mxu0
        %v1989 = vadd.f32 %v1966, %v1988
        %1990 = vmatmul.f32.gmra.mxu0 %v1820
        %v1991 = vpop.f32.mrf.mxu0
        %v1992 = vadd.f32 %v1969, %v1991
        %1993 = vdwg.mxu0
        %1994 = vmatpush.msra.mxu0 %v1853
        %1995 = vmatpush.msra.mxu0 %v1851
        %1996 = vmatpush.msra.mxu0 %v1849
        %1997 = vmatpush.msra.mxu0 %v1847
        %1998 = vmatpush.msra.mxu0 %v1845
        %1999 = vmatpush.msra.mxu0 %v1843
        %2000 = vmatpush.msra.mxu0 %v1841
        %2001 = vmatpush.msra.mxu0 %v1839
        %2002 = vmatpush.msra.mxu0 %v1837
        %2003 = vmatpush.msra.mxu0 %v1835
        %2004 = vmatpush.msra.mxu0 %v1833
        %2005 = vmatpush.msra.mxu0 %v1831
        %2006 = vmatpush.msra.mxu0 %v1829
        %2007 = vmatpush.msra.mxu0 %v1827
        %2008 = vmatpush.msra.mxu0 %v1825
        %2009 = vmatpush.msra.mxu0 %v1823
        %2010 = vmatmul.f32.gmra.mxu0 %v1816
        %v2011 = vpop.f32.mrf.mxu0
        %v2012 = vadd.f32 %v1922, %v2011
        %2013 = vmatmul.f32.gmra.mxu0 %v1817
        %v2014 = vpop.f32.mrf.mxu0
        %v2015 = vadd.f32 %v1922, %v2014
        %2016 = vdwg.mxu0
        %2017 = vmatpush.msra.mxu0 %v1885
        %2018 = vmatpush.msra.mxu0 %v1883
        %2019 = vmatpush.msra.mxu0 %v1881
        %2020 = vmatpush.msra.mxu0 %v1879
        %2021 = vmatpush.msra.mxu0 %v1877
        %2022 = vmatpush.msra.mxu0 %v1875
        %2023 = vmatpush.msra.mxu0 %v1873
        %2024 = vmatpush.msra.mxu0 %v1871
        %2025 = vmatpush.msra.mxu0 %v1869
        %2026 = vmatpush.msra.mxu0 %v1867
        %2027 = vmatpush.msra.mxu0 %v1865
        %2028 = vmatpush.msra.mxu0 %v1863
        %2029 = vmatpush.msra.mxu0 %v1861
        %2030 = vmatpush.msra.mxu0 %v1859
        %2031 = vmatpush.msra.mxu0 %v1857
        %2032 = vmatpush.msra.mxu0 %v1855
        %2033 = vmatmul.f32.gmra.mxu0 %v1817
        %v2034 = vpop.f32.mrf.mxu0
        %v2035 = vadd.f32 %v2012, %v2034
        %2036 = vmatmul.f32.gmra.mxu0 %v1818
        %v2037 = vpop.f32.mrf.mxu0
        %v2038 = vadd.f32 %v2015, %v2037
        %2039 = vdwg.mxu0
        %2040 = vmatpush.msra.mxu0 %v1917
        %2041 = vmatpush.msra.mxu0 %v1915
        %2042 = vmatpush.msra.mxu0 %v1913
        %2043 = vmatpush.msra.mxu0 %v1911
        %2044 = vmatpush.msra.mxu0 %v1909
        %2045 = vmatpush.msra.mxu0 %v1907
        %2046 = vmatpush.msra.mxu0 %v1905
        %2047 = vmatpush.msra.mxu0 %v1903
        %2048 = vmatpush.msra.mxu0 %v1901
        %2049 = vmatpush.msra.mxu0 %v1899
        %2050 = vmatpush.msra.mxu0 %v1897
        %2051 = vmatpush.msra.mxu0 %v1895
        %2052 = vmatpush.msra.mxu0 %v1893
        %2053 = vmatpush.msra.mxu0 %v1891
        %2054 = vmatpush.msra.mxu0 %v1889
        %2055 = vmatpush.msra.mxu0 %v1887
        %2056 = vmatmul.f32.gmra.mxu0 %v1819
        %v2057 = vpop.f32.mrf.mxu0
        %v2058 = vadd.f32 %v2035, %v2057
        %2059 = vmatmul.f32.gmra.mxu0 %v1820
        %v2060 = vpop.f32.mrf.mxu0
        %v2061 = vadd.f32 %v2038, %v2060
        %2062 = vdwg.mxu0
        %v2063 = vtanh.pop %v1989
        %v2064 = vtanh.pop %v1992
        %v2065 = vxor.u32 %v2058, 2147483648
        %v2066 = vxor.u32 %v2061, 2147483648
        %v2067 = vmul.f32 %v2065, 1.442695
        %v2068 = vpow.pop %v2067
        %v2069 = vmul.f32 %v2066, 1.442695
        %v2070 = vpow.pop %v2069
        %v2071 = vadd.f32 %v2068, 1.0
        %v2072 = vadd.f32 %v2070, 1.0
        %v2073 = vrcp.pop %v2071
        %v2074 = vmul.f32 %v2071, %v2073
        %v2075 = vsub.f32 1.0, %v2074
        %v2076 = vmul.f32 %v2073, %v2075
        %v2077 = vadd.f32 %v2073, %v2076
        %vm2078 = vweird.f32 %v2071
        %vm2079 = vweird.f32 %v2073
        %vm2080 = vmor %vm2078, %vm2079
        %v2081 = vsel %vm2080, %v2073, %v2077
        %v2082 = vand.u32 2147483647, %v2071
        %vm2083 = vcmp.eq.f32.partialorder %v2082, 8.507059e+37
        %v2084 = vand.u32 %v2071, 2147483648
        %v2085 = vor.u32 1.1754944e-38, %v2084
        %v2086 = vsel %vm2083, %v2085, %v2081
        %v2087 = vmul.f32 1.0, %v2086
        %v2088 = vrcp.pop %v2072
        %v2089 = vmul.f32 %v2072, %v2088
        %v2090 = vsub.f32 1.0, %v2089
        %v2091 = vmul.f32 %v2088, %v2090
        %v2092 = vadd.f32 %v2088, %v2091
        %vm2093 = vweird.f32 %v2072
        %vm2094 = vweird.f32 %v2088
        %vm2095 = vmor %vm2093, %vm2094
        %v2096 = vsel %vm2095, %v2088, %v2092
        %v2097 = vand.u32 2147483647, %v2072
        %vm2098 = vcmp.eq.f32.partialorder %v2097, 8.507059e+37
        %v2099 = vand.u32 %v2072, 2147483648
        %v2100 = vor.u32 1.1754944e-38, %v2099
        %v2101 = vsel %vm2098, %v2100, %v2096
        %v2102 = vmul.f32 1.0, %v2101
        %v2103 = vmul.f32 %v2063, %v2087
        %v2104 = vmul.f32 %v2064, %v2102
        %s2105 = scalar_lea.vmem [#allocation13], 768
        %v2106 = vld [vmem:[%s2105] sm:$0xff]
        %v2107 = vld [vmem:[%s2105 + $0x8] sm:$0xff]
        %v2108 = vld [vmem:[%s2105 + $0x10] sm:$0xff]
        %v2109 = vld [vmem:[%s2105 + $0x18] sm:$0xff]
        %v2110 = vld [vmem:[%s2105 + $0x20] sm:$0xff]
        %v2111 = vld [vmem:[%s2105 + $0x28] sm:$0xff]
        %v2112 = vld [vmem:[%s2105 + $0x30] sm:$0xff]
        %v2113 = vld [vmem:[%s2105 + $0x38] sm:$0xff]
        %v2114 = vld [vmem:[%s2105 + $0x40] sm:$0xff]
        %v2115 = vld [vmem:[%s2105 + $0x48] sm:$0xff]
        %v2116 = vld [vmem:[%s2105 + $0x50] sm:$0xff]
        %v2117 = vld [vmem:[%s2105 + $0x58] sm:$0xff]
        %v2118 = vld [vmem:[%s2105 + $0x60] sm:$0xff]
        %v2119 = vld [vmem:[%s2105 + $0x68] sm:$0xff]
        %v2120 = vld [vmem:[%s2105 + $0x70] sm:$0xff]
        %v2121 = vld [vmem:[%s2105 + $0x78] sm:$0xff]
        %v2122 = vld [vmem:[%s2105 + $0x80] sm:$0xff]
        %v2123 = vld [vmem:[%s2105 + $0x88] sm:$0xff]
        %v2124 = vld [vmem:[%s2105 + $0x90] sm:$0xff]
        %v2125 = vld [vmem:[%s2105 + $0x98] sm:$0xff]
        %v2126 = vld [vmem:[%s2105 + $0xa0] sm:$0xff]
        %v2127 = vld [vmem:[%s2105 + $0xa8] sm:$0xff]
        %v2128 = vld [vmem:[%s2105 + $0xb0] sm:$0xff]
        %v2129 = vld [vmem:[%s2105 + $0xb8] sm:$0xff]
        %v2130 = vld [vmem:[%s2105 + $0xc0] sm:$0xff]
        %v2131 = vld [vmem:[%s2105 + $0xc8] sm:$0xff]
        %v2132 = vld [vmem:[%s2105 + $0xd0] sm:$0xff]
        %v2133 = vld [vmem:[%s2105 + $0xd8] sm:$0xff]
        %v2134 = vld [vmem:[%s2105 + $0xe0] sm:$0xff]
        %v2135 = vld [vmem:[%s2105 + $0xe8] sm:$0xff]
        %v2136 = vld [vmem:[%s2105 + $0xf0] sm:$0xff]
        %v2137 = vld [vmem:[%s2105 + $0xf8] sm:$0xff]
        %s2138 = scalar_lea.vmem [#allocation15], 6
        %v2139 = vld [vmem:[%s2138] sm:$0x3]
        %v2141 = vperm.slane %v2139, 0
        %v2142 = vperm.slane %v2139, 1
        %2145 = vmatpush.msra.mxu0 %v2136
        %2146 = vmatpush.msra.mxu0 %v2134
        %2147 = vmatpush.msra.mxu0 %v2132
        %2148 = vmatpush.msra.mxu0 %v2130
        %2149 = vmatpush.msra.mxu0 %v2128
        %2150 = vmatpush.msra.mxu0 %v2126
        %2151 = vmatpush.msra.mxu0 %v2124
        %2152 = vmatpush.msra.mxu0 %v2122
        %2153 = vmatpush.msra.mxu0 %v2120
        %2154 = vmatpush.msra.mxu0 %v2118
        %2155 = vmatpush.msra.mxu0 %v2116
        %2156 = vmatpush.msra.mxu0 %v2114
        %2157 = vmatpush.msra.mxu0 %v2112
        %2158 = vmatpush.msra.mxu0 %v2110
        %2159 = vmatpush.msra.mxu0 %v2108
        %2160 = vmatpush.msra.mxu0 %v2106
        %2161 = vmatmul.f32.gmra.mxu0 %v2103
        %v2162 = vpop.f32.mrf.mxu0
        %v2163 = vadd.f32 %v2141, %v2162
        %2164 = vmatmul.f32.gmra.mxu0 %v2104
        %v2165 = vpop.f32.mrf.mxu0
        %v2166 = vadd.f32 %v2141, %v2165
        %2167 = vdwg.mxu0
        %2168 = vmatpush.msra.mxu0 %v2137
        %2169 = vmatpush.msra.mxu0 %v2135
        %2170 = vmatpush.msra.mxu0 %v2133
        %2171 = vmatpush.msra.mxu0 %v2131
        %2172 = vmatpush.msra.mxu0 %v2129
        %2173 = vmatpush.msra.mxu0 %v2127
        %2174 = vmatpush.msra.mxu0 %v2125
        %2175 = vmatpush.msra.mxu0 %v2123
        %2176 = vmatpush.msra.mxu0 %v2121
        %2177 = vmatpush.msra.mxu0 %v2119
        %2178 = vmatpush.msra.mxu0 %v2117
        %2179 = vmatpush.msra.mxu0 %v2115
        %2180 = vmatpush.msra.mxu0 %v2113
        %2181 = vmatpush.msra.mxu0 %v2111
        %2182 = vmatpush.msra.mxu0 %v2109
        %2183 = vmatpush.msra.mxu0 %v2107
        %2184 = vmatmul.f32.gmra.mxu0 %v2103
        %v2185 = vpop.f32.mrf.mxu0
        %v2186 = vadd.f32 %v2142, %v2185
        %2187 = vmatmul.f32.gmra.mxu0 %v2104
        %v2188 = vpop.f32.mrf.mxu0
        %v2189 = vadd.f32 %v2142, %v2188
        %2190 = vdwg.mxu0
        %v2191 = vadd.f32 %v2163, %v1800
        %v2192 = vadd.f32 %v2166, %v1801
        %v2193 = vmul.f32 %v2191, 0.70710677
        %v2194 = vmul.f32 %v2192, 0.70710677
        %v2195 = vadd.f32 %v1804, %v2186
        %v2196 = vadd.f32 %v1805, %v2189
        %v2197 = vmul.f32 %v2195, 0.70710677
        %v2198 = vmul.f32 %v2196, 0.70710677
        %v2199 = vld [vmem:[#allocation3 + $0x28] sm:$0xff]
        %v2200 = vld [vmem:[#allocation3 + $0x30] sm:$0xff]
        %v2201 = vld [vmem:[#allocation3 + $0x38] sm:$0xff]
        %v2202 = vld [vmem:[#allocation3 + $0x40] sm:$0xff]
        %2203 = vst [vmem:[#allocation2] sm:$0xff] %v2199
        %2204 = vst [vmem:[#allocation2 + $0x8] sm:$0xff] %v2200
        %2205 = vst [vmem:[#allocation2 + $0x10] sm:$0xff] %v2201
        %2206 = vst [vmem:[#allocation2 + $0x18] sm:$0xff] %v2202
        %2207 = vst [vmem:[#allocation2 + $0x20] sm:$0xff] %v2193
        %2208 = vst [vmem:[#allocation2 + $0x28] sm:$0xff] %v2194
        %v2209 = vld [vmem:[#allocation2 + $0x10] sm:$0xff]
        %v2210 = vld [vmem:[#allocation2 + $0x18] sm:$0xff]
        %v2211 = vld [vmem:[#allocation2 + $0x20] sm:$0xff]
        %v2212 = vld [vmem:[#allocation2 + $0x28] sm:$0xff]
        %2213 = vst [vmem:[#allocation3 + $0x28] sm:$0xff] %v2209
        %2214 = vst [vmem:[#allocation3 + $0x30] sm:$0xff] %v2210
        %2215 = vst [vmem:[#allocation3 + $0x38] sm:$0xff] %v2211
        %2216 = vst [vmem:[#allocation3 + $0x40] sm:$0xff] %v2212
        %v2217 = vld [vmem:[#allocation2] sm:$0xff]
        %v2218 = vld [vmem:[#allocation2 + $0x8] sm:$0xff]
        %v2219 = vld [vmem:[#allocation2 + $0x10] sm:$0xff]
        %v2220 = vld [vmem:[#allocation2 + $0x18] sm:$0xff]
        %v2221 = vld [vmem:[#allocation2 + $0x20] sm:$0xff]
        %v2222 = vld [vmem:[#allocation2 + $0x28] sm:$0xff]
        %s2223 = scalar_lea.vmem [#allocation10], 3072
        %v2224 = vld [vmem:[%s2223] sm:$0xff]
        %v2225 = vld [vmem:[%s2223 + $0x8] sm:$0xff]
        %v2226 = vld [vmem:[%s2223 + $0x10] sm:$0xff]
        %v2227 = vld [vmem:[%s2223 + $0x18] sm:$0xff]
        %v2228 = vld [vmem:[%s2223 + $0x20] sm:$0xff]
        %v2229 = vld [vmem:[%s2223 + $0x28] sm:$0xff]
        %v2230 = vld [vmem:[%s2223 + $0x30] sm:$0xff]
        %v2231 = vld [vmem:[%s2223 + $0x38] sm:$0xff]
        %v2232 = vld [vmem:[%s2223 + $0x40] sm:$0xff]
        %v2233 = vld [vmem:[%s2223 + $0x48] sm:$0xff]
        %v2234 = vld [vmem:[%s2223 + $0x50] sm:$0xff]
        %v2235 = vld [vmem:[%s2223 + $0x58] sm:$0xff]
        %v2236 = vld [vmem:[%s2223 + $0x60] sm:$0xff]
        %v2237 = vld [vmem:[%s2223 + $0x68] sm:$0xff]
        %v2238 = vld [vmem:[%s2223 + $0x70] sm:$0xff]
        %v2239 = vld [vmem:[%s2223 + $0x78] sm:$0xff]
        %v2240 = vld [vmem:[%s2223 + $0x80] sm:$0xff]
        %v2241 = vld [vmem:[%s2223 + $0x88] sm:$0xff]
        %v2242 = vld [vmem:[%s2223 + $0x90] sm:$0xff]
        %v2243 = vld [vmem:[%s2223 + $0x98] sm:$0xff]
        %v2244 = vld [vmem:[%s2223 + $0xa0] sm:$0xff]
        %v2245 = vld [vmem:[%s2223 + $0xa8] sm:$0xff]
        %v2246 = vld [vmem:[%s2223 + $0xb0] sm:$0xff]
        %v2247 = vld [vmem:[%s2223 + $0xb8] sm:$0xff]
        %v2248 = vld [vmem:[%s2223 + $0xc0] sm:$0xff]
        %v2249 = vld [vmem:[%s2223 + $0xc8] sm:$0xff]
        %v2250 = vld [vmem:[%s2223 + $0xd0] sm:$0xff]
        %v2251 = vld [vmem:[%s2223 + $0xd8] sm:$0xff]
        %v2252 = vld [vmem:[%s2223 + $0xe0] sm:$0xff]
        %v2253 = vld [vmem:[%s2223 + $0xe8] sm:$0xff]
        %v2254 = vld [vmem:[%s2223 + $0xf0] sm:$0xff]
        %v2255 = vld [vmem:[%s2223 + $0xf8] sm:$0xff]
        %v2256 = vld [vmem:[%s2223 + $0x100] sm:$0xff]
        %v2257 = vld [vmem:[%s2223 + $0x108] sm:$0xff]
        %v2258 = vld [vmem:[%s2223 + $0x110] sm:$0xff]
        %v2259 = vld [vmem:[%s2223 + $0x118] sm:$0xff]
        %v2260 = vld [vmem:[%s2223 + $0x120] sm:$0xff]
        %v2261 = vld [vmem:[%s2223 + $0x128] sm:$0xff]
        %v2262 = vld [vmem:[%s2223 + $0x130] sm:$0xff]
        %v2263 = vld [vmem:[%s2223 + $0x138] sm:$0xff]
        %v2264 = vld [vmem:[%s2223 + $0x140] sm:$0xff]
        %v2265 = vld [vmem:[%s2223 + $0x148] sm:$0xff]
        %v2266 = vld [vmem:[%s2223 + $0x150] sm:$0xff]
        %v2267 = vld [vmem:[%s2223 + $0x158] sm:$0xff]
        %v2268 = vld [vmem:[%s2223 + $0x160] sm:$0xff]
        %v2269 = vld [vmem:[%s2223 + $0x168] sm:$0xff]
        %v2270 = vld [vmem:[%s2223 + $0x170] sm:$0xff]
        %v2271 = vld [vmem:[%s2223 + $0x178] sm:$0xff]
        %v2272 = vld [vmem:[%s2223 + $0x180] sm:$0xff]
        %v2273 = vld [vmem:[%s2223 + $0x188] sm:$0xff]
        %v2274 = vld [vmem:[%s2223 + $0x190] sm:$0xff]
        %v2275 = vld [vmem:[%s2223 + $0x198] sm:$0xff]
        %v2276 = vld [vmem:[%s2223 + $0x1a0] sm:$0xff]
        %v2277 = vld [vmem:[%s2223 + $0x1a8] sm:$0xff]
        %v2278 = vld [vmem:[%s2223 + $0x1b0] sm:$0xff]
        %v2279 = vld [vmem:[%s2223 + $0x1b8] sm:$0xff]
        %v2280 = vld [vmem:[%s2223 + $0x1c0] sm:$0xff]
        %v2281 = vld [vmem:[%s2223 + $0x1c8] sm:$0xff]
        %v2282 = vld [vmem:[%s2223 + $0x1d0] sm:$0xff]
        %v2283 = vld [vmem:[%s2223 + $0x1d8] sm:$0xff]
        %v2284 = vld [vmem:[%s2223 + $0x1e0] sm:$0xff]
        %v2285 = vld [vmem:[%s2223 + $0x1e8] sm:$0xff]
        %v2286 = vld [vmem:[%s2223 + $0x1f0] sm:$0xff]
        %v2287 = vld [vmem:[%s2223 + $0x1f8] sm:$0xff]
        %v2288 = vld [vmem:[%s2223 + $0x200] sm:$0xff]
        %v2289 = vld [vmem:[%s2223 + $0x208] sm:$0xff]
        %v2290 = vld [vmem:[%s2223 + $0x210] sm:$0xff]
        %v2291 = vld [vmem:[%s2223 + $0x218] sm:$0xff]
        %v2292 = vld [vmem:[%s2223 + $0x220] sm:$0xff]
        %v2293 = vld [vmem:[%s2223 + $0x228] sm:$0xff]
        %v2294 = vld [vmem:[%s2223 + $0x230] sm:$0xff]
        %v2295 = vld [vmem:[%s2223 + $0x238] sm:$0xff]
        %v2296 = vld [vmem:[%s2223 + $0x240] sm:$0xff]
        %v2297 = vld [vmem:[%s2223 + $0x248] sm:$0xff]
        %v2298 = vld [vmem:[%s2223 + $0x250] sm:$0xff]
        %v2299 = vld [vmem:[%s2223 + $0x258] sm:$0xff]
        %v2300 = vld [vmem:[%s2223 + $0x260] sm:$0xff]
        %v2301 = vld [vmem:[%s2223 + $0x268] sm:$0xff]
        %v2302 = vld [vmem:[%s2223 + $0x270] sm:$0xff]
        %v2303 = vld [vmem:[%s2223 + $0x278] sm:$0xff]
        %v2304 = vld [vmem:[%s2223 + $0x280] sm:$0xff]
        %v2305 = vld [vmem:[%s2223 + $0x288] sm:$0xff]
        %v2306 = vld [vmem:[%s2223 + $0x290] sm:$0xff]
        %v2307 = vld [vmem:[%s2223 + $0x298] sm:$0xff]
        %v2308 = vld [vmem:[%s2223 + $0x2a0] sm:$0xff]
        %v2309 = vld [vmem:[%s2223 + $0x2a8] sm:$0xff]
        %v2310 = vld [vmem:[%s2223 + $0x2b0] sm:$0xff]
        %v2311 = vld [vmem:[%s2223 + $0x2b8] sm:$0xff]
        %v2312 = vld [vmem:[%s2223 + $0x2c0] sm:$0xff]
        %v2313 = vld [vmem:[%s2223 + $0x2c8] sm:$0xff]
        %v2314 = vld [vmem:[%s2223 + $0x2d0] sm:$0xff]
        %v2315 = vld [vmem:[%s2223 + $0x2d8] sm:$0xff]
        %v2316 = vld [vmem:[%s2223 + $0x2e0] sm:$0xff]
        %v2317 = vld [vmem:[%s2223 + $0x2e8] sm:$0xff]
        %v2318 = vld [vmem:[%s2223 + $0x2f0] sm:$0xff]
        %v2319 = vld [vmem:[%s2223 + $0x2f8] sm:$0xff]
        %s2320 = scalar_lea.vmem [#allocation12], 8
        %v2321 = vld [vmem:[%s2320] sm:$0x3]
        %v2323 = vperm.slane %v2321, 0
        %v2324 = vperm.slane %v2321, 1
        %2327 = vmatpush.msra.mxu0 %v2254
        %2328 = vmatpush.msra.mxu0 %v2252
        %2329 = vmatpush.msra.mxu0 %v2250
        %2330 = vmatpush.msra.mxu0 %v2248
        %2331 = vmatpush.msra.mxu0 %v2246
        %2332 = vmatpush.msra.mxu0 %v2244
        %2333 = vmatpush.msra.mxu0 %v2242
        %2334 = vmatpush.msra.mxu0 %v2240
        %2335 = vmatpush.msra.mxu0 %v2238
        %2336 = vmatpush.msra.mxu0 %v2236
        %2337 = vmatpush.msra.mxu0 %v2234
        %2338 = vmatpush.msra.mxu0 %v2232
        %2339 = vmatpush.msra.mxu0 %v2230
        %2340 = vmatpush.msra.mxu0 %v2228
        %2341 = vmatpush.msra.mxu0 %v2226
        %2342 = vmatpush.msra.mxu0 %v2224
        %2343 = vmatmul.f32.gmra.mxu0 %v2217
        %v2344 = vpop.f32.mrf.mxu0
        %v2345 = vadd.f32 %v2323, %v2344
        %2346 = vmatmul.f32.gmra.mxu0 %v2218
        %v2347 = vpop.f32.mrf.mxu0
        %v2348 = vadd.f32 %v2323, %v2347
        %2349 = vdwg.mxu0
        %2350 = vmatpush.msra.mxu0 %v2286
        %2351 = vmatpush.msra.mxu0 %v2284
        %2352 = vmatpush.msra.mxu0 %v2282
        %2353 = vmatpush.msra.mxu0 %v2280
        %2354 = vmatpush.msra.mxu0 %v2278
        %2355 = vmatpush.msra.mxu0 %v2276
        %2356 = vmatpush.msra.mxu0 %v2274
        %2357 = vmatpush.msra.mxu0 %v2272
        %2358 = vmatpush.msra.mxu0 %v2270
        %2359 = vmatpush.msra.mxu0 %v2268
        %2360 = vmatpush.msra.mxu0 %v2266
        %2361 = vmatpush.msra.mxu0 %v2264
        %2362 = vmatpush.msra.mxu0 %v2262
        %2363 = vmatpush.msra.mxu0 %v2260
        %2364 = vmatpush.msra.mxu0 %v2258
        %2365 = vmatpush.msra.mxu0 %v2256
        %2366 = vmatmul.f32.gmra.mxu0 %v2219
        %v2367 = vpop.f32.mrf.mxu0
        %v2368 = vadd.f32 %v2345, %v2367
        %2369 = vmatmul.f32.gmra.mxu0 %v2220
        %v2370 = vpop.f32.mrf.mxu0
        %v2371 = vadd.f32 %v2348, %v2370
        %2372 = vdwg.mxu0
        %2373 = vmatpush.msra.mxu0 %v2318
        %2374 = vmatpush.msra.mxu0 %v2316
        %2375 = vmatpush.msra.mxu0 %v2314
        %2376 = vmatpush.msra.mxu0 %v2312
        %2377 = vmatpush.msra.mxu0 %v2310
        %2378 = vmatpush.msra.mxu0 %v2308
        %2379 = vmatpush.msra.mxu0 %v2306
        %2380 = vmatpush.msra.mxu0 %v2304
        %2381 = vmatpush.msra.mxu0 %v2302
        %2382 = vmatpush.msra.mxu0 %v2300
        %2383 = vmatpush.msra.mxu0 %v2298
        %2384 = vmatpush.msra.mxu0 %v2296
        %2385 = vmatpush.msra.mxu0 %v2294
        %2386 = vmatpush.msra.mxu0 %v2292
        %2387 = vmatpush.msra.mxu0 %v2290
        %2388 = vmatpush.msra.mxu0 %v2288
        %2389 = vmatmul.f32.gmra.mxu0 %v2221
        %v2390 = vpop.f32.mrf.mxu0
        %v2391 = vadd.f32 %v2368, %v2390
        %2392 = vmatmul.f32.gmra.mxu0 %v2222
        %v2393 = vpop.f32.mrf.mxu0
        %v2394 = vadd.f32 %v2371, %v2393
        %2395 = vdwg.mxu0
        %2396 = vmatpush.msra.mxu0 %v2255
        %2397 = vmatpush.msra.mxu0 %v2253
        %2398 = vmatpush.msra.mxu0 %v2251
        %2399 = vmatpush.msra.mxu0 %v2249
        %2400 = vmatpush.msra.mxu0 %v2247
        %2401 = vmatpush.msra.mxu0 %v2245
        %2402 = vmatpush.msra.mxu0 %v2243
        %2403 = vmatpush.msra.mxu0 %v2241
        %2404 = vmatpush.msra.mxu0 %v2239
        %2405 = vmatpush.msra.mxu0 %v2237
        %2406 = vmatpush.msra.mxu0 %v2235
        %2407 = vmatpush.msra.mxu0 %v2233
        %2408 = vmatpush.msra.mxu0 %v2231
        %2409 = vmatpush.msra.mxu0 %v2229
        %2410 = vmatpush.msra.mxu0 %v2227
        %2411 = vmatpush.msra.mxu0 %v2225
        %2412 = vmatmul.f32.gmra.mxu0 %v2217
        %v2413 = vpop.f32.mrf.mxu0
        %v2414 = vadd.f32 %v2324, %v2413
        %2415 = vmatmul.f32.gmra.mxu0 %v2218
        %v2416 = vpop.f32.mrf.mxu0
        %v2417 = vadd.f32 %v2324, %v2416
        %2418 = vdwg.mxu0
        %2419 = vmatpush.msra.mxu0 %v2287
        %2420 = vmatpush.msra.mxu0 %v2285
        %2421 = vmatpush.msra.mxu0 %v2283
        %2422 = vmatpush.msra.mxu0 %v2281
        %2423 = vmatpush.msra.mxu0 %v2279
        %2424 = vmatpush.msra.mxu0 %v2277
        %2425 = vmatpush.msra.mxu0 %v2275
        %2426 = vmatpush.msra.mxu0 %v2273
        %2427 = vmatpush.msra.mxu0 %v2271
        %2428 = vmatpush.msra.mxu0 %v2269
        %2429 = vmatpush.msra.mxu0 %v2267
        %2430 = vmatpush.msra.mxu0 %v2265
        %2431 = vmatpush.msra.mxu0 %v2263
        %2432 = vmatpush.msra.mxu0 %v2261
        %2433 = vmatpush.msra.mxu0 %v2259
        %2434 = vmatpush.msra.mxu0 %v2257
        %2435 = vmatmul.f32.gmra.mxu0 %v2219
        %v2436 = vpop.f32.mrf.mxu0
        %v2437 = vadd.f32 %v2414, %v2436
        %2438 = vmatmul.f32.gmra.mxu0 %v2220
        %v2439 = vpop.f32.mrf.mxu0
        %v2440 = vadd.f32 %v2417, %v2439
        %2441 = vdwg.mxu0
        %2442 = vmatpush.msra.mxu0 %v2319
        %2443 = vmatpush.msra.mxu0 %v2317
        %2444 = vmatpush.msra.mxu0 %v2315
        %2445 = vmatpush.msra.mxu0 %v2313
        %2446 = vmatpush.msra.mxu0 %v2311
        %2447 = vmatpush.msra.mxu0 %v2309
        %2448 = vmatpush.msra.mxu0 %v2307
        %2449 = vmatpush.msra.mxu0 %v2305
        %2450 = vmatpush.msra.mxu0 %v2303
        %2451 = vmatpush.msra.mxu0 %v2301
        %2452 = vmatpush.msra.mxu0 %v2299
        %2453 = vmatpush.msra.mxu0 %v2297
        %2454 = vmatpush.msra.mxu0 %v2295
        %2455 = vmatpush.msra.mxu0 %v2293
        %2456 = vmatpush.msra.mxu0 %v2291
        %2457 = vmatpush.msra.mxu0 %v2289
        %2458 = vmatmul.f32.gmra.mxu0 %v2221
        %v2459 = vpop.f32.mrf.mxu0
        %v2460 = vadd.f32 %v2437, %v2459
        %2461 = vmatmul.f32.gmra.mxu0 %v2222
        %v2462 = vpop.f32.mrf.mxu0
        %v2463 = vadd.f32 %v2440, %v2462
        %2464 = vdwg.mxu0
        %v2465 = vtanh.pop %v2391
        %v2466 = vtanh.pop %v2394
        %v2467 = vxor.u32 %v2460, 2147483648
        %v2468 = vxor.u32 %v2463, 2147483648
        %v2469 = vmul.f32 %v2467, 1.442695
        %v2470 = vpow.pop %v2469
        %v2471 = vmul.f32 %v2468, 1.442695
        %v2472 = vpow.pop %v2471
        %v2473 = vadd.f32 %v2470, 1.0
        %v2474 = vadd.f32 %v2472, 1.0
        %v2475 = vrcp.pop %v2473
        %v2476 = vmul.f32 %v2473, %v2475
        %v2477 = vsub.f32 1.0, %v2476
        %v2478 = vmul.f32 %v2475, %v2477
        %v2479 = vadd.f32 %v2475, %v2478
        %vm2480 = vweird.f32 %v2473
        %vm2481 = vweird.f32 %v2475
        %vm2482 = vmor %vm2480, %vm2481
        %v2483 = vsel %vm2482, %v2475, %v2479
        %v2484 = vand.u32 2147483647, %v2473
        %vm2485 = vcmp.eq.f32.partialorder %v2484, 8.507059e+37
        %v2486 = vand.u32 %v2473, 2147483648
        %v2487 = vor.u32 1.1754944e-38, %v2486
        %v2488 = vsel %vm2485, %v2487, %v2483
        %v2489 = vmul.f32 1.0, %v2488
        %v2490 = vrcp.pop %v2474
        %v2491 = vmul.f32 %v2474, %v2490
        %v2492 = vsub.f32 1.0, %v2491
        %v2493 = vmul.f32 %v2490, %v2492
        %v2494 = vadd.f32 %v2490, %v2493
        %vm2495 = vweird.f32 %v2474
        %vm2496 = vweird.f32 %v2490
        %vm2497 = vmor %vm2495, %vm2496
        %v2498 = vsel %vm2497, %v2490, %v2494
        %v2499 = vand.u32 2147483647, %v2474
        %vm2500 = vcmp.eq.f32.partialorder %v2499, 8.507059e+37
        %v2501 = vand.u32 %v2474, 2147483648
        %v2502 = vor.u32 1.1754944e-38, %v2501
        %v2503 = vsel %vm2500, %v2502, %v2498
        %v2504 = vmul.f32 1.0, %v2503
        %v2505 = vmul.f32 %v2465, %v2489
        %v2506 = vmul.f32 %v2466, %v2504
        %s2507 = scalar_lea.vmem [#allocation13], 1024
        %v2508 = vld [vmem:[%s2507 + $0x8] sm:$0xff]
        %v2509 = vld [vmem:[%s2507 + $0x18] sm:$0xff]
        %v2510 = vld [vmem:[%s2507 + $0x28] sm:$0xff]
        %v2511 = vld [vmem:[%s2507 + $0x38] sm:$0xff]
        %v2512 = vld [vmem:[%s2507 + $0x48] sm:$0xff]
        %v2513 = vld [vmem:[%s2507 + $0x58] sm:$0xff]
        %v2514 = vld [vmem:[%s2507 + $0x68] sm:$0xff]
        %v2515 = vld [vmem:[%s2507 + $0x78] sm:$0xff]
        %v2516 = vld [vmem:[%s2507 + $0x88] sm:$0xff]
        %v2517 = vld [vmem:[%s2507 + $0x98] sm:$0xff]
        %v2518 = vld [vmem:[%s2507 + $0xa8] sm:$0xff]
        %v2519 = vld [vmem:[%s2507 + $0xb8] sm:$0xff]
        %v2520 = vld [vmem:[%s2507 + $0xc8] sm:$0xff]
        %v2521 = vld [vmem:[%s2507 + $0xd8] sm:$0xff]
        %v2522 = vld [vmem:[%s2507 + $0xe8] sm:$0xff]
        %v2523 = vld [vmem:[%s2507 + $0xf8] sm:$0xff]
        %s2524 = scalar_lea.vmem [#allocation15], 8
        %v2525 = vld [vmem:[%s2524] sm:$0x3]
        %v2527 = vperm.slane %v2525, 1
        %2529 = vmatpush.msra.mxu0 %v2523
        %2530 = vmatpush.msra.mxu0 %v2522
        %2531 = vmatpush.msra.mxu0 %v2521
        %2532 = vmatpush.msra.mxu0 %v2520
        %2533 = vmatpush.msra.mxu0 %v2519
        %2534 = vmatpush.msra.mxu0 %v2518
        %2535 = vmatpush.msra.mxu0 %v2517
        %2536 = vmatpush.msra.mxu0 %v2516
        %2537 = vmatpush.msra.mxu0 %v2515
        %2538 = vmatpush.msra.mxu0 %v2514
        %2539 = vmatpush.msra.mxu0 %v2513
        %2540 = vmatpush.msra.mxu0 %v2512
        %2541 = vmatpush.msra.mxu0 %v2511
        %2542 = vmatpush.msra.mxu0 %v2510
        %2543 = vmatpush.msra.mxu0 %v2509
        %2544 = vmatpush.msra.mxu0 %v2508
        %2545 = vmatmul.f32.gmra.mxu0 %v2505
        %v2546 = vpop.f32.mrf.mxu0
        %v2547 = vadd.f32 %v2527, %v2546
        %2548 = vmatmul.f32.gmra.mxu0 %v2506
        %v2549 = vpop.f32.mrf.mxu0
        %v2550 = vadd.f32 %v2527, %v2549
        %2551 = vdwg.mxu0
        %v2552 = vadd.f32 %v2197, %v2547
        %v2553 = vadd.f32 %v2198, %v2550
        %v2554 = vmul.f32 %v2552, 0.70710677
        %v2555 = vmul.f32 %v2553, 0.70710677
        %v2556 = vmax.f32 %v2554, 0.0
        %v2557 = vmax.f32 %v2555, 0.0
        %v2558 = vld [vmem:[#allocation16] sm:$0xff]
        %v2559 = vld [vmem:[#allocation16 + $0x8] sm:$0xff]
        %v2560 = vld [vmem:[#allocation16 + $0x10] sm:$0xff]
        %v2561 = vld [vmem:[#allocation16 + $0x18] sm:$0xff]
        %v2562 = vld [vmem:[#allocation16 + $0x20] sm:$0xff]
        %v2563 = vld [vmem:[#allocation16 + $0x28] sm:$0xff]
        %v2564 = vld [vmem:[#allocation16 + $0x30] sm:$0xff]
        %v2565 = vld [vmem:[#allocation16 + $0x38] sm:$0xff]
        %v2566 = vld [vmem:[#allocation16 + $0x40] sm:$0xff]
        %v2567 = vld [vmem:[#allocation16 + $0x48] sm:$0xff]
        %v2568 = vld [vmem:[#allocation16 + $0x50] sm:$0xff]
        %v2569 = vld [vmem:[#allocation16 + $0x58] sm:$0xff]
        %v2570 = vld [vmem:[#allocation16 + $0x60] sm:$0xff]
        %v2571 = vld [vmem:[#allocation16 + $0x68] sm:$0xff]
        %v2572 = vld [vmem:[#allocation16 + $0x70] sm:$0xff]
        %v2573 = vld [vmem:[#allocation16 + $0x78] sm:$0xff]
        %v2574 = vld [vmem:[#allocation18] sm:$0x1]
        %v2576 = vperm.slane %v2574, 0
        %2578 = vmatpush.msra.mxu0 %v2573
        %2579 = vmatpush.msra.mxu0 %v2572
        %2580 = vmatpush.msra.mxu0 %v2571
        %2581 = vmatpush.msra.mxu0 %v2570
        %2582 = vmatpush.msra.mxu0 %v2569
        %2583 = vmatpush.msra.mxu0 %v2568
        %2584 = vmatpush.msra.mxu0 %v2567
        %2585 = vmatpush.msra.mxu0 %v2566
        %2586 = vmatpush.msra.mxu0 %v2565
        %2587 = vmatpush.msra.mxu0 %v2564
        %2588 = vmatpush.msra.mxu0 %v2563
        %2589 = vmatpush.msra.mxu0 %v2562
        %2590 = vmatpush.msra.mxu0 %v2561
        %2591 = vmatpush.msra.mxu0 %v2560
        %2592 = vmatpush.msra.mxu0 %v2559
        %2593 = vmatpush.msra.mxu0 %v2558
        %2594 = vmatmul.f32.gmra.mxu0 %v2556
        %v2595 = vpop.f32.mrf.mxu0
        %v2596 = vadd.f32 %v2576, %v2595
        %2597 = vmatmul.f32.gmra.mxu0 %v2557
        %v2598 = vpop.f32.mrf.mxu0
        %v2599 = vadd.f32 %v2576, %v2598
        %2600 = vdwg.mxu0
        %v2601 = vmax.f32 %v2596, 0.0
        %v2602 = vmax.f32 %v2599, 0.0
        %v2603 = vld [vmem:[#allocation19] sm:$0xff]
        %v2604 = vld [vmem:[#allocation19 + $0x8] sm:$0xff]
        %v2605 = vld [vmem:[#allocation19 + $0x10] sm:$0xff]
        %v2606 = vld [vmem:[#allocation19 + $0x18] sm:$0xff]
        %v2607 = vld [vmem:[#allocation19 + $0x20] sm:$0xff]
        %v2608 = vld [vmem:[#allocation19 + $0x28] sm:$0xff]
        %v2609 = vld [vmem:[#allocation19 + $0x30] sm:$0xff]
        %v2610 = vld [vmem:[#allocation19 + $0x38] sm:$0xff]
        %v2611 = vld [vmem:[#allocation19 + $0x40] sm:$0xff]
        %v2612 = vld [vmem:[#allocation19 + $0x48] sm:$0xff]
        %v2613 = vld [vmem:[#allocation19 + $0x50] sm:$0xff]
        %v2614 = vld [vmem:[#allocation19 + $0x58] sm:$0xff]
        %v2615 = vld [vmem:[#allocation19 + $0x60] sm:$0xff]
        %v2616 = vld [vmem:[#allocation19 + $0x68] sm:$0xff]
        %v2617 = vld [vmem:[#allocation19 + $0x70] sm:$0xff]
        %v2618 = vld [vmem:[#allocation19 + $0x78] sm:$0xff]
        %v2619 = vld [vmem:[#allocation21] sm:$0x1]
        %v2621 = vperm.slane %v2619, 0
        %2623 = vmatpush.msra.mxu0 %v2618
        %2624 = vmatpush.msra.mxu0 %v2617
        %2625 = vmatpush.msra.mxu0 %v2616
        %2626 = vmatpush.msra.mxu0 %v2615
        %2627 = vmatpush.msra.mxu0 %v2614
        %2628 = vmatpush.msra.mxu0 %v2613
        %2629 = vmatpush.msra.mxu0 %v2612
        %2630 = vmatpush.msra.mxu0 %v2611
        %2631 = vmatpush.msra.mxu0 %v2610
        %2632 = vmatpush.msra.mxu0 %v2609
        %2633 = vmatpush.msra.mxu0 %v2608
        %2634 = vmatpush.msra.mxu0 %v2607
        %2635 = vmatpush.msra.mxu0 %v2606
        %2636 = vmatpush.msra.mxu0 %v2605
        %2637 = vmatpush.msra.mxu0 %v2604
        %2638 = vmatpush.msra.mxu0 %v2603
        %2639 = vmatmul.f32.gmra.mxu0 %v2601
        %v2640 = vpop.f32.mrf.mxu0
        %v2641 = vadd.f32 %v2621, %v2640
        %2642 = vmatmul.f32.gmra.mxu0 %v2602
        %v2643 = vpop.f32.mrf.mxu0
        %v2644 = vadd.f32 %v2621, %v2643
        %2645 = vdwg.mxu0
        %2646 = vst [vmem:[%s583] sm:$0xff] %v2641
        %2647 = vst [vmem:[%s583 + $0x8] sm:$0xff] %v2644
        %s2648 = sand.u32 %s293, 1
        %s2649 = scalar_lea.sflag [#allocation6], %s2648
        %s2650 = sand.u32 %s293, 1
        %s2651 = smul.addr %s2650, 16
        %s2652 = scalar_lea.vmem [#allocation22], %s2651
        // Predicated region
        $region113: #{tpu_custom_call.1} parent=63 // pred_check
          %p2653 = pneg %p303
        $region114: #{tpu_custom_call.1} parent=63 // pred_check_branch
          %2655 = sbr.rel (%p2653) target = $region116
        $region115: #{tpu_custom_call.1} parent=63 // pred_region
          %s2656 = smul.u32 2, %s38
          %2658 = vsyncadd %s2649, 0
          %s2659 = smul.addr %s37, 10
          %s2660 = sadd.s32 %s2656, %s2659
          %s2661 = smul.addr %s2660, 8
          %s2662 = scalar_lea.hbm %s11, %s2661
          %s2663 = sshll.u32 %s2652, 4
          %s2664 = int_to_ptr.vmem [resolvable:$true] %s2663
          %s2665 = sshll.u32 %s2662, 4
          %s2666 = int_to_ptr.hbm [resolvable:$true] %s2665
          %2671 = dma.vmem_to_hbm [thread:$0]  %s2664, 256, %s2666, %s2649, 128, 128, 8
        $region116: #{tpu_custom_call.1} parent=63 // pred_fallthru
          _
      $region64: #{tpu_custom_call.1} parent=5 // pred_fallthru
        _
      %p2672 = scmp.le.s32.totalorder 2, %s28
      // Predicated region
      $region117: #{tpu_custom_call.1} parent=5 // pred_check
        %p2673 = pneg %p2672
      $region118: #{tpu_custom_call.1} parent=5 // pred_check_branch
        %2675 = sbr.rel (%p2673) target = $region120
      $region119: #{tpu_custom_call.1} parent=5 // pred_region
        %s2676 = ssub.s32 %s28, 2
        // Predicated region
        $region121: #{tpu_custom_call.1} parent=119 // pred_check
          %p2677 = pneg %p309
        $region122: #{tpu_custom_call.1} parent=119 // pred_check_branch
          %2679 = sbr.rel (%p2677) target = $region124
        $region123: #{tpu_custom_call.1} parent=119 // pred_region
          %s2680 = sand.u32 %s294, 1
          %s2681 = scalar_lea.sflag [#allocation6], %s2680
          %s2682 = sand.u32 %s294, 1
          %s2683 = smul.addr %s2682, 16
          %s2684 = scalar_lea.vmem [#allocation22], %s2683
          %2686 = dma.done %s2681, 256
        $region124: #{tpu_custom_call.1} parent=119 // pred_fallthru
          _
      $region120: #{tpu_custom_call.1} parent=5 // pred_fallthru
        _
    $region6: #{tpu_custom_call.1} parent=1 // loop_footer
      %s32 = sadd.s32 1, %s28
    $region7: #{tpu_custom_call.1} parent=1 // loop_footer_branch
      %27 = sbr.rel target = $region3
    $region8: #{tpu_custom_call.1} parent=1 // loop_exit
      _
    %2687 = vsyncpa [#allocation5], 1
    %s2688 = scalar_lea.sflag [#allocation5], 1
    %2689 = vsyncpa %s2688, 1
    %2690 = vsyncpa [#allocation8], 1
    %2691 = vsyncpa [#allocation11], 1
    %2692 = vsyncpa [#allocation14], 1
    %2693 = vsyncpa [#allocation17], 1
    %2694 = vsyncpa [#allocation20], 1
    %2695 = vsyncpa [#allocation6], 1
    %s2696 = scalar_lea.sflag [#allocation6], 1
    %2697 = vsyncpa %s2696, 1

</llo_original>
